<compile_context>
chip_gen: v7x
topology: tpu7x:2x2x1
jax: 0.10.0
libtpu: 0.0.40
codegen_flags: <defaults>
</compile_context>

<pallas_src>
import math
import numpy as np
import jax
import jax.numpy as jnp
from jax import lax
from jax.experimental import pallas as pl
from jax.experimental.pallas import tpu as pltpu

EPS = 1e-5          # F.layer_norm default eps
BF16 = jnp.bfloat16
APPROX_RECIP = True  # set False for exact divide when doing tight parity checks


def _ln(x, w, b):
    mu = jnp.mean(x, axis=-1, keepdims=True)
    var = jnp.mean(jnp.square(x - mu), axis=-1, keepdims=True)
    return (x - mu) * lax.rsqrt(var + EPS) * w + b


def _vmem_limit_bytes():
    cap = 64 * 1024 * 1024
    try:
        cap = int(getattr(pltpu.get_tpu_info(), "vmem_capacity_bytes", cap))
    except Exception:
        pass
    # ~25% headroom for compiler-internal scratch, capped at 100 MiB.
    return int(min(cap * 3 // 4, 100 * 1024 * 1024))


def _pick_tile(n, cap):
    """Largest multiple-of-128 divisor of n that is <= cap (fallback: n)."""
    t = (int(cap) // 128) * 128
    while t >= 128:
        if n % t == 0:
            return t
        t -= 128
    return n


def _plan_tiles(T, D, H, vmem_limit):
    # f32 (T,D) scratches (k, v, wkv) + residual in/out blocks + an estimate of
    # the compiler-managed (T,D) intermediates (xln, xk/xv/xr, kv, ...).
    fixed = (3 + 2 + 6) * T * D * 4
    avail = max(vmem_limit - fixed, 8 * 1024 * 1024)
    # weight double-buffers: 2*D*TD*2 (D-col tiles) + 2*D*TH*2 + 2*TH*D*2 bytes
    cap_td = max(128, min(512, (avail // 4) // (4 * D)))
    cap_th = max(128, min(512, (avail // 4) // (8 * D)))
    return _pick_tile(D, cap_td), _pick_tile(H, cap_th)


def _head_tile(V, D, vmem_limit):
    # double-buffered (D, tnv) bf16 tile stays under ~1/4 of the VMEM budget
    cap = max(128, min(2048, (vmem_limit // 4) // (2 * D * 2)))
    return _pick_tile(V, cap)


# ---------------------------------------------------------------------------
# Per-layer kernel factory: one grid step = one RWKV block (SA_seq + FF_seq).
# ---------------------------------------------------------------------------
def _make_layer_kernel(T, D, H, TD, TH, R, approx_recip=True):
    n_td = D // TD          # column tiles of the (D, D)-ish projections
    n_th = H // TH          # chunks of the FFN hidden dim
    n_ch = T // R           # recurrence chunks of R rows

    def kernel(x_in_ref, state_in_ref, ln_ref, att_mix_ref, att_tftd_ref,
               ffn_mix_ref, att_kw, att_vw, att_rw, att_ow,
               ffn_kw, ffn_vw, ffn_rw,
               x_out_ref, state_out_ref,
               k_s, v_s, wkv_s, wd_buf, wh_buf, wv_buf,
               sem_d, sem_h, sem_v):
        li = pl.program_id(0)

        # ------------------ manual weight-tile streaming helpers ------------------
        def dma_cols(w_hbm, j, tile, buf, sem, slot):
            # (rows, tile) column slice of layer li's weight matrix in HBM.
            return pltpu.make_async_copy(
                w_hbm.at[li, :, pl.ds(j * tile, tile)], buf.at[slot], sem.at[slot])

        def dma_rows(w_hbm, j, tile, buf, sem, slot):
            # (tile, cols) row slice of layer li's weight matrix in HBM.
            return pltpu.make_async_copy(
                w_hbm.at[li, pl.ds(j * tile, tile), :], buf.at[slot], sem.at[slot])

        def sweep_cols(x_bf, w_hbm, emit, first_prestarted=False):
            # Column-tiled GEMM y[:, j*TD:(j+1)*TD] = x_bf @ W[:, tile j],
            # double-buffered weight DMA (tile j+1 in flight during tile j).
            if not first_prestarted:
                dma_cols(w_hbm, 0, TD, wd_buf, sem_d, 0).start()
            for j in range(n_td):
                slot = j & 1
                dma_cols(w_hbm, j, TD, wd_buf, sem_d, slot).wait()
                if j + 1 < n_td:
                    dma_cols(w_hbm, j + 1, TD, wd_buf, sem_d, 1 - slot).start()
                emit(j, jnp.dot(x_bf, wd_buf[slot],
                                preferred_element_type=jnp.float32))

        # Residual stream is VMEM-resident across layers (constant output block
        # index); the output HBM buffer aliases x0 so only the final write lands.
        @pl.when(li == 0)
        def _():
            x_out_ref[...] = x_in_ref[...]

        x = x_out_ref[...]
        row0 = lax.broadcasted_iota(jnp.int32, (T, D), 0) == 0

        # ------------------------- attention (SA_seq) -------------------------
        xln = _ln(x, ln_ref[0, 0:1, :], ln_ref[0, 1:2, :])
        # xx = cat(state_xx, xln[:-1]) via roll + row-0 select.
        xx = jnp.where(row0, state_in_ref[0, 1:2, :],
                       pltpu.roll(xln, shift=1, axis=0))
        d = xln - xx
        xk_bf = (xx + d * att_mix_ref[0, 0:1, :]).astype(BF16)   # xln*mk + xx*(1-mk)
        xv_bf = (xx + d * att_mix_ref[0, 1:2, :]).astype(BF16)
        xr_bf = (xx + d * att_mix_ref[0, 2:3, :]).astype(BF16)
        state_out_ref[0, 1:2, :] = xln[T - 1:T, :]

        def emit_k(j, res):
            k_s[:, pl.ds(j * TD, TD)] = res

        def emit_v(j, res):
            v_s[:, pl.ds(j * TD, TD)] = res

        sweep_cols(xk_bf, att_kw, emit_k)
        sweep_cols(xv_bf, att_vw, emit_v)

        # Prefetch the post-recurrence weights during the serial WKV loop
        # (long DMA-idle window): rw tile 0 + first FFN chunk.
        dma_cols(att_rw, 0, TD, wd_buf, sem_d, 0).start()
        dma_cols(ffn_kw, 0, TH, wh_buf, sem_h, 0).start()
        dma_rows(ffn_vw, 0, TH, wv_buf, sem_v, 0).start()

        tf = att_tftd_ref[0, 0:1, :]
        tdcy = att_tftd_ref[0, 1:2, :]
        aa0 = state_in_ref[0, 2:3, :]
        bb0 = state_in_ref[0, 3:4, :]
        pp0 = state_in_ref[0, 4:5, :]

        # Serial WKV recurrence, chunked by R rows: one (R, D) load of k and v,
        # R unrolled steps, one (R, D) store of wkv.
        def chunk_body(c, carry):
            aa, bb, pp = carry
            t0 = pl.multiple_of(c * R, R)
            kc = k_s[pl.ds(t0, R), :]
            vc = v_s[pl.ds(t0, R), :]
            rows = []
            for i in range(R):
                kt = kc[i:i + 1, :]
                vt = vc[i:i + 1, :]
                ktf = kt + tf                       # time_first add on the VALU slot
                p = jnp.maximum(pp, ktf)
                e1 = jnp.exp(pp - p)
                e2 = jnp.exp(ktf - p)
                num = e1 * aa + e2 * vt
                den = e1 * bb + e2
                if approx_recip:
                    rows.append(num * pl.reciprocal(den, approx=True))
                else:
                    rows.append(num / den)
                ww = pp + tdcy
                p2 = jnp.maximum(ww, kt)
                e1b = jnp.exp(ww - p2)
                e2b = jnp.exp(kt - p2)
                aa = e1b * aa + e2b * vt
                bb = e1b * bb + e2b
                pp = p2
            wkv_s[pl.ds(t0, R), :] = jnp.concatenate(rows, axis=0)
            return (aa, bb, pp)

        aa, bb, pp = lax.fori_loop(0, n_ch, chunk_body, (aa0, bb0, pp0))
        state_out_ref[0, 2:3, :] = aa
        state_out_ref[0, 3:4, :] = bb
        state_out_ref[0, 4:5, :] = pp

        # r = sigmoid(xr @ rw) applied in place onto wkv (no extra (T,D) scratch).
        def emit_r(j, res):
            cols = pl.ds(j * TD, TD)
            wkv_s[:, cols] = wkv_s[:, cols] * jax.nn.sigmoid(res)

        sweep_cols(xr_bf, att_rw, emit_r, first_prestarted=True)

        rwkv_bf = wkv_s[...].astype(BF16)

        # x += (r * wkv) @ ow, residual add as RMW on the VMEM-resident block.
        def emit_ow(j, res):
            cols = pl.ds(j * TD, TD)
            x_out_ref[:, cols] = x_out_ref[:, cols] + res

        sweep_cols(rwkv_bf, att_ow, emit_ow)

        # ----------------------------- FFN (FF_seq) ----------------------------
        x2 = x_out_ref[...]
        xln2 = _ln(x2, ln_ref[0, 2:3, :], ln_ref[0, 3:4, :])
        xx2 = jnp.where(row0, state_in_ref[0, 0:1, :],
                        pltpu.roll(xln2, shift=1, axis=0))
        d2 = xln2 - xx2
        xk2_bf = (xx2 + d2 * ffn_mix_ref[0, 0:1, :]).astype(BF16)
        xr2_bf = (xx2 + d2 * ffn_mix_ref[0, 1:2, :]).astype(BF16)
        state_out_ref[0, 0:1, :] = xln2[T - 1:T, :]

        # Hidden-dim chunked FFN: bounds the live (T, TH) intermediate and
        # streams ffn_kw column tiles / ffn_vw row tiles (chunk 0 prefetched).
        kv = jnp.zeros((T, D), jnp.float32)
        for h in range(n_th):
            slot = h & 1
            dma_cols(ffn_kw, h, TH, wh_buf, sem_h, slot).wait()
            if h + 1 < n_th:
                dma_cols(ffn_kw, h + 1, TH, wh_buf, sem_h, 1 - slot).start()
                dma_rows(ffn_vw, h + 1, TH, wv_buf, sem_v, 1 - slot).start()
            kk = jnp.square(jnp.maximum(
                jnp.dot(xk2_bf, wh_buf[slot],
                        preferred_element_type=jnp.float32), 0.0))
            dma_rows(ffn_vw, h, TH, wv_buf, sem_v, slot).wait()
            kv = kv + jnp.dot(kk.astype(BF16), wv_buf[slot],
                              preferred_element_type=jnp.float32)

        # x += sigmoid(xr2 @ ffn_rw) * kv, column-tiled with fused residual add.
        def emit_ffn(j, res):
            cols = pl.ds(j * TD, TD)
            x_out_ref[:, cols] = (x_out_ref[:, cols]
                                  + jax.nn.sigmoid(res) * kv[:, j * TD:(j + 1) * TD])

        sweep_cols(xr2_bf, ffn_rw, emit_ffn)

    return kernel


# ---------------------------------------------------------------------------
# Head projection kernel (final LN is hoisted out; tiled over the vocab dim).
# ---------------------------------------------------------------------------
def head_kernel(xn_ref, head_t_ref, out_ref):
    out_ref[...] = jnp.dot(xn_ref[...].astype(BF16), head_t_ref[...],
                           preferred_element_type=jnp.float32)


# ---------------------------------------------------------------------------
# Wrapper
# ---------------------------------------------------------------------------
def rwkv_forward_pallas(tokens, p, state0):
    emb_ln = p['emb_ln']
    D = emb_ln.shape[1]
    n_layer = p['ln'].shape[0]
    H = p['ffn_kw'].shape[2]
    T = tokens.shape[0]
    V = p['head_t'].shape[1]

    vmem_limit = _vmem_limit_bytes()
    TD, TH = _plan_tiles(T, D, H, vmem_limit)
    R = math.gcd(T, 8)

    x0 = emb_ln[tokens]  # (T, D) -- embedding gather is glue

    kernel = _make_layer_kernel(T, D, H, TD, TH, R, approx_recip=APPROX_RECIP)

    layer_call = pl.pallas_call(
        kernel,
        out_shape=(jax.ShapeDtypeStruct((T, D), jnp.float32),
                   jax.ShapeDtypeStruct((n_layer, 5, D), jnp.float32)),
        grid_spec=pltpu.PrefetchScalarGridSpec(
            num_scalar_prefetch=0,
            grid=(n_layer,),
            in_specs=[
                pl.BlockSpec((T, D), lambda i: (0, 0)),          # x0 (aliased to out 0)
                pl.BlockSpec((1, 5, D), lambda i: (i, 0, 0)),    # state_in
                pl.BlockSpec((1, 4, D), lambda i: (i, 0, 0)),    # ln1/ln2 w,b
                pl.BlockSpec((1, 3, D), lambda i: (i, 0, 0)),    # att time_mix k,v,r
                pl.BlockSpec((1, 2, D), lambda i: (i, 0, 0)),    # time_first, time_decay
                pl.BlockSpec((1, 2, D), lambda i: (i, 0, 0)),    # ffn time_mix k,r
                pl.BlockSpec(memory_space=pl.ANY),               # att kw  (HBM, bf16)
                pl.BlockSpec(memory_space=pl.ANY),               # att vw
                pl.BlockSpec(memory_space=pl.ANY),               # att rw
                pl.BlockSpec(memory_space=pl.ANY),               # att ow
                pl.BlockSpec(memory_space=pl.ANY),               # ffn kw
                pl.BlockSpec(memory_space=pl.ANY),               # ffn vw
                pl.BlockSpec(memory_space=pl.ANY),               # ffn rw
            ],
            out_specs=(
                pl.BlockSpec((T, D), lambda i: (0, 0)),          # residual stream
                pl.BlockSpec((1, 5, D), lambda i: (i, 0, 0)),    # state_out
            ),
            scratch_shapes=[
                pltpu.VMEM((T, D), jnp.float32),                 # k
                pltpu.VMEM((T, D), jnp.float32),                 # v
                pltpu.VMEM((T, D), jnp.float32),                 # wkv (dedicated)
                pltpu.VMEM((2, D, TD), BF16),                    # D-col weight tiles
                pltpu.VMEM((2, D, TH), BF16),                    # ffn_kw column tiles
                pltpu.VMEM((2, TH, D), BF16),                    # ffn_vw row tiles
                pltpu.SemaphoreType.DMA((2,)),                   # sem: D-col tiles
                pltpu.SemaphoreType.DMA((2,)),                   # sem: ffn_kw tiles
                pltpu.SemaphoreType.DMA((2,)),                   # sem: ffn_vw tiles
            ]),
        input_output_aliases={0: 0},
        compiler_params=pltpu.CompilerParams(
            dimension_semantics=("arbitrary",),
            vmem_limit_bytes=vmem_limit),
    )

    x_out, state_out = layer_call(
        x0, state0, p['ln'], p['att_mix'], p['att_tftd'], p['ffn_mix'],
        p['att_kw'], p['att_vw'], p['att_rw'], p['att_ow'],
        p['ffn_kw'], p['ffn_vw'], p['ffn_rw'])

    # Final layer-norm hoisted out of the vocab-tiled head grid (tiny 1xD op).
    xn = _ln(x_out[T - 1:T, :], p['ln_out_w'][None, :], p['ln_out_b'][None, :])

    tnv = _head_tile(V, D, vmem_limit)
    logits = pl.pallas_call(
        head_kernel,
        out_shape=jax.ShapeDtypeStruct((1, V), jnp.float32),
        grid=(V // tnv,),
        in_specs=[
            pl.BlockSpec((1, D), lambda j: (0, 0)),
            pl.BlockSpec((D, tnv), lambda j: (0, j)),            # head_t tile (bf16)
        ],
        out_specs=pl.BlockSpec((1, tnv), lambda j: (0, j)),
        compiler_params=pltpu.CompilerParams(
            dimension_semantics=("parallel",),
            vmem_limit_bytes=vmem_limit),
    )(xn, p['head_t'])

    return logits[0], state_out


def prepare_params(p):
    """One-time cast of the streamed projection weights to bf16."""
    q = dict(p)
    for name in ('att_kw', 'att_vw', 'att_rw', 'att_ow',
                 'ffn_kw', 'ffn_vw', 'ffn_rw', 'head_t'):
        q[name] = p[name].astype(BF16)
    return q


# ---------------------------------------------------------------------------
# Pure-JAX reference (mirrors the PyTorch SA_seq / FF_seq exactly).
# `matmul` lets us build a quantization-aware variant for tight checking.
# ---------------------------------------------------------------------------
def _mm_bf16(a, b):
    return jnp.dot(a.astype(BF16), b.astype(BF16), preferred_element_type=jnp.float32)


def rwkv_forward_ref(tokens, p, state0, matmul=None):
    mm = matmul if matmul is not None else (lambda a, b: a @ b)
    x = p['emb_ln'][tokens]
    state = state0
    n_layer = p['ln'].shape[0]
    T = x.shape[0]
    for i in range(n_layer):
        ln1w, ln1b, ln2w, ln2b = p['ln'][i]
        mk, mv, mr = p['att_mix'][i]
        tf, td = p['att_tftd'][i]
        kw, vw, rw, ow = p['att_kw'][i], p['att_vw'][i], p['att_rw'][i], p['att_ow'][i]

        xln = _ln(x, ln1w, ln1b)
        xx = jnp.concatenate([state[i, 1:2], xln[:-1]], axis=0)
        xk = xln * mk + xx * (1 - mk)
        xv = xln * mv + xx * (1 - mv)
        xr = xln * mr + xx * (1 - mr)
        state = state.at[i, 1].set(xln[-1])
        r = jax.nn.sigmoid(mm(xr, rw))
        k = mm(xk, kw)
        v = mm(xv, vw)
        aa, bb, pp = state[i, 2], state[i, 3], state[i, 4]
        wkv = []
        for t in range(T):
            ww = tf + k[t]
            pmax = jnp.maximum(pp, ww)
            e1 = jnp.exp(pp - pmax)
            e2 = jnp.exp(ww - pmax)
            wkv.append((e1 * aa + e2 * v[t]) / (e1 * bb + e2))
            ww = pp + td
            pmax = jnp.maximum(ww, k[t])
            e1 = jnp.exp(ww - pmax)
            e2 = jnp.exp(k[t] - pmax)
            aa = e1 * aa + e2 * v[t]
            bb = e1 * bb + e2
            pp = pmax
        state = state.at[i, 2].set(aa).at[i, 3].set(bb).at[i, 4].set(pp)
        x = x + mm(r * jnp.stack(wkv), ow)

        fmk, fmr = p['ffn_mix'][i]
        xln2 = _ln(x, ln2w, ln2b)
        xx2 = jnp.concatenate([state[i, 0:1], xln2[:-1]], axis=0)
        xk2 = xln2 * fmk + xx2 * (1 - fmk)
        xr2 = xln2 * fmr + xx2 * (1 - fmr)
        state = state.at[i, 0].set(xln2[-1])
        r2 = jax.nn.sigmoid(mm(xr2, p['ffn_rw'][i]))
        kk = jnp.square(jnp.maximum(mm(xk2, p['ffn_kw'][i]), 0.0))
        x = x + r2 * mm(kk, p['ffn_vw'][i])

    xf = _ln(x[-1], p['ln_out_w'], p['ln_out_b'])
    return mm(p['head'], xf), state


# ---------------------------------------------------------------------------
# Deterministic synthetic parameters (shapes as implied by the module __init__)
# ---------------------------------------------------------------------------
def init_params(key, n_layer, D, H, V):
    ks = jax.random.split(key, 20)
    f32 = jnp.float32

    def nrm(k, shape, scale):
        return (scale * jax.random.normal(k, shape)).astype(f32)

    emb = nrm(ks[0], (V, D), 1.0)
    ln0_w = (1.0 + 0.1 * jax.random.normal(ks[1], (D,))).astype(f32)
    ln0_b = (0.1 * jax.random.normal(ks[2], (D,))).astype(f32)
    emb_ln = _ln(emb, ln0_w, ln0_b).astype(f32)   # done at init, like PyTorch

    lnw = (1.0 + 0.1 * jax.random.normal(ks[3], (n_layer, 2, D))).astype(f32)
    lnb = (0.1 * jax.random.normal(ks[4], (n_layer, 2, D))).astype(f32)
    ln = jnp.stack([lnw[:, 0], lnb[:, 0], lnw[:, 1], lnb[:, 1]], axis=1)

    att_mix = jax.random.uniform(ks[5], (n_layer, 3, D)).astype(f32)
    time_first = nrm(ks[6], (n_layer, D), 0.3)
    time_decay = -jnp.exp(nrm(ks[7], (n_layer, D), 0.3))   # loader: -exp(w)
    att_tftd = jnp.stack([time_first, time_decay], axis=1)

    s = 1.0 / np.sqrt(D)
    att_kw = nrm(ks[8], (n_layer, D, D), s)      # (in, out) -- loader transposes
    att_vw = nrm(ks[9], (n_layer, D, D), s)
    att_rw = nrm(ks[10], (n_layer, D, D), s)
    att_ow = nrm(ks[11], (n_layer, D, D), s)
    ffn_mix = jax.random.uniform(ks[12], (n_layer, 2, D)).astype(f32)
    ffn_kw = nrm(ks[13], (n_layer, D, H), s)
    ffn_vw = nrm(ks[14], (n_layer, H, D), 1.0 / np.sqrt(H))
    ffn_rw = nrm(ks[15], (n_layer, D, D), s)

    ln_out_w = (1.0 + 0.1 * jax.random.normal(ks[16], (D,))).astype(f32)
    ln_out_b = (0.1 * jax.random.normal(ks[17], (D,))).astype(f32)
    head = nrm(ks[18], (V, D), s)

    return dict(emb_ln=emb_ln, ln=ln, att_mix=att_mix, att_tftd=att_tftd,
                att_kw=att_kw, att_vw=att_vw, att_rw=att_rw, att_ow=att_ow,
                ffn_mix=ffn_mix, ffn_kw=ffn_kw, ffn_vw=ffn_vw, ffn_rw=ffn_rw,
                ln_out_w=ln_out_w, ln_out_b=ln_out_b, head=head, head_t=head.T)


if __name__ == "__main__":
    n_layer, D, H, V, T = 2, 128, 512, 1024, 16

    key = jax.random.PRNGKey(0)
    pkey, tkey = jax.random.split(key)
    params = init_params(pkey, n_layer, D, H, V)
    qparams = prepare_params(params)           # bf16 streamed weights
    tokens = jax.random.randint(tkey, (T,), 0, V)

    # state None path: zeros with pp rows = -1e30
    state0 = jnp.zeros((n_layer, 5, D), jnp.float32).at[:, 4, :].set(-1e30)

    fwd = jax.jit(rwkv_forward_pallas)
    logits, state_out = fwd(tokens, qparams, state0)
    jax.block_until_ready((logits, state_out))

    logits_np = np.asarray(logits)
    assert np.all(np.isfinite(logits_np))
    assert np.all(np.isfinite(np.asarray(state_out)))

    # Quantization-aware reference (same bf16 matmul inputs, f32 accumulate):
    # isolates kernel correctness from the intentional bf16 weight streaming.
    q_logits, q_state = rwkv_forward_ref(tokens, params, state0, matmul=_mm_bf16)
    np.testing.assert_allclose(logits_np, np.asarray(q_logits), rtol=2e-2, atol=2e-2)
    np.testing.assert_allclose(np.asarray(state_out), np.asarray(q_state),
                               rtol=5e-2, atol=5e-2)

    # Exact float32 reference mirroring the PyTorch module; the looser tolerance
    # is the bf16 weight-quantization budget.
    f_logits, _ = rwkv_forward_ref(tokens, params, state0)
    np.testing.assert_allclose(logits_np, np.asarray(f_logits), rtol=1e-1, atol=1e-1)

    print("KERNEL_OK")
</pallas_src>

<mosaic_0001>
module attributes {stable_mosaic.version = 11 : i64} {
  func.func @head_kernel(%arg0: i32, %arg1: memref<1x128xf32, #tpu.memory_space<vmem>>, %arg2: memref<128x1024xbf16, #tpu.memory_space<vmem>>, %arg3: memref<1x1024xf32, #tpu.memory_space<vmem>>) attributes {dimension_semantics = [#tpu.dimension_semantics<parallel>], iteration_bounds = array<i64: 1>, scalar_prefetch = 0 : i64, scratch_operands = 0 : i64, tpu.core_type = #tpu.core_type<tc>, window_params = [{pipeline_mode = #tpu.pipeline_mode<synchronous>, transform_indices = @transform_0, window_bounds = array<i64: 1, 128>}, {transform_indices = @transform_1, window_bounds = array<i64: 128, 1024>}, {transform_indices = @transform_2, window_bounds = array<i64: 1, 1024>}]} {
    %c0 = arith.constant 0 : index
    %c0_0 = arith.constant 0 : index
    %0 = vector.load %arg1[%c0, %c0_0] : memref<1x128xf32, #tpu.memory_space<vmem>>, vector<1x128xf32>
    %1 = arith.truncf %0 : vector<1x128xf32> to vector<1x128xbf16>
    %c0_1 = arith.constant 0 : index
    %c0_2 = arith.constant 0 : index
    %2 = vector.load %arg2[%c0_1, %c0_2] : memref<128x1024xbf16, #tpu.memory_space<vmem>>, vector<128x1024xbf16>
    %cst = arith.constant dense<0.000000e+00> : vector<1x1024xf32>
    %3 = tpu.matmul %1, %2, %cst {dimension_numbers = #tpu.dot_dimension_numbers<[1], [0], [0], [1], [0, 0, 1, 1], [], []>} : vector<1x128xbf16>, vector<128x1024xbf16>, vector<1x1024xf32> -> vector<1x1024xf32>
    %c0_3 = arith.constant 0 : index
    %c0_4 = arith.constant 0 : index
    %4 = vector.load %arg3[%c0_3, %c0_4] : memref<1x1024xf32, #tpu.memory_space<vmem>>, vector<1x1024xf32>
    tpu.vector_store %arg3[%c0_3, %c0_4], %3 {strides = array<i32>} : memref<1x1024xf32, #tpu.memory_space<vmem>>, vector<1x1024xf32>,
    return
  }
  func.func @transform_0(%arg0: i32) -> (i32, i32) {
    %c0_i32 = arith.constant 0 : i32
    %c0_i32_0 = arith.constant 0 : i32
    %c0_i32_1 = arith.constant 0 : i32
    return %c0_i32, %c0_i32_0 : i32, i32
  }
  func.func @transform_1(%arg0: i32) -> (i32, i32) {
    %c0_i32 = arith.constant 0 : i32
    %c0_i32_0 = arith.constant 0 : i32
    return %c0_i32, %arg0 : i32, i32
  }
  func.func @transform_2(%arg0: i32) -> (i32, i32) {
    %c0_i32 = arith.constant 0 : i32
    %c0_i32_0 = arith.constant 0 : i32
    return %c0_i32, %arg0 : i32, i32
  }
}

module attributes {stable_mosaic.version = 11 : i64} {
  func.func @kernel(%arg0: i32, %arg1: memref<16x128xf32, #tpu.memory_space<vmem>>, %arg2: memref<1x5x128xf32, #tpu.memory_space<vmem>>, %arg3: memref<1x4x128xf32, #tpu.memory_space<vmem>>, %arg4: memref<1x3x128xf32, #tpu.memory_space<vmem>>, %arg5: memref<1x2x128xf32, #tpu.memory_space<vmem>>, %arg6: memref<1x2x128xf32, #tpu.memory_space<vmem>>, %arg7: memref<2x128x128xbf16, #tpu.memory_space<any>>, %arg8: memref<2x128x128xbf16, #tpu.memory_space<any>>, %arg9: memref<2x128x128xbf16, #tpu.memory_space<any>>, %arg10: memref<2x128x128xbf16, #tpu.memory_space<any>>, %arg11: memref<2x128x512xbf16, #tpu.memory_space<any>>, %arg12: memref<2x512x128xbf16, #tpu.memory_space<any>>, %arg13: memref<2x128x128xbf16, #tpu.memory_space<any>>, %arg14: memref<16x128xf32, #tpu.memory_space<vmem>>, %arg15: memref<1x5x128xf32, #tpu.memory_space<vmem>>, %arg16: memref<16x128xf32, #tpu.memory_space<vmem>>, %arg17: memref<16x128xf32, #tpu.memory_space<vmem>>, %arg18: memref<16x128xf32, #tpu.memory_space<vmem>>, %arg19: memref<2x128x128xbf16, #tpu.memory_space<vmem>>, %arg20: memref<2x128x512xbf16, #tpu.memory_space<vmem>>, %arg21: memref<2x512x128xbf16, #tpu.memory_space<vmem>>, %arg22: memref<2x!tpu.dma_semaphore, #tpu.memory_space<semaphore_mem>>, %arg23: memref<2x!tpu.dma_semaphore, #tpu.memory_space<semaphore_mem>>, %arg24: memref<2x!tpu.dma_semaphore, #tpu.memory_space<semaphore_mem>>) attributes {dimension_semantics = [#tpu.dimension_semantics<arbitrary>], iteration_bounds = array<i64: 2>, scalar_prefetch = 0 : i64, scratch_operands = 9 : i64, tpu.core_type = #tpu.core_type<tc>, window_params = [{pipeline_mode = #tpu.pipeline_mode<synchronous>, transform_indices = @transform_0, window_bounds = array<i64: 16, 128>}, {transform_indices = @transform_1, window_bounds = array<i64: 1, 5, 128>}, {transform_indices = @transform_2, window_bounds = array<i64: 1, 4, 128>}, {transform_indices = @transform_3, window_bounds = array<i64: 1, 3, 128>}, {transform_indices = @transform_4, window_bounds = array<i64: 1, 2, 128>}, {transform_indices = @transform_5, window_bounds = array<i64: 1, 2, 128>}, {}, {}, {}, {}, {}, {}, {}, {pipeline_mode = #tpu.pipeline_mode<synchronous>, transform_indices = @transform_13, window_bounds = array<i64: 16, 128>}, {transform_indices = @transform_14, window_bounds = array<i64: 1, 5, 128>}]} {
    %c0_i32 = arith.constant 0 : i32
    %0 = arith.cmpi eq, %arg0, %c0_i32 : i32
    %1 = arith.extui %0 : i1 to i32
    %c0_i32_0 = arith.constant 0 : i32
    %2 = arith.cmpi ne, %1, %c0_i32_0 : i32
    scf.if %2 {
      %c0_211 = arith.constant 0 : index
      %c0_212 = arith.constant 0 : index
      %268 = vector.load %arg1[%c0_211, %c0_212] : memref<16x128xf32, #tpu.memory_space<vmem>>, vector<16x128xf32>
      %c0_213 = arith.constant 0 : index
      %c0_214 = arith.constant 0 : index
      %269 = vector.load %arg14[%c0_213, %c0_214] : memref<16x128xf32, #tpu.memory_space<vmem>>, vector<16x128xf32>
      tpu.vector_store %arg14[%c0_213, %c0_214], %268 {strides = array<i32>} : memref<16x128xf32, #tpu.memory_space<vmem>>, vector<16x128xf32>,
    } else {
    }
    %c0 = arith.constant 0 : index
    %c0_1 = arith.constant 0 : index
    %3 = vector.load %arg14[%c0, %c0_1] : memref<16x128xf32, #tpu.memory_space<vmem>>, vector<16x128xf32>
    %4 = tpu.iota {dimensions = array<i32: 0>} : vector<16x128xi32>
    %c0_i32_2 = arith.constant 0 : i32
    %5 = vector.broadcast %c0_i32_2 : i32 to vector<16x128xi32>
    %6 = arith.cmpi eq, %4, %5 : vector<16x128xi32>
    %c0_3 = arith.constant 0 : index
    %c0_4 = arith.constant 0 : index
    %c0_5 = arith.constant 0 : index
    %7 = vector.load %arg3[%c0_3, %c0_4, %c0_5] : memref<1x4x128xf32, #tpu.memory_space<vmem>>, vector<1x1x128xf32>
    %8 = vector.shape_cast %7 : vector<1x1x128xf32> to vector<1x128xf32>
    %c0_6 = arith.constant 0 : index
    %c1 = arith.constant 1 : index
    %c0_7 = arith.constant 0 : index
    %9 = vector.load %arg3[%c0_6, %c1, %c0_7] : memref<1x4x128xf32, #tpu.memory_space<vmem>>, vector<1x1x128xf32>
    %10 = vector.shape_cast %9 : vector<1x1x128xf32> to vector<1x128xf32>
    %cst = arith.constant dense<0.000000e+00> : vector<16xf32>
    %11 = vector.multi_reduction <add>, %3, %cst [1] : vector<16x128xf32> to vector<16xf32>
    %12 = vector.shape_cast %11 : vector<16xf32> to vector<16x1xf32>
    %cst_8 = arith.constant 1.280000e+02 : f32
    %13 = vector.broadcast %cst_8 : f32 to vector<16x1xf32>
    %14 = arith.divf %12, %13 : vector<16x1xf32>
    %15 = vector.broadcast %14 : vector<16x1xf32> to vector<16x128xf32>
    %16 = arith.subf %3, %15 : vector<16x128xf32>
    %17 = arith.mulf %16, %16 : vector<16x128xf32>
    %cst_9 = arith.constant dense<0.000000e+00> : vector<16xf32>
    %18 = vector.multi_reduction <add>, %17, %cst_9 [1] : vector<16x128xf32> to vector<16xf32>
    %19 = vector.shape_cast %18 : vector<16xf32> to vector<16x1xf32>
    %cst_10 = arith.constant 1.280000e+02 : f32
    %20 = vector.broadcast %cst_10 : f32 to vector<16x1xf32>
    %21 = arith.divf %19, %20 : vector<16x1xf32>
    %22 = vector.broadcast %14 : vector<16x1xf32> to vector<16x128xf32>
    %23 = arith.subf %3, %22 : vector<16x128xf32>
    %cst_11 = arith.constant 9.99999974E-6 : f32
    %24 = vector.broadcast %cst_11 : f32 to vector<16x1xf32>
    %25 = arith.addf %21, %24 : vector<16x1xf32>
    %26 = math.rsqrt %25 : vector<16x1xf32>
    %27 = vector.broadcast %26 : vector<16x1xf32> to vector<16x128xf32>
    %28 = arith.mulf %23, %27 : vector<16x128xf32>
    %29 = vector.broadcast %8 : vector<1x128xf32> to vector<16x128xf32>
    %30 = arith.mulf %28, %29 : vector<16x128xf32>
    %31 = vector.broadcast %10 : vector<1x128xf32> to vector<16x128xf32>
    %32 = arith.addf %30, %31 : vector<16x128xf32>
    %c0_12 = arith.constant 0 : index
    %c1_13 = arith.constant 1 : index
    %c0_14 = arith.constant 0 : index
    %33 = vector.load %arg2[%c0_12, %c1_13, %c0_14] : memref<1x5x128xf32, #tpu.memory_space<vmem>>, vector<1x1x128xf32>
    %34 = vector.shape_cast %33 : vector<1x1x128xf32> to vector<1x128xf32>
    %c1_i32 = arith.constant 1 : i32
    %35 = tpu.dynamic_rotate %32 by %c1_i32 dim 0 : vector<16x128xf32>, i32 -> vector<16x128xf32>
    %36 = vector.shape_cast %34 : vector<1x128xf32> to vector<1x128xf32>
    %37 = vector.broadcast %36 : vector<1x128xf32> to vector<16x128xf32>
    %38 = arith.select %6, %37, %35 : vector<16x128xi1>, vector<16x128xf32>
    %39 = arith.subf %32, %38 : vector<16x128xf32>
    %c0_15 = arith.constant 0 : index
    %c0_16 = arith.constant 0 : index
    %c0_17 = arith.constant 0 : index
    %40 = vector.load %arg4[%c0_15, %c0_16, %c0_17] : memref<1x3x128xf32, #tpu.memory_space<vmem>>, vector<1x1x128xf32>
    %41 = vector.shape_cast %40 : vector<1x1x128xf32> to vector<1x128xf32>
    %42 = vector.broadcast %41 : vector<1x128xf32> to vector<16x128xf32>
    %43 = arith.mulf %39, %42 : vector<16x128xf32>
    %44 = arith.addf %38, %43 : vector<16x128xf32>
    %45 = arith.truncf %44 : vector<16x128xf32> to vector<16x128xbf16>
    %c0_18 = arith.constant 0 : index
    %c1_19 = arith.constant 1 : index
    %c0_20 = arith.constant 0 : index
    %46 = vector.load %arg4[%c0_18, %c1_19, %c0_20] : memref<1x3x128xf32, #tpu.memory_space<vmem>>, vector<1x1x128xf32>
    %47 = vector.shape_cast %46 : vector<1x1x128xf32> to vector<1x128xf32>
    %48 = vector.broadcast %47 : vector<1x128xf32> to vector<16x128xf32>
    %49 = arith.mulf %39, %48 : vector<16x128xf32>
    %50 = arith.addf %38, %49 : vector<16x128xf32>
    %51 = arith.truncf %50 : vector<16x128xf32> to vector<16x128xbf16>
    %c0_21 = arith.constant 0 : index
    %c2 = arith.constant 2 : index
    %c0_22 = arith.constant 0 : index
    %52 = vector.load %arg4[%c0_21, %c2, %c0_22] : memref<1x3x128xf32, #tpu.memory_space<vmem>>, vector<1x1x128xf32>
    %53 = vector.shape_cast %52 : vector<1x1x128xf32> to vector<1x128xf32>
    %54 = vector.broadcast %53 : vector<1x128xf32> to vector<16x128xf32>
    %55 = arith.mulf %39, %54 : vector<16x128xf32>
    %56 = arith.addf %38, %55 : vector<16x128xf32>
    %57 = arith.truncf %56 : vector<16x128xf32> to vector<16x128xbf16>
    %58 = vector.extract_strided_slice %32 {offsets = [15, 0], sizes = [1, 128], strides = [1, 1]} : vector<16x128xf32> to vector<1x128xf32>
    %c0_23 = arith.constant 0 : index
    %c1_24 = arith.constant 1 : index
    %c0_25 = arith.constant 0 : index
    %59 = vector.load %arg15[%c0_23, %c1_24, %c0_25] : memref<1x5x128xf32, #tpu.memory_space<vmem>>, vector<1x1x128xf32>
    %60 = vector.shape_cast %59 : vector<1x1x128xf32> to vector<1x128xf32>
    %61 = vector.shape_cast %58 : vector<1x128xf32> to vector<1x1x128xf32>
    tpu.vector_store %arg15[%c0_23, %c1_24, %c0_25], %61 {strides = array<i32>} : memref<1x5x128xf32, #tpu.memory_space<vmem>>, vector<1x1x128xf32>,
    %c0_i32_26 = arith.constant 0 : i32
    %c0_i32_27 = arith.constant 0 : i32
    %c0_i32_28 = arith.constant 0 : i32
    %c0_i32_29 = arith.constant 0 : i32
    %62 = tpu.memref_slice %arg7[%arg0, %c0_i32_28, %c0_i32_29] : memref<2x128x128xbf16, #tpu.memory_space<any>> -> memref<1x128x128xbf16, #tpu.memory_space<any>>
    %63 = tpu.memref_squeeze %62 : memref<1x128x128xbf16, #tpu.memory_space<any>> -> memref<128x128xbf16, #tpu.memory_space<any>>
    %c0_i32_30 = arith.constant 0 : i32
    %c0_i32_31 = arith.constant 0 : i32
    %64 = tpu.memref_slice %arg19[%c0_i32_26, %c0_i32_30, %c0_i32_31] : memref<2x128x128xbf16, #tpu.memory_space<vmem>> -> memref<1x128x128xbf16, #tpu.memory_space<vmem>>
    %65 = tpu.memref_squeeze %64 : memref<1x128x128xbf16, #tpu.memory_space<vmem>> -> memref<128x128xbf16, #tpu.memory_space<vmem>>
    %66 = tpu.memref_slice %arg22[%c0_i32_27] : memref<2x!tpu.dma_semaphore, #tpu.memory_space<semaphore_mem>> -> memref<1x!tpu.dma_semaphore, #tpu.memory_space<semaphore_mem>>
    %67 = tpu.memref_squeeze %66 : memref<1x!tpu.dma_semaphore, #tpu.memory_space<semaphore_mem>> -> memref<!tpu.dma_semaphore, #tpu.memory_space<semaphore_mem>>
    tpu.enqueue_dma source(%63 : memref<128x128xbf16, #tpu.memory_space<any>>) target(%65 : memref<128x128xbf16, #tpu.memory_space<vmem>>) target_semaphore(%67 : memref<!tpu.dma_semaphore, #tpu.memory_space<semaphore_mem>>)
    %c0_i32_32 = arith.constant 0 : i32
    %c0_i32_33 = arith.constant 0 : i32
    %c0_i32_34 = arith.constant 0 : i32
    %c0_i32_35 = arith.constant 0 : i32
    %68 = tpu.memref_slice %arg7[%arg0, %c0_i32_34, %c0_i32_35] : memref<2x128x128xbf16, #tpu.memory_space<any>> -> memref<1x128x128xbf16, #tpu.memory_space<any>>
    %69 = tpu.memref_squeeze %68 : memref<1x128x128xbf16, #tpu.memory_space<any>> -> memref<128x128xbf16, #tpu.memory_space<any>>
    %c0_i32_36 = arith.constant 0 : i32
    %c0_i32_37 = arith.constant 0 : i32
    %70 = tpu.memref_slice %arg19[%c0_i32_32, %c0_i32_36, %c0_i32_37] : memref<2x128x128xbf16, #tpu.memory_space<vmem>> -> memref<1x128x128xbf16, #tpu.memory_space<vmem>>
    %71 = tpu.memref_squeeze %70 : memref<1x128x128xbf16, #tpu.memory_space<vmem>> -> memref<128x128xbf16, #tpu.memory_space<vmem>>
    %72 = tpu.memref_slice %arg22[%c0_i32_33] : memref<2x!tpu.dma_semaphore, #tpu.memory_space<semaphore_mem>> -> memref<1x!tpu.dma_semaphore, #tpu.memory_space<semaphore_mem>>
    %73 = tpu.memref_squeeze %72 : memref<1x!tpu.dma_semaphore, #tpu.memory_space<semaphore_mem>> -> memref<!tpu.dma_semaphore, #tpu.memory_space<semaphore_mem>>
    tpu.wait_dma2 semaphore(%73 : memref<!tpu.dma_semaphore, #tpu.memory_space<semaphore_mem>>) src(%69 : memref<128x128xbf16, #tpu.memory_space<any>>) dst(%71 : memref<128x128xbf16, #tpu.memory_space<vmem>>)
    %c0_38 = arith.constant 0 : index
    %c0_39 = arith.constant 0 : index
    %c0_40 = arith.constant 0 : index
    %74 = vector.load %arg19[%c0_38, %c0_39, %c0_40] : memref<2x128x128xbf16, #tpu.memory_space<vmem>>, vector<1x128x128xbf16>
    %75 = vector.shape_cast %74 : vector<1x128x128xbf16> to vector<128x128xbf16>
    %cst_41 = arith.constant dense<0.000000e+00> : vector<16x128xf32>
    %76 = tpu.matmul %45, %75, %cst_41 {dimension_numbers = #tpu.dot_dimension_numbers<[1], [0], [0], [1], [0, 0, 1, 1], [], []>} : vector<16x128xbf16>, vector<128x128xbf16>, vector<16x128xf32> -> vector<16x128xf32>
    %c0_42 = arith.constant 0 : index
    %c0_43 = arith.constant 0 : index
    %77 = vector.load %arg16[%c0_42, %c0_43] : memref<16x128xf32, #tpu.memory_space<vmem>>, vector<16x128xf32>
    tpu.vector_store %arg16[%c0_42, %c0_43], %76 {strides = array<i32>} : memref<16x128xf32, #tpu.memory_space<vmem>>, vector<16x128xf32>,
    %c0_i32_44 = arith.constant 0 : i32
    %c0_i32_45 = arith.constant 0 : i32
    %c0_i32_46 = arith.constant 0 : i32
    %c0_i32_47 = arith.constant 0 : i32
    %78 = tpu.memref_slice %arg8[%arg0, %c0_i32_46, %c0_i32_47] : memref<2x128x128xbf16, #tpu.memory_space<any>> -> memref<1x128x128xbf16, #tpu.memory_space<any>>
    %79 = tpu.memref_squeeze %78 : memref<1x128x128xbf16, #tpu.memory_space<any>> -> memref<128x128xbf16, #tpu.memory_space<any>>
    %c0_i32_48 = arith.constant 0 : i32
    %c0_i32_49 = arith.constant 0 : i32
    %80 = tpu.memref_slice %arg19[%c0_i32_44, %c0_i32_48, %c0_i32_49] : memref<2x128x128xbf16, #tpu.memory_space<vmem>> -> memref<1x128x128xbf16, #tpu.memory_space<vmem>>
    %81 = tpu.memref_squeeze %80 : memref<1x128x128xbf16, #tpu.memory_space<vmem>> -> memref<128x128xbf16, #tpu.memory_space<vmem>>
    %82 = tpu.memref_slice %arg22[%c0_i32_45] : memref<2x!tpu.dma_semaphore, #tpu.memory_space<semaphore_mem>> -> memref<1x!tpu.dma_semaphore, #tpu.memory_space<semaphore_mem>>
    %83 = tpu.memref_squeeze %82 : memref<1x!tpu.dma_semaphore, #tpu.memory_space<semaphore_mem>> -> memref<!tpu.dma_semaphore, #tpu.memory_space<semaphore_mem>>
    tpu.enqueue_dma source(%79 : memref<128x128xbf16, #tpu.memory_space<any>>) target(%81 : memref<128x128xbf16, #tpu.memory_space<vmem>>) target_semaphore(%83 : memref<!tpu.dma_semaphore, #tpu.memory_space<semaphore_mem>>)
    %c0_i32_50 = arith.constant 0 : i32
    %c0_i32_51 = arith.constant 0 : i32
    %c0_i32_52 = arith.constant 0 : i32
    %c0_i32_53 = arith.constant 0 : i32
    %84 = tpu.memref_slice %arg8[%arg0, %c0_i32_52, %c0_i32_53] : memref<2x128x128xbf16, #tpu.memory_space<any>> -> memref<1x128x128xbf16, #tpu.memory_space<any>>
    %85 = tpu.memref_squeeze %84 : memref<1x128x128xbf16, #tpu.memory_space<any>> -> memref<128x128xbf16, #tpu.memory_space<any>>
    %c0_i32_54 = arith.constant 0 : i32
    %c0_i32_55 = arith.constant 0 : i32
    %86 = tpu.memref_slice %arg19[%c0_i32_50, %c0_i32_54, %c0_i32_55] : memref<2x128x128xbf16, #tpu.memory_space<vmem>> -> memref<1x128x128xbf16, #tpu.memory_space<vmem>>
    %87 = tpu.memref_squeeze %86 : memref<1x128x128xbf16, #tpu.memory_space<vmem>> -> memref<128x128xbf16, #tpu.memory_space<vmem>>
    %88 = tpu.memref_slice %arg22[%c0_i32_51] : memref<2x!tpu.dma_semaphore, #tpu.memory_space<semaphore_mem>> -> memref<1x!tpu.dma_semaphore, #tpu.memory_space<semaphore_mem>>
    %89 = tpu.memref_squeeze %88 : memref<1x!tpu.dma_semaphore, #tpu.memory_space<semaphore_mem>> -> memref<!tpu.dma_semaphore, #tpu.memory_space<semaphore_mem>>
    tpu.wait_dma2 semaphore(%89 : memref<!tpu.dma_semaphore, #tpu.memory_space<semaphore_mem>>) src(%85 : memref<128x128xbf16, #tpu.memory_space<any>>) dst(%87 : memref<128x128xbf16, #tpu.memory_space<vmem>>)
    %c0_56 = arith.constant 0 : index
    %c0_57 = arith.constant 0 : index
    %c0_58 = arith.constant 0 : index
    %90 = vector.load %arg19[%c0_56, %c0_57, %c0_58] : memref<2x128x128xbf16, #tpu.memory_space<vmem>>, vector<1x128x128xbf16>
    %91 = vector.shape_cast %90 : vector<1x128x128xbf16> to vector<128x128xbf16>
    %cst_59 = arith.constant dense<0.000000e+00> : vector<16x128xf32>
    %92 = tpu.matmul %51, %91, %cst_59 {dimension_numbers = #tpu.dot_dimension_numbers<[1], [0], [0], [1], [0, 0, 1, 1], [], []>} : vector<16x128xbf16>, vector<128x128xbf16>, vector<16x128xf32> -> vector<16x128xf32>
    %c0_60 = arith.constant 0 : index
    %c0_61 = arith.constant 0 : index
    %93 = vector.load %arg17[%c0_60, %c0_61] : memref<16x128xf32, #tpu.memory_space<vmem>>, vector<16x128xf32>
    tpu.vector_store %arg17[%c0_60, %c0_61], %92 {strides = array<i32>} : memref<16x128xf32, #tpu.memory_space<vmem>>, vector<16x128xf32>,
    %c0_i32_62 = arith.constant 0 : i32
    %c0_i32_63 = arith.constant 0 : i32
    %c0_i32_64 = arith.constant 0 : i32
    %c0_i32_65 = arith.constant 0 : i32
    %94 = tpu.memref_slice %arg9[%arg0, %c0_i32_64, %c0_i32_65] : memref<2x128x128xbf16, #tpu.memory_space<any>> -> memref<1x128x128xbf16, #tpu.memory_space<any>>
    %95 = tpu.memref_squeeze %94 : memref<1x128x128xbf16, #tpu.memory_space<any>> -> memref<128x128xbf16, #tpu.memory_space<any>>
    %c0_i32_66 = arith.constant 0 : i32
    %c0_i32_67 = arith.constant 0 : i32
    %96 = tpu.memref_slice %arg19[%c0_i32_62, %c0_i32_66, %c0_i32_67] : memref<2x128x128xbf16, #tpu.memory_space<vmem>> -> memref<1x128x128xbf16, #tpu.memory_space<vmem>>
    %97 = tpu.memref_squeeze %96 : memref<1x128x128xbf16, #tpu.memory_space<vmem>> -> memref<128x128xbf16, #tpu.memory_space<vmem>>
    %98 = tpu.memref_slice %arg22[%c0_i32_63] : memref<2x!tpu.dma_semaphore, #tpu.memory_space<semaphore_mem>> -> memref<1x!tpu.dma_semaphore, #tpu.memory_space<semaphore_mem>>
    %99 = tpu.memref_squeeze %98 : memref<1x!tpu.dma_semaphore, #tpu.memory_space<semaphore_mem>> -> memref<!tpu.dma_semaphore, #tpu.memory_space<semaphore_mem>>
    tpu.enqueue_dma source(%95 : memref<128x128xbf16, #tpu.memory_space<any>>) target(%97 : memref<128x128xbf16, #tpu.memory_space<vmem>>) target_semaphore(%99 : memref<!tpu.dma_semaphore, #tpu.memory_space<semaphore_mem>>)
    %c0_i32_68 = arith.constant 0 : i32
    %c0_i32_69 = arith.constant 0 : i32
    %c0_i32_70 = arith.constant 0 : i32
    %c0_i32_71 = arith.constant 0 : i32
    %100 = tpu.memref_slice %arg11[%arg0, %c0_i32_70, %c0_i32_71] : memref<2x128x512xbf16, #tpu.memory_space<any>> -> memref<1x128x512xbf16, #tpu.memory_space<any>>
    %101 = tpu.memref_squeeze %100 : memref<1x128x512xbf16, #tpu.memory_space<any>> -> memref<128x512xbf16, #tpu.memory_space<any>>
    %c0_i32_72 = arith.constant 0 : i32
    %c0_i32_73 = arith.constant 0 : i32
    %102 = tpu.memref_slice %arg20[%c0_i32_68, %c0_i32_72, %c0_i32_73] : memref<2x128x512xbf16, #tpu.memory_space<vmem>> -> memref<1x128x512xbf16, #tpu.memory_space<vmem>>
    %103 = tpu.memref_squeeze %102 : memref<1x128x512xbf16, #tpu.memory_space<vmem>> -> memref<128x512xbf16, #tpu.memory_space<vmem>>
    %104 = tpu.memref_slice %arg23[%c0_i32_69] : memref<2x!tpu.dma_semaphore, #tpu.memory_space<semaphore_mem>> -> memref<1x!tpu.dma_semaphore, #tpu.memory_space<semaphore_mem>>
    %105 = tpu.memref_squeeze %104 : memref<1x!tpu.dma_semaphore, #tpu.memory_space<semaphore_mem>> -> memref<!tpu.dma_semaphore, #tpu.memory_space<semaphore_mem>>
    tpu.enqueue_dma source(%101 : memref<128x512xbf16, #tpu.memory_space<any>>) target(%103 : memref<128x512xbf16, #tpu.memory_space<vmem>>) target_semaphore(%105 : memref<!tpu.dma_semaphore, #tpu.memory_space<semaphore_mem>>)
    %c0_i32_74 = arith.constant 0 : i32
    %c0_i32_75 = arith.constant 0 : i32
    %c0_i32_76 = arith.constant 0 : i32
    %c0_i32_77 = arith.constant 0 : i32
    %106 = tpu.memref_slice %arg12[%arg0, %c0_i32_76, %c0_i32_77] : memref<2x512x128xbf16, #tpu.memory_space<any>> -> memref<1x512x128xbf16, #tpu.memory_space<any>>
    %107 = tpu.memref_squeeze %106 : memref<1x512x128xbf16, #tpu.memory_space<any>> -> memref<512x128xbf16, #tpu.memory_space<any>>
    %c0_i32_78 = arith.constant 0 : i32
    %c0_i32_79 = arith.constant 0 : i32
    %108 = tpu.memref_slice %arg21[%c0_i32_74, %c0_i32_78, %c0_i32_79] : memref<2x512x128xbf16, #tpu.memory_space<vmem>> -> memref<1x512x128xbf16, #tpu.memory_space<vmem>>
    %109 = tpu.memref_squeeze %108 : memref<1x512x128xbf16, #tpu.memory_space<vmem>> -> memref<512x128xbf16, #tpu.memory_space<vmem>>
    %110 = tpu.memref_slice %arg24[%c0_i32_75] : memref<2x!tpu.dma_semaphore, #tpu.memory_space<semaphore_mem>> -> memref<1x!tpu.dma_semaphore, #tpu.memory_space<semaphore_mem>>
    %111 = tpu.memref_squeeze %110 : memref<1x!tpu.dma_semaphore, #tpu.memory_space<semaphore_mem>> -> memref<!tpu.dma_semaphore, #tpu.memory_space<semaphore_mem>>
    tpu.enqueue_dma source(%107 : memref<512x128xbf16, #tpu.memory_space<any>>) target(%109 : memref<512x128xbf16, #tpu.memory_space<vmem>>) target_semaphore(%111 : memref<!tpu.dma_semaphore, #tpu.memory_space<semaphore_mem>>)
    %c0_80 = arith.constant 0 : index
    %c0_81 = arith.constant 0 : index
    %c0_82 = arith.constant 0 : index
    %112 = vector.load %arg5[%c0_80, %c0_81, %c0_82] : memref<1x2x128xf32, #tpu.memory_space<vmem>>, vector<1x1x128xf32>
    %113 = vector.shape_cast %112 : vector<1x1x128xf32> to vector<1x128xf32>
    %c0_83 = arith.constant 0 : index
    %c1_84 = arith.constant 1 : index
    %c0_85 = arith.constant 0 : index
    %114 = vector.load %arg5[%c0_83, %c1_84, %c0_85] : memref<1x2x128xf32, #tpu.memory_space<vmem>>, vector<1x1x128xf32>
    %115 = vector.shape_cast %114 : vector<1x1x128xf32> to vector<1x128xf32>
    %c0_86 = arith.constant 0 : index
    %c2_87 = arith.constant 2 : index
    %c0_88 = arith.constant 0 : index
    %116 = vector.load %arg2[%c0_86, %c2_87, %c0_88] : memref<1x5x128xf32, #tpu.memory_space<vmem>>, vector<1x1x128xf32>
    %117 = vector.shape_cast %116 : vector<1x1x128xf32> to vector<1x128xf32>
    %c0_89 = arith.constant 0 : index
    %c3 = arith.constant 3 : index
    %c0_90 = arith.constant 0 : index
    %118 = vector.load %arg2[%c0_89, %c3, %c0_90] : memref<1x5x128xf32, #tpu.memory_space<vmem>>, vector<1x1x128xf32>
    %119 = vector.shape_cast %118 : vector<1x1x128xf32> to vector<1x128xf32>
    %c0_91 = arith.constant 0 : index
    %c4 = arith.constant 4 : index
    %c0_92 = arith.constant 0 : index
    %120 = vector.load %arg2[%c0_91, %c4, %c0_92] : memref<1x5x128xf32, #tpu.memory_space<vmem>>, vector<1x1x128xf32>
    %121 = vector.shape_cast %120 : vector<1x1x128xf32> to vector<1x128xf32>
    %c0_i32_93 = arith.constant 0 : i32
    %c2_i32 = arith.constant 2 : i32
    %122 = arith.addi %c0_i32_93, %c2_i32 : i32
    %c1_i32_94 = arith.constant 1 : i32
    %123:3 = scf.for %arg25 = %c0_i32_93 to %122 step %c1_i32_94 iter_args(%arg26 = %117, %arg27 = %119, %arg28 = %121) -> (vector<1x128xf32>, vector<1x128xf32>, vector<1x128xf32>)  : i32 {
      %c8_i32 = arith.constant 8 : i32
      %268 = arith.muli %arg25, %c8_i32 : i32
      %269 = tpu.assume_multiple %268, 8 : i32
      %270 = arith.index_cast %269 : i32 to index
      %c0_211 = arith.constant 0 : index
      %271 = vector.load %arg16[%270, %c0_211] : memref<16x128xf32, #tpu.memory_space<vmem>>, vector<8x128xf32>
      %272 = arith.index_cast %269 : i32 to index
      %c0_212 = arith.constant 0 : index
      %273 = vector.load %arg17[%272, %c0_212] : memref<16x128xf32, #tpu.memory_space<vmem>>, vector<8x128xf32>
      %274 = vector.extract_strided_slice %271 {offsets = [0, 0], sizes = [1, 128], strides = [1, 1]} : vector<8x128xf32> to vector<1x128xf32>
      %275 = vector.extract_strided_slice %273 {offsets = [0, 0], sizes = [1, 128], strides = [1, 1]} : vector<8x128xf32> to vector<1x128xf32>
      %276 = arith.addf %274, %113 : vector<1x128xf32>
      %277 = arith.maximumf %arg28, %276 : vector<1x128xf32>
      %278 = arith.subf %arg28, %277 : vector<1x128xf32>
      %279 = math.exp %278 : vector<1x128xf32>
      %280 = arith.subf %276, %277 : vector<1x128xf32>
      %281 = math.exp %280 : vector<1x128xf32>
      %282 = arith.mulf %279, %arg26 : vector<1x128xf32>
      %283 = arith.mulf %281, %275 : vector<1x128xf32>
      %284 = arith.addf %282, %283 : vector<1x128xf32>
      %285 = arith.mulf %279, %arg27 : vector<1x128xf32>
      %286 = arith.addf %285, %281 : vector<1x128xf32>
      %287 = tpu.reciprocal %286 {approx = true} : vector<1x128xf32> -> vector<1x128xf32>
      %288 = arith.mulf %284, %287 : vector<1x128xf32>
      %289 = arith.addf %arg28, %115 : vector<1x128xf32>
      %290 = arith.maximumf %289, %274 : vector<1x128xf32>
      %291 = arith.subf %289, %290 : vector<1x128xf32>
      %292 = math.exp %291 : vector<1x128xf32>
      %293 = arith.subf %274, %290 : vector<1x128xf32>
      %294 = math.exp %293 : vector<1x128xf32>
      %295 = arith.mulf %292, %arg26 : vector<1x128xf32>
      %296 = arith.mulf %294, %275 : vector<1x128xf32>
      %297 = arith.addf %295, %296 : vector<1x128xf32>
      %298 = arith.mulf %292, %arg27 : vector<1x128xf32>
      %299 = arith.addf %298, %294 : vector<1x128xf32>
      %300 = vector.extract_strided_slice %271 {offsets = [1, 0], sizes = [1, 128], strides = [1, 1]} : vector<8x128xf32> to vector<1x128xf32>
      %301 = vector.extract_strided_slice %273 {offsets = [1, 0], sizes = [1, 128], strides = [1, 1]} : vector<8x128xf32> to vector<1x128xf32>
      %302 = arith.addf %300, %113 : vector<1x128xf32>
      %303 = arith.maximumf %290, %302 : vector<1x128xf32>
      %304 = arith.subf %290, %303 : vector<1x128xf32>
      %305 = math.exp %304 : vector<1x128xf32>
      %306 = arith.subf %302, %303 : vector<1x128xf32>
      %307 = math.exp %306 : vector<1x128xf32>
      %308 = arith.mulf %305, %297 : vector<1x128xf32>
      %309 = arith.mulf %307, %301 : vector<1x128xf32>
      %310 = arith.addf %308, %309 : vector<1x128xf32>
      %311 = arith.mulf %305, %299 : vector<1x128xf32>
      %312 = arith.addf %311, %307 : vector<1x128xf32>
      %313 = tpu.reciprocal %312 {approx = true} : vector<1x128xf32> -> vector<1x128xf32>
      %314 = arith.mulf %310, %313 : vector<1x128xf32>
      %315 = arith.addf %290, %115 : vector<1x128xf32>
      %316 = arith.maximumf %315, %300 : vector<1x128xf32>
      %317 = arith.subf %315, %316 : vector<1x128xf32>
      %318 = math.exp %317 : vector<1x128xf32>
      %319 = arith.subf %300, %316 : vector<1x128xf32>
      %320 = math.exp %319 : vector<1x128xf32>
      %321 = arith.mulf %318, %297 : vector<1x128xf32>
      %322 = arith.mulf %320, %301 : vector<1x128xf32>
      %323 = arith.addf %321, %322 : vector<1x128xf32>
      %324 = arith.mulf %318, %299 : vector<1x128xf32>
      %325 = arith.addf %324, %320 : vector<1x128xf32>
      %326 = vector.extract_strided_slice %271 {offsets = [2, 0], sizes = [1, 128], strides = [1, 1]} : vector<8x128xf32> to vector<1x128xf32>
      %327 = vector.extract_strided_slice %273 {offsets = [2, 0], sizes = [1, 128], strides = [1, 1]} : vector<8x128xf32> to vector<1x128xf32>
      %328 = arith.addf %326, %113 : vector<1x128xf32>
      %329 = arith.maximumf %316, %328 : vector<1x128xf32>
      %330 = arith.subf %316, %329 : vector<1x128xf32>
      %331 = math.exp %330 : vector<1x128xf32>
      %332 = arith.subf %328, %329 : vector<1x128xf32>
      %333 = math.exp %332 : vector<1x128xf32>
      %334 = arith.mulf %331, %323 : vector<1x128xf32>
      %335 = arith.mulf %333, %327 : vector<1x128xf32>
      %336 = arith.addf %334, %335 : vector<1x128xf32>
      %337 = arith.mulf %331, %325 : vector<1x128xf32>
      %338 = arith.addf %337, %333 : vector<1x128xf32>
      %339 = tpu.reciprocal %338 {approx = true} : vector<1x128xf32> -> vector<1x128xf32>
      %340 = arith.mulf %336, %339 : vector<1x128xf32>
      %341 = arith.addf %316, %115 : vector<1x128xf32>
      %342 = arith.maximumf %341, %326 : vector<1x128xf32>
      %343 = arith.subf %341, %342 : vector<1x128xf32>
      %344 = math.exp %343 : vector<1x128xf32>
      %345 = arith.subf %326, %342 : vector<1x128xf32>
      %346 = math.exp %345 : vector<1x128xf32>
      %347 = arith.mulf %344, %323 : vector<1x128xf32>
      %348 = arith.mulf %346, %327 : vector<1x128xf32>
      %349 = arith.addf %347, %348 : vector<1x128xf32>
      %350 = arith.mulf %344, %325 : vector<1x128xf32>
      %351 = arith.addf %350, %346 : vector<1x128xf32>
      %352 = vector.extract_strided_slice %271 {offsets = [3, 0], sizes = [1, 128], strides = [1, 1]} : vector<8x128xf32> to vector<1x128xf32>
      %353 = vector.extract_strided_slice %273 {offsets = [3, 0], sizes = [1, 128], strides = [1, 1]} : vector<8x128xf32> to vector<1x128xf32>
      %354 = arith.addf %352, %113 : vector<1x128xf32>
      %355 = arith.maximumf %342, %354 : vector<1x128xf32>
      %356 = arith.subf %342, %355 : vector<1x128xf32>
      %357 = math.exp %356 : vector<1x128xf32>
      %358 = arith.subf %354, %355 : vector<1x128xf32>
      %359 = math.exp %358 : vector<1x128xf32>
      %360 = arith.mulf %357, %349 : vector<1x128xf32>
      %361 = arith.mulf %359, %353 : vector<1x128xf32>
      %362 = arith.addf %360, %361 : vector<1x128xf32>
      %363 = arith.mulf %357, %351 : vector<1x128xf32>
      %364 = arith.addf %363, %359 : vector<1x128xf32>
      %365 = tpu.reciprocal %364 {approx = true} : vector<1x128xf32> -> vector<1x128xf32>
      %366 = arith.mulf %362, %365 : vector<1x128xf32>
      %367 = arith.addf %342, %115 : vector<1x128xf32>
      %368 = arith.maximumf %367, %352 : vector<1x128xf32>
      %369 = arith.subf %367, %368 : vector<1x128xf32>
      %370 = math.exp %369 : vector<1x128xf32>
      %371 = arith.subf %352, %368 : vector<1x128xf32>
      %372 = math.exp %371 : vector<1x128xf32>
      %373 = arith.mulf %370, %349 : vector<1x128xf32>
      %374 = arith.mulf %372, %353 : vector<1x128xf32>
      %375 = arith.addf %373, %374 : vector<1x128xf32>
      %376 = arith.mulf %370, %351 : vector<1x128xf32>
      %377 = arith.addf %376, %372 : vector<1x128xf32>
      %378 = vector.extract_strided_slice %271 {offsets = [4, 0], sizes = [1, 128], strides = [1, 1]} : vector<8x128xf32> to vector<1x128xf32>
      %379 = vector.extract_strided_slice %273 {offsets = [4, 0], sizes = [1, 128], strides = [1, 1]} : vector<8x128xf32> to vector<1x128xf32>
      %380 = arith.addf %378, %113 : vector<1x128xf32>
      %381 = arith.maximumf %368, %380 : vector<1x128xf32>
      %382 = arith.subf %368, %381 : vector<1x128xf32>
      %383 = math.exp %382 : vector<1x128xf32>
      %384 = arith.subf %380, %381 : vector<1x128xf32>
      %385 = math.exp %384 : vector<1x128xf32>
      %386 = arith.mulf %383, %375 : vector<1x128xf32>
      %387 = arith.mulf %385, %379 : vector<1x128xf32>
      %388 = arith.addf %386, %387 : vector<1x128xf32>
      %389 = arith.mulf %383, %377 : vector<1x128xf32>
      %390 = arith.addf %389, %385 : vector<1x128xf32>
      %391 = tpu.reciprocal %390 {approx = true} : vector<1x128xf32> -> vector<1x128xf32>
      %392 = arith.mulf %388, %391 : vector<1x128xf32>
      %393 = arith.addf %368, %115 : vector<1x128xf32>
      %394 = arith.maximumf %393, %378 : vector<1x128xf32>
      %395 = arith.subf %393, %394 : vector<1x128xf32>
      %396 = math.exp %395 : vector<1x128xf32>
      %397 = arith.subf %378, %394 : vector<1x128xf32>
      %398 = math.exp %397 : vector<1x128xf32>
      %399 = arith.mulf %396, %375 : vector<1x128xf32>
      %400 = arith.mulf %398, %379 : vector<1x128xf32>
      %401 = arith.addf %399, %400 : vector<1x128xf32>
      %402 = arith.mulf %396, %377 : vector<1x128xf32>
      %403 = arith.addf %402, %398 : vector<1x128xf32>
      %404 = vector.extract_strided_slice %271 {offsets = [5, 0], sizes = [1, 128], strides = [1, 1]} : vector<8x128xf32> to vector<1x128xf32>
      %405 = vector.extract_strided_slice %273 {offsets = [5, 0], sizes = [1, 128], strides = [1, 1]} : vector<8x128xf32> to vector<1x128xf32>
      %406 = arith.addf %404, %113 : vector<1x128xf32>
      %407 = arith.maximumf %394, %406 : vector<1x128xf32>
      %408 = arith.subf %394, %407 : vector<1x128xf32>
      %409 = math.exp %408 : vector<1x128xf32>
      %410 = arith.subf %406, %407 : vector<1x128xf32>
      %411 = math.exp %410 : vector<1x128xf32>
      %412 = arith.mulf %409, %401 : vector<1x128xf32>
      %413 = arith.mulf %411, %405 : vector<1x128xf32>
      %414 = arith.addf %412, %413 : vector<1x128xf32>
      %415 = arith.mulf %409, %403 : vector<1x128xf32>
      %416 = arith.addf %415, %411 : vector<1x128xf32>
      %417 = tpu.reciprocal %416 {approx = true} : vector<1x128xf32> -> vector<1x128xf32>
      %418 = arith.mulf %414, %417 : vector<1x128xf32>
      %419 = arith.addf %394, %115 : vector<1x128xf32>
      %420 = arith.maximumf %419, %404 : vector<1x128xf32>
      %421 = arith.subf %419, %420 : vector<1x128xf32>
      %422 = math.exp %421 : vector<1x128xf32>
      %423 = arith.subf %404, %420 : vector<1x128xf32>
      %424 = math.exp %423 : vector<1x128xf32>
      %425 = arith.mulf %422, %401 : vector<1x128xf32>
      %426 = arith.mulf %424, %405 : vector<1x128xf32>
      %427 = arith.addf %425, %426 : vector<1x128xf32>
      %428 = arith.mulf %422, %403 : vector<1x128xf32>
      %429 = arith.addf %428, %424 : vector<1x128xf32>
      %430 = vector.extract_strided_slice %271 {offsets = [6, 0], sizes = [1, 128], strides = [1, 1]} : vector<8x128xf32> to vector<1x128xf32>
      %431 = vector.extract_strided_slice %273 {offsets = [6, 0], sizes = [1, 128], strides = [1, 1]} : vector<8x128xf32> to vector<1x128xf32>
      %432 = arith.addf %430, %113 : vector<1x128xf32>
      %433 = arith.maximumf %420, %432 : vector<1x128xf32>
      %434 = arith.subf %420, %433 : vector<1x128xf32>
      %435 = math.exp %434 : vector<1x128xf32>
      %436 = arith.subf %432, %433 : vector<1x128xf32>
      %437 = math.exp %436 : vector<1x128xf32>
      %438 = arith.mulf %435, %427 : vector<1x128xf32>
      %439 = arith.mulf %437, %431 : vector<1x128xf32>
      %440 = arith.addf %438, %439 : vector<1x128xf32>
      %441 = arith.mulf %435, %429 : vector<1x128xf32>
      %442 = arith.addf %441, %437 : vector<1x128xf32>
      %443 = tpu.reciprocal %442 {approx = true} : vector<1x128xf32> -> vector<1x128xf32>
      %444 = arith.mulf %440, %443 : vector<1x128xf32>
      %445 = arith.addf %420, %115 : vector<1x128xf32>
      %446 = arith.maximumf %445, %430 : vector<1x128xf32>
      %447 = arith.subf %445, %446 : vector<1x128xf32>
      %448 = math.exp %447 : vector<1x128xf32>
      %449 = arith.subf %430, %446 : vector<1x128xf32>
      %450 = math.exp %449 : vector<1x128xf32>
      %451 = arith.mulf %448, %427 : vector<1x128xf32>
      %452 = arith.mulf %450, %431 : vector<1x128xf32>
      %453 = arith.addf %451, %452 : vector<1x128xf32>
      %454 = arith.mulf %448, %429 : vector<1x128xf32>
      %455 = arith.addf %454, %450 : vector<1x128xf32>
      %456 = vector.extract_strided_slice %271 {offsets = [7, 0], sizes = [1, 128], strides = [1, 1]} : vector<8x128xf32> to vector<1x128xf32>
      %457 = vector.extract_strided_slice %273 {offsets = [7, 0], sizes = [1, 128], strides = [1, 1]} : vector<8x128xf32> to vector<1x128xf32>
      %458 = arith.addf %456, %113 : vector<1x128xf32>
      %459 = arith.maximumf %446, %458 : vector<1x128xf32>
      %460 = arith.subf %446, %459 : vector<1x128xf32>
      %461 = math.exp %460 : vector<1x128xf32>
      %462 = arith.subf %458, %459 : vector<1x128xf32>
      %463 = math.exp %462 : vector<1x128xf32>
      %464 = arith.mulf %461, %453 : vector<1x128xf32>
      %465 = arith.mulf %463, %457 : vector<1x128xf32>
      %466 = arith.addf %464, %465 : vector<1x128xf32>
      %467 = arith.mulf %461, %455 : vector<1x128xf32>
      %468 = arith.addf %467, %463 : vector<1x128xf32>
      %469 = tpu.reciprocal %468 {approx = true} : vector<1x128xf32> -> vector<1x128xf32>
      %470 = arith.mulf %466, %469 : vector<1x128xf32>
      %471 = arith.addf %446, %115 : vector<1x128xf32>
      %472 = arith.maximumf %471, %456 : vector<1x128xf32>
      %473 = arith.subf %471, %472 : vector<1x128xf32>
      %474 = math.exp %473 : vector<1x128xf32>
      %475 = arith.subf %456, %472 : vector<1x128xf32>
      %476 = math.exp %475 : vector<1x128xf32>
      %477 = arith.mulf %474, %453 : vector<1x128xf32>
      %478 = arith.mulf %476, %457 : vector<1x128xf32>
      %479 = arith.addf %477, %478 : vector<1x128xf32>
      %480 = arith.mulf %474, %455 : vector<1x128xf32>
      %481 = arith.addf %480, %476 : vector<1x128xf32>
      %482 = tpu.concatenate %288, %314, %340, %366, %392, %418, %444, %470 in 0 : vector<1x128xf32>, vector<1x128xf32>, vector<1x128xf32>, vector<1x128xf32>, vector<1x128xf32>, vector<1x128xf32>, vector<1x128xf32>, vector<1x128xf32> -> vector<8x128xf32>
      %483 = arith.index_cast %269 : i32 to index
      %c0_213 = arith.constant 0 : index
      %484 = vector.load %arg18[%483, %c0_213] : memref<16x128xf32, #tpu.memory_space<vmem>>, vector<8x128xf32>
      tpu.vector_store %arg18[%483, %c0_213], %482 {strides = array<i32>} : memref<16x128xf32, #tpu.memory_space<vmem>>, vector<8x128xf32>,
      scf.yield %479, %481, %472 : vector<1x128xf32>, vector<1x128xf32>, vector<1x128xf32>
    }
    %c2_i32_95 = arith.constant 2 : i32
    %c0_96 = arith.constant 0 : index
    %c2_97 = arith.constant 2 : index
    %c0_98 = arith.constant 0 : index
    %124 = vector.load %arg15[%c0_96, %c2_97, %c0_98] : memref<1x5x128xf32, #tpu.memory_space<vmem>>, vector<1x1x128xf32>
    %125 = vector.shape_cast %124 : vector<1x1x128xf32> to vector<1x128xf32>
    %126 = vector.shape_cast %123#0 : vector<1x128xf32> to vector<1x1x128xf32>
    tpu.vector_store %arg15[%c0_96, %c2_97, %c0_98], %126 {strides = array<i32>} : memref<1x5x128xf32, #tpu.memory_space<vmem>>, vector<1x1x128xf32>,
    %c0_99 = arith.constant 0 : index
    %c3_100 = arith.constant 3 : index
    %c0_101 = arith.constant 0 : index
    %127 = vector.load %arg15[%c0_99, %c3_100, %c0_101] : memref<1x5x128xf32, #tpu.memory_space<vmem>>, vector<1x1x128xf32>
    %128 = vector.shape_cast %127 : vector<1x1x128xf32> to vector<1x128xf32>
    %129 = vector.shape_cast %123#1 : vector<1x128xf32> to vector<1x1x128xf32>
    tpu.vector_store %arg15[%c0_99, %c3_100, %c0_101], %129 {strides = array<i32>} : memref<1x5x128xf32, #tpu.memory_space<vmem>>, vector<1x1x128xf32>,
    %c0_102 = arith.constant 0 : index
    %c4_103 = arith.constant 4 : index
    %c0_104 = arith.constant 0 : index
    %130 = vector.load %arg15[%c0_102, %c4_103, %c0_104] : memref<1x5x128xf32, #tpu.memory_space<vmem>>, vector<1x1x128xf32>
    %131 = vector.shape_cast %130 : vector<1x1x128xf32> to vector<1x128xf32>
    %132 = vector.shape_cast %123#2 : vector<1x128xf32> to vector<1x1x128xf32>
    tpu.vector_store %arg15[%c0_102, %c4_103, %c0_104], %132 {strides = array<i32>} : memref<1x5x128xf32, #tpu.memory_space<vmem>>, vector<1x1x128xf32>,
    %c0_i32_105 = arith.constant 0 : i32
    %c0_i32_106 = arith.constant 0 : i32
    %c0_i32_107 = arith.constant 0 : i32
    %c0_i32_108 = arith.constant 0 : i32
    %133 = tpu.memref_slice %arg9[%arg0, %c0_i32_107, %c0_i32_108] : memref<2x128x128xbf16, #tpu.memory_space<any>> -> memref<1x128x128xbf16, #tpu.memory_space<any>>
    %134 = tpu.memref_squeeze %133 : memref<1x128x128xbf16, #tpu.memory_space<any>> -> memref<128x128xbf16, #tpu.memory_space<any>>
    %c0_i32_109 = arith.constant 0 : i32
    %c0_i32_110 = arith.constant 0 : i32
    %135 = tpu.memref_slice %arg19[%c0_i32_105, %c0_i32_109, %c0_i32_110] : memref<2x128x128xbf16, #tpu.memory_space<vmem>> -> memref<1x128x128xbf16, #tpu.memory_space<vmem>>
    %136 = tpu.memref_squeeze %135 : memref<1x128x128xbf16, #tpu.memory_space<vmem>> -> memref<128x128xbf16, #tpu.memory_space<vmem>>
    %137 = tpu.memref_slice %arg22[%c0_i32_106] : memref<2x!tpu.dma_semaphore, #tpu.memory_space<semaphore_mem>> -> memref<1x!tpu.dma_semaphore, #tpu.memory_space<semaphore_mem>>
    %138 = tpu.memref_squeeze %137 : memref<1x!tpu.dma_semaphore, #tpu.memory_space<semaphore_mem>> -> memref<!tpu.dma_semaphore, #tpu.memory_space<semaphore_mem>>
    tpu.wait_dma2 semaphore(%138 : memref<!tpu.dma_semaphore, #tpu.memory_space<semaphore_mem>>) src(%134 : memref<128x128xbf16, #tpu.memory_space<any>>) dst(%136 : memref<128x128xbf16, #tpu.memory_space<vmem>>)
    %c0_111 = arith.constant 0 : index
    %c0_112 = arith.constant 0 : index
    %c0_113 = arith.constant 0 : index
    %139 = vector.load %arg19[%c0_111, %c0_112, %c0_113] : memref<2x128x128xbf16, #tpu.memory_space<vmem>>, vector<1x128x128xbf16>
    %140 = vector.shape_cast %139 : vector<1x128x128xbf16> to vector<128x128xbf16>
    %cst_114 = arith.constant dense<0.000000e+00> : vector<16x128xf32>
    %141 = tpu.matmul %57, %140, %cst_114 {dimension_numbers = #tpu.dot_dimension_numbers<[1], [0], [0], [1], [0, 0, 1, 1], [], []>} : vector<16x128xbf16>, vector<128x128xbf16>, vector<16x128xf32> -> vector<16x128xf32>
    %c0_115 = arith.constant 0 : index
    %c0_116 = arith.constant 0 : index
    %142 = vector.load %arg18[%c0_115, %c0_116] : memref<16x128xf32, #tpu.memory_space<vmem>>, vector<16x128xf32>
    %143 = arith.negf %141 : vector<16x128xf32>
    %144 = math.exp %143 : vector<16x128xf32>
    %cst_117 = arith.constant 1.000000e+00 : f32
    %145 = vector.broadcast %cst_117 : f32 to vector<16x128xf32>
    %146 = arith.addf %145, %144 : vector<16x128xf32>
    %147 = arith.divf %145, %146 : vector<16x128xf32>
    %148 = arith.mulf %142, %147 : vector<16x128xf32>
    %c0_118 = arith.constant 0 : index
    %c0_119 = arith.constant 0 : index
    %149 = vector.load %arg18[%c0_118, %c0_119] : memref<16x128xf32, #tpu.memory_space<vmem>>, vector<16x128xf32>
    tpu.vector_store %arg18[%c0_118, %c0_119], %148 {strides = array<i32>} : memref<16x128xf32, #tpu.memory_space<vmem>>, vector<16x128xf32>,
    %c0_120 = arith.constant 0 : index
    %c0_121 = arith.constant 0 : index
    %150 = vector.load %arg18[%c0_120, %c0_121] : memref<16x128xf32, #tpu.memory_space<vmem>>, vector<16x128xf32>
    %151 = arith.truncf %150 : vector<16x128xf32> to vector<16x128xbf16>
    %c0_i32_122 = arith.constant 0 : i32
    %c0_i32_123 = arith.constant 0 : i32
    %c0_i32_124 = arith.constant 0 : i32
    %c0_i32_125 = arith.constant 0 : i32
    %152 = tpu.memref_slice %arg10[%arg0, %c0_i32_124, %c0_i32_125] : memref<2x128x128xbf16, #tpu.memory_space<any>> -> memref<1x128x128xbf16, #tpu.memory_space<any>>
    %153 = tpu.memref_squeeze %152 : memref<1x128x128xbf16, #tpu.memory_space<any>> -> memref<128x128xbf16, #tpu.memory_space<any>>
    %c0_i32_126 = arith.constant 0 : i32
    %c0_i32_127 = arith.constant 0 : i32
    %154 = tpu.memref_slice %arg19[%c0_i32_122, %c0_i32_126, %c0_i32_127] : memref<2x128x128xbf16, #tpu.memory_space<vmem>> -> memref<1x128x128xbf16, #tpu.memory_space<vmem>>
    %155 = tpu.memref_squeeze %154 : memref<1x128x128xbf16, #tpu.memory_space<vmem>> -> memref<128x128xbf16, #tpu.memory_space<vmem>>
    %156 = tpu.memref_slice %arg22[%c0_i32_123] : memref<2x!tpu.dma_semaphore, #tpu.memory_space<semaphore_mem>> -> memref<1x!tpu.dma_semaphore, #tpu.memory_space<semaphore_mem>>
    %157 = tpu.memref_squeeze %156 : memref<1x!tpu.dma_semaphore, #tpu.memory_space<semaphore_mem>> -> memref<!tpu.dma_semaphore, #tpu.memory_space<semaphore_mem>>
    tpu.enqueue_dma source(%153 : memref<128x128xbf16, #tpu.memory_space<any>>) target(%155 : memref<128x128xbf16, #tpu.memory_space<vmem>>) target_semaphore(%157 : memref<!tpu.dma_semaphore, #tpu.memory_space<semaphore_mem>>)
    %c0_i32_128 = arith.constant 0 : i32
    %c0_i32_129 = arith.constant 0 : i32
    %c0_i32_130 = arith.constant 0 : i32
    %c0_i32_131 = arith.constant 0 : i32
    %158 = tpu.memref_slice %arg10[%arg0, %c0_i32_130, %c0_i32_131] : memref<2x128x128xbf16, #tpu.memory_space<any>> -> memref<1x128x128xbf16, #tpu.memory_space<any>>
    %159 = tpu.memref_squeeze %158 : memref<1x128x128xbf16, #tpu.memory_space<any>> -> memref<128x128xbf16, #tpu.memory_space<any>>
    %c0_i32_132 = arith.constant 0 : i32
    %c0_i32_133 = arith.constant 0 : i32
    %160 = tpu.memref_slice %arg19[%c0_i32_128, %c0_i32_132, %c0_i32_133] : memref<2x128x128xbf16, #tpu.memory_space<vmem>> -> memref<1x128x128xbf16, #tpu.memory_space<vmem>>
    %161 = tpu.memref_squeeze %160 : memref<1x128x128xbf16, #tpu.memory_space<vmem>> -> memref<128x128xbf16, #tpu.memory_space<vmem>>
    %162 = tpu.memref_slice %arg22[%c0_i32_129] : memref<2x!tpu.dma_semaphore, #tpu.memory_space<semaphore_mem>> -> memref<1x!tpu.dma_semaphore, #tpu.memory_space<semaphore_mem>>
    %163 = tpu.memref_squeeze %162 : memref<1x!tpu.dma_semaphore, #tpu.memory_space<semaphore_mem>> -> memref<!tpu.dma_semaphore, #tpu.memory_space<semaphore_mem>>
    tpu.wait_dma2 semaphore(%163 : memref<!tpu.dma_semaphore, #tpu.memory_space<semaphore_mem>>) src(%159 : memref<128x128xbf16, #tpu.memory_space<any>>) dst(%161 : memref<128x128xbf16, #tpu.memory_space<vmem>>)
    %c0_134 = arith.constant 0 : index
    %c0_135 = arith.constant 0 : index
    %c0_136 = arith.constant 0 : index
    %164 = vector.load %arg19[%c0_134, %c0_135, %c0_136] : memref<2x128x128xbf16, #tpu.memory_space<vmem>>, vector<1x128x128xbf16>
    %165 = vector.shape_cast %164 : vector<1x128x128xbf16> to vector<128x128xbf16>
    %cst_137 = arith.constant dense<0.000000e+00> : vector<16x128xf32>
    %166 = tpu.matmul %151, %165, %cst_137 {dimension_numbers = #tpu.dot_dimension_numbers<[1], [0], [0], [1], [0, 0, 1, 1], [], []>} : vector<16x128xbf16>, vector<128x128xbf16>, vector<16x128xf32> -> vector<16x128xf32>
    %c0_138 = arith.constant 0 : index
    %c0_139 = arith.constant 0 : index
    %167 = vector.load %arg14[%c0_138, %c0_139] : memref<16x128xf32, #tpu.memory_space<vmem>>, vector<16x128xf32>
    %168 = arith.addf %167, %166 : vector<16x128xf32>
    %c0_140 = arith.constant 0 : index
    %c0_141 = arith.constant 0 : index
    %169 = vector.load %arg14[%c0_140, %c0_141] : memref<16x128xf32, #tpu.memory_space<vmem>>, vector<16x128xf32>
    tpu.vector_store %arg14[%c0_140, %c0_141], %168 {strides = array<i32>} : memref<16x128xf32, #tpu.memory_space<vmem>>, vector<16x128xf32>,
    %c0_142 = arith.constant 0 : index
    %c0_143 = arith.constant 0 : index
    %170 = vector.load %arg14[%c0_142, %c0_143] : memref<16x128xf32, #tpu.memory_space<vmem>>, vector<16x128xf32>
    %c0_144 = arith.constant 0 : index
    %c2_145 = arith.constant 2 : index
    %c0_146 = arith.constant 0 : index
    %171 = vector.load %arg3[%c0_144, %c2_145, %c0_146] : memref<1x4x128xf32, #tpu.memory_space<vmem>>, vector<1x1x128xf32>
    %172 = vector.shape_cast %171 : vector<1x1x128xf32> to vector<1x128xf32>
    %c0_147 = arith.constant 0 : index
    %c3_148 = arith.constant 3 : index
    %c0_149 = arith.constant 0 : index
    %173 = vector.load %arg3[%c0_147, %c3_148, %c0_149] : memref<1x4x128xf32, #tpu.memory_space<vmem>>, vector<1x1x128xf32>
    %174 = vector.shape_cast %173 : vector<1x1x128xf32> to vector<1x128xf32>
    %cst_150 = arith.constant dense<0.000000e+00> : vector<16xf32>
    %175 = vector.multi_reduction <add>, %170, %cst_150 [1] : vector<16x128xf32> to vector<16xf32>
    %176 = vector.shape_cast %175 : vector<16xf32> to vector<16x1xf32>
    %cst_151 = arith.constant 1.280000e+02 : f32
    %177 = vector.broadcast %cst_151 : f32 to vector<16x1xf32>
    %178 = arith.divf %176, %177 : vector<16x1xf32>
    %179 = vector.broadcast %178 : vector<16x1xf32> to vector<16x128xf32>
    %180 = arith.subf %170, %179 : vector<16x128xf32>
    %181 = arith.mulf %180, %180 : vector<16x128xf32>
    %cst_152 = arith.constant dense<0.000000e+00> : vector<16xf32>
    %182 = vector.multi_reduction <add>, %181, %cst_152 [1] : vector<16x128xf32> to vector<16xf32>
    %183 = vector.shape_cast %182 : vector<16xf32> to vector<16x1xf32>
    %cst_153 = arith.constant 1.280000e+02 : f32
    %184 = vector.broadcast %cst_153 : f32 to vector<16x1xf32>
    %185 = arith.divf %183, %184 : vector<16x1xf32>
    %186 = vector.broadcast %178 : vector<16x1xf32> to vector<16x128xf32>
    %187 = arith.subf %170, %186 : vector<16x128xf32>
    %cst_154 = arith.constant 9.99999974E-6 : f32
    %188 = vector.broadcast %cst_154 : f32 to vector<16x1xf32>
    %189 = arith.addf %185, %188 : vector<16x1xf32>
    %190 = math.rsqrt %189 : vector<16x1xf32>
    %191 = vector.broadcast %190 : vector<16x1xf32> to vector<16x128xf32>
    %192 = arith.mulf %187, %191 : vector<16x128xf32>
    %193 = vector.broadcast %172 : vector<1x128xf32> to vector<16x128xf32>
    %194 = arith.mulf %192, %193 : vector<16x128xf32>
    %195 = vector.broadcast %174 : vector<1x128xf32> to vector<16x128xf32>
    %196 = arith.addf %194, %195 : vector<16x128xf32>
    %c0_155 = arith.constant 0 : index
    %c0_156 = arith.constant 0 : index
    %c0_157 = arith.constant 0 : index
    %197 = vector.load %arg2[%c0_155, %c0_156, %c0_157] : memref<1x5x128xf32, #tpu.memory_space<vmem>>, vector<1x1x128xf32>
    %198 = vector.shape_cast %197 : vector<1x1x128xf32> to vector<1x128xf32>
    %c1_i32_158 = arith.constant 1 : i32
    %199 = tpu.dynamic_rotate %196 by %c1_i32_158 dim 0 : vector<16x128xf32>, i32 -> vector<16x128xf32>
    %200 = vector.shape_cast %198 : vector<1x128xf32> to vector<1x128xf32>
    %201 = vector.broadcast %200 : vector<1x128xf32> to vector<16x128xf32>
    %202 = arith.select %6, %201, %199 : vector<16x128xi1>, vector<16x128xf32>
    %203 = arith.subf %196, %202 : vector<16x128xf32>
    %c0_159 = arith.constant 0 : index
    %c0_160 = arith.constant 0 : index
    %c0_161 = arith.constant 0 : index
    %204 = vector.load %arg6[%c0_159, %c0_160, %c0_161] : memref<1x2x128xf32, #tpu.memory_space<vmem>>, vector<1x1x128xf32>
    %205 = vector.shape_cast %204 : vector<1x1x128xf32> to vector<1x128xf32>
    %206 = vector.broadcast %205 : vector<1x128xf32> to vector<16x128xf32>
    %207 = arith.mulf %203, %206 : vector<16x128xf32>
    %208 = arith.addf %202, %207 : vector<16x128xf32>
    %209 = arith.truncf %208 : vector<16x128xf32> to vector<16x128xbf16>
    %c0_162 = arith.constant 0 : index
    %c1_163 = arith.constant 1 : index
    %c0_164 = arith.constant 0 : index
    %210 = vector.load %arg6[%c0_162, %c1_163, %c0_164] : memref<1x2x128xf32, #tpu.memory_space<vmem>>, vector<1x1x128xf32>
    %211 = vector.shape_cast %210 : vector<1x1x128xf32> to vector<1x128xf32>
    %212 = vector.broadcast %211 : vector<1x128xf32> to vector<16x128xf32>
    %213 = arith.mulf %203, %212 : vector<16x128xf32>
    %214 = arith.addf %202, %213 : vector<16x128xf32>
    %215 = arith.truncf %214 : vector<16x128xf32> to vector<16x128xbf16>
    %216 = vector.extract_strided_slice %196 {offsets = [15, 0], sizes = [1, 128], strides = [1, 1]} : vector<16x128xf32> to vector<1x128xf32>
    %c0_165 = arith.constant 0 : index
    %c0_166 = arith.constant 0 : index
    %c0_167 = arith.constant 0 : index
    %217 = vector.load %arg15[%c0_165, %c0_166, %c0_167] : memref<1x5x128xf32, #tpu.memory_space<vmem>>, vector<1x1x128xf32>
    %218 = vector.shape_cast %217 : vector<1x1x128xf32> to vector<1x128xf32>
    %219 = vector.shape_cast %216 : vector<1x128xf32> to vector<1x1x128xf32>
    tpu.vector_store %arg15[%c0_165, %c0_166, %c0_167], %219 {strides = array<i32>} : memref<1x5x128xf32, #tpu.memory_space<vmem>>, vector<1x1x128xf32>,
    %cst_168 = arith.constant 0.000000e+00 : f32
    %220 = vector.broadcast %cst_168 : f32 to vector<16x128xf32>
    %c0_i32_169 = arith.constant 0 : i32
    %c0_i32_170 = arith.constant 0 : i32
    %c0_i32_171 = arith.constant 0 : i32
    %c0_i32_172 = arith.constant 0 : i32
    %221 = tpu.memref_slice %arg11[%arg0, %c0_i32_171, %c0_i32_172] : memref<2x128x512xbf16, #tpu.memory_space<any>> -> memref<1x128x512xbf16, #tpu.memory_space<any>>
    %222 = tpu.memref_squeeze %221 : memref<1x128x512xbf16, #tpu.memory_space<any>> -> memref<128x512xbf16, #tpu.memory_space<any>>
    %c0_i32_173 = arith.constant 0 : i32
    %c0_i32_174 = arith.constant 0 : i32
    %223 = tpu.memref_slice %arg20[%c0_i32_169, %c0_i32_173, %c0_i32_174] : memref<2x128x512xbf16, #tpu.memory_space<vmem>> -> memref<1x128x512xbf16, #tpu.memory_space<vmem>>
    %224 = tpu.memref_squeeze %223 : memref<1x128x512xbf16, #tpu.memory_space<vmem>> -> memref<128x512xbf16, #tpu.memory_space<vmem>>
    %225 = tpu.memref_slice %arg23[%c0_i32_170] : memref<2x!tpu.dma_semaphore, #tpu.memory_space<semaphore_mem>> -> memref<1x!tpu.dma_semaphore, #tpu.memory_space<semaphore_mem>>
    %226 = tpu.memref_squeeze %225 : memref<1x!tpu.dma_semaphore, #tpu.memory_space<semaphore_mem>> -> memref<!tpu.dma_semaphore, #tpu.memory_space<semaphore_mem>>
    tpu.wait_dma2 semaphore(%226 : memref<!tpu.dma_semaphore, #tpu.memory_space<semaphore_mem>>) src(%222 : memref<128x512xbf16, #tpu.memory_space<any>>) dst(%224 : memref<128x512xbf16, #tpu.memory_space<vmem>>)
    %c0_175 = arith.constant 0 : index
    %c0_176 = arith.constant 0 : index
    %c0_177 = arith.constant 0 : index
    %227 = vector.load %arg20[%c0_175, %c0_176, %c0_177] : memref<2x128x512xbf16, #tpu.memory_space<vmem>>, vector<1x128x512xbf16>
    %228 = vector.shape_cast %227 : vector<1x128x512xbf16> to vector<128x512xbf16>
    %cst_178 = arith.constant dense<0.000000e+00> : vector<16x512xf32>
    %229 = tpu.matmul %209, %228, %cst_178 {dimension_numbers = #tpu.dot_dimension_numbers<[1], [0], [0], [1], [0, 0, 1, 1], [], []>} : vector<16x128xbf16>, vector<128x512xbf16>, vector<16x512xf32> -> vector<16x512xf32>
    %cst_179 = arith.constant 0.000000e+00 : f32
    %230 = vector.broadcast %cst_179 : f32 to vector<16x512xf32>
    %231 = arith.maximumf %229, %230 : vector<16x512xf32>
    %232 = arith.mulf %231, %231 : vector<16x512xf32>
    %c0_i32_180 = arith.constant 0 : i32
    %c0_i32_181 = arith.constant 0 : i32
    %c0_i32_182 = arith.constant 0 : i32
    %c0_i32_183 = arith.constant 0 : i32
    %233 = tpu.memref_slice %arg12[%arg0, %c0_i32_182, %c0_i32_183] : memref<2x512x128xbf16, #tpu.memory_space<any>> -> memref<1x512x128xbf16, #tpu.memory_space<any>>
    %234 = tpu.memref_squeeze %233 : memref<1x512x128xbf16, #tpu.memory_space<any>> -> memref<512x128xbf16, #tpu.memory_space<any>>
    %c0_i32_184 = arith.constant 0 : i32
    %c0_i32_185 = arith.constant 0 : i32
    %235 = tpu.memref_slice %arg21[%c0_i32_180, %c0_i32_184, %c0_i32_185] : memref<2x512x128xbf16, #tpu.memory_space<vmem>> -> memref<1x512x128xbf16, #tpu.memory_space<vmem>>
    %236 = tpu.memref_squeeze %235 : memref<1x512x128xbf16, #tpu.memory_space<vmem>> -> memref<512x128xbf16, #tpu.memory_space<vmem>>
    %237 = tpu.memref_slice %arg24[%c0_i32_181] : memref<2x!tpu.dma_semaphore, #tpu.memory_space<semaphore_mem>> -> memref<1x!tpu.dma_semaphore, #tpu.memory_space<semaphore_mem>>
    %238 = tpu.memref_squeeze %237 : memref<1x!tpu.dma_semaphore, #tpu.memory_space<semaphore_mem>> -> memref<!tpu.dma_semaphore, #tpu.memory_space<semaphore_mem>>
    tpu.wait_dma2 semaphore(%238 : memref<!tpu.dma_semaphore, #tpu.memory_space<semaphore_mem>>) src(%234 : memref<512x128xbf16, #tpu.memory_space<any>>) dst(%236 : memref<512x128xbf16, #tpu.memory_space<vmem>>)
    %239 = arith.truncf %232 : vector<16x512xf32> to vector<16x512xbf16>
    %c0_186 = arith.constant 0 : index
    %c0_187 = arith.constant 0 : index
    %c0_188 = arith.constant 0 : index
    %240 = vector.load %arg21[%c0_186, %c0_187, %c0_188] : memref<2x512x128xbf16, #tpu.memory_space<vmem>>, vector<1x512x128xbf16>
    %241 = vector.shape_cast %240 : vector<1x512x128xbf16> to vector<512x128xbf16>
    %cst_189 = arith.constant dense<0.000000e+00> : vector<16x128xf32>
    %242 = tpu.matmul %239, %241, %cst_189 {dimension_numbers = #tpu.dot_dimension_numbers<[1], [0], [0], [1], [0, 0, 1, 1], [], []>} : vector<16x512xbf16>, vector<512x128xbf16>, vector<16x128xf32> -> vector<16x128xf32>
    %243 = arith.addf %220, %242 : vector<16x128xf32>
    %c0_i32_190 = arith.constant 0 : i32
    %c0_i32_191 = arith.constant 0 : i32
    %c0_i32_192 = arith.constant 0 : i32
    %c0_i32_193 = arith.constant 0 : i32
    %244 = tpu.memref_slice %arg13[%arg0, %c0_i32_192, %c0_i32_193] : memref<2x128x128xbf16, #tpu.memory_space<any>> -> memref<1x128x128xbf16, #tpu.memory_space<any>>
    %245 = tpu.memref_squeeze %244 : memref<1x128x128xbf16, #tpu.memory_space<any>> -> memref<128x128xbf16, #tpu.memory_space<any>>
    %c0_i32_194 = arith.constant 0 : i32
    %c0_i32_195 = arith.constant 0 : i32
    %246 = tpu.memref_slice %arg19[%c0_i32_190, %c0_i32_194, %c0_i32_195] : memref<2x128x128xbf16, #tpu.memory_space<vmem>> -> memref<1x128x128xbf16, #tpu.memory_space<vmem>>
    %247 = tpu.memref_squeeze %246 : memref<1x128x128xbf16, #tpu.memory_space<vmem>> -> memref<128x128xbf16, #tpu.memory_space<vmem>>
    %248 = tpu.memref_slice %arg22[%c0_i32_191] : memref<2x!tpu.dma_semaphore, #tpu.memory_space<semaphore_mem>> -> memref<1x!tpu.dma_semaphore, #tpu.memory_space<semaphore_mem>>
    %249 = tpu.memref_squeeze %248 : memref<1x!tpu.dma_semaphore, #tpu.memory_space<semaphore_mem>> -> memref<!tpu.dma_semaphore, #tpu.memory_space<semaphore_mem>>
    tpu.enqueue_dma source(%245 : memref<128x128xbf16, #tpu.memory_space<any>>) target(%247 : memref<128x128xbf16, #tpu.memory_space<vmem>>) target_semaphore(%249 : memref<!tpu.dma_semaphore, #tpu.memory_space<semaphore_mem>>)
    %c0_i32_196 = arith.constant 0 : i32
    %c0_i32_197 = arith.constant 0 : i32
    %c0_i32_198 = arith.constant 0 : i32
    %c0_i32_199 = arith.constant 0 : i32
    %250 = tpu.memref_slice %arg13[%arg0, %c0_i32_198, %c0_i32_199] : memref<2x128x128xbf16, #tpu.memory_space<any>> -> memref<1x128x128xbf16, #tpu.memory_space<any>>
    %251 = tpu.memref_squeeze %250 : memref<1x128x128xbf16, #tpu.memory_space<any>> -> memref<128x128xbf16, #tpu.memory_space<any>>
    %c0_i32_200 = arith.constant 0 : i32
    %c0_i32_201 = arith.constant 0 : i32
    %252 = tpu.memref_slice %arg19[%c0_i32_196, %c0_i32_200, %c0_i32_201] : memref<2x128x128xbf16, #tpu.memory_space<vmem>> -> memref<1x128x128xbf16, #tpu.memory_space<vmem>>
    %253 = tpu.memref_squeeze %252 : memref<1x128x128xbf16, #tpu.memory_space<vmem>> -> memref<128x128xbf16, #tpu.memory_space<vmem>>
    %254 = tpu.memref_slice %arg22[%c0_i32_197] : memref<2x!tpu.dma_semaphore, #tpu.memory_space<semaphore_mem>> -> memref<1x!tpu.dma_semaphore, #tpu.memory_space<semaphore_mem>>
    %255 = tpu.memref_squeeze %254 : memref<1x!tpu.dma_semaphore, #tpu.memory_space<semaphore_mem>> -> memref<!tpu.dma_semaphore, #tpu.memory_space<semaphore_mem>>
    tpu.wait_dma2 semaphore(%255 : memref<!tpu.dma_semaphore, #tpu.memory_space<semaphore_mem>>) src(%251 : memref<128x128xbf16, #tpu.memory_space<any>>) dst(%253 : memref<128x128xbf16, #tpu.memory_space<vmem>>)
    %c0_202 = arith.constant 0 : index
    %c0_203 = arith.constant 0 : index
    %c0_204 = arith.constant 0 : index
    %256 = vector.load %arg19[%c0_202, %c0_203, %c0_204] : memref<2x128x128xbf16, #tpu.memory_space<vmem>>, vector<1x128x128xbf16>
    %257 = vector.shape_cast %256 : vector<1x128x128xbf16> to vector<128x128xbf16>
    %cst_205 = arith.constant dense<0.000000e+00> : vector<16x128xf32>
    %258 = tpu.matmul %215, %257, %cst_205 {dimension_numbers = #tpu.dot_dimension_numbers<[1], [0], [0], [1], [0, 0, 1, 1], [], []>} : vector<16x128xbf16>, vector<128x128xbf16>, vector<16x128xf32> -> vector<16x128xf32>
    %c0_206 = arith.constant 0 : index
    %c0_207 = arith.constant 0 : index
    %259 = vector.load %arg14[%c0_206, %c0_207] : memref<16x128xf32, #tpu.memory_space<vmem>>, vector<16x128xf32>
    %260 = arith.negf %258 : vector<16x128xf32>
    %261 = math.exp %260 : vector<16x128xf32>
    %cst_208 = arith.constant 1.000000e+00 : f32
    %262 = vector.broadcast %cst_208 : f32 to vector<16x128xf32>
    %263 = arith.addf %262, %261 : vector<16x128xf32>
    %264 = arith.divf %262, %263 : vector<16x128xf32>
    %265 = arith.mulf %264, %243 : vector<16x128xf32>
    %266 = arith.addf %259, %265 : vector<16x128xf32>
    %c0_209 = arith.constant 0 : index
    %c0_210 = arith.constant 0 : index
    %267 = vector.load %arg14[%c0_209, %c0_210] : memref<16x128xf32, #tpu.memory_space<vmem>>, vector<16x128xf32>
    tpu.vector_store %arg14[%c0_209, %c0_210], %266 {strides = array<i32>} : memref<16x128xf32, #tpu.memory_space<vmem>>, vector<16x128xf32>,
    return
  }
  func.func @transform_0(%arg0: i32) -> (i32, i32) {
    %c0_i32 = arith.constant 0 : i32
    %c0_i32_0 = arith.constant 0 : i32
    %c0_i32_1 = arith.constant 0 : i32
    return %c0_i32, %c0_i32_0 : i32, i32
  }
  func.func @transform_1(%arg0: i32) -> (i32, i32, i32) {
    %c0_i32 = arith.constant 0 : i32
    %c0_i32_0 = arith.constant 0 : i32
    %c0_i32_1 = arith.constant 0 : i32
    return %arg0, %c0_i32, %c0_i32_0 : i32, i32, i32
  }
  func.func @transform_2(%arg0: i32) -> (i32, i32, i32) {
    %c0_i32 = arith.constant 0 : i32
    %c0_i32_0 = arith.constant 0 : i32
    %c0_i32_1 = arith.constant 0 : i32
    return %arg0, %c0_i32, %c0_i32_0 : i32, i32, i32
  }
  func.func @transform_3(%arg0: i32) -> (i32, i32, i32) {
    %c0_i32 = arith.constant 0 : i32
    %c0_i32_0 = arith.constant 0 : i32
    %c0_i32_1 = arith.constant 0 : i32
    return %arg0, %c0_i32, %c0_i32_0 : i32, i32, i32
  }
  func.func @transform_4(%arg0: i32) -> (i32, i32, i32) {
    %c0_i32 = arith.constant 0 : i32
    %c0_i32_0 = arith.constant 0 : i32
    %c0_i32_1 = arith.constant 0 : i32
    return %arg0, %c0_i32, %c0_i32_0 : i32, i32, i32
  }
  func.func @transform_5(%arg0: i32) -> (i32, i32, i32) {
    %c0_i32 = arith.constant 0 : i32
    %c0_i32_0 = arith.constant 0 : i32
    %c0_i32_1 = arith.constant 0 : i32
    return %arg0, %c0_i32, %c0_i32_0 : i32, i32, i32
  }
  func.func @transform_13(%arg0: i32) -> (i32, i32) {
    %c0_i32 = arith.constant 0 : i32
    %c0_i32_0 = arith.constant 0 : i32
    %c0_i32_1 = arith.constant 0 : i32
    return %c0_i32, %c0_i32_0 : i32, i32
  }
  func.func @transform_14(%arg0: i32) -> (i32, i32, i32) {
    %c0_i32 = arith.constant 0 : i32
    %c0_i32_0 = arith.constant 0 : i32
    %c0_i32_1 = arith.constant 0 : i32
    return %arg0, %c0_i32, %c0_i32_0 : i32, i32, i32
  }
}

</mosaic_0001>

<llo_original>
// kernel: rwkv_forward_pallas.3
$region0: #{rwkv_forward_pallas.3}
  #allocation0 [shape = 'u32[]', space=smem, size = 0x4, offset = 0x4, fixed_abs, tag = 'smem constant byte address 0x4 - core index']
  #allocation1 [shape = 'u32[144,128]{1,0:T(1,128)}', space=vmem, size = 0x12000, scoped, tag = 'internal scratch']
  %s0 = inlined_call_operand.vmem [shape: f32[1,128], index: 0, kind: input, shape index: {}]
  %s1 = inlined_call_operand.vmem [shape: bf16[128,1024], index: 1, kind: input, shape index: {}]
  %s2 = inlined_call_operand.hbm [shape: f32[1,1024], index: 2, kind: output, shape index: {}]
  %s3 = sld [smem:[#allocation0]]
  $region18: #{rwkv_forward_pallas.3} parent=0
    _
  %s5 = ssub.s32 1, %s3
  %s6 = scalar_select 0, %s5, %s3
  $region1: #{rwkv_forward_pallas.3} parent=0
    #allocation2 [shape = 'u8[4096]{0}', space=vmem, size = 0x1000, scoped, tag = 'output window, operand 0, single buffered']
    #allocation3 [shape = 's32[1]{0}', space=sflag, size = 0x4, scoped, tag = 'scoped memory for rwkv_forward_pallas.3']
    %7 = vsyncpa [#allocation3], 0
    // Predicated region
    $region2: #{rwkv_forward_pallas.3} parent=1 // pred_check
      _
    $region3: #{rwkv_forward_pallas.3} parent=1 // pred_check_branch
      %9 = sbr.rel (0) target = $region5
    $region4: #{rwkv_forward_pallas.3} parent=1 // pred_region
      _
    $region5: #{rwkv_forward_pallas.3} parent=1 // pred_fallthru
      _
    // Predicated region
    $region6: #{rwkv_forward_pallas.3} parent=1 // pred_check
      _
    $region7: #{rwkv_forward_pallas.3} parent=1 // pred_check_branch
      %11 = sbr.rel (0) target = $region9
    $region8: #{rwkv_forward_pallas.3} parent=1 // pred_region
      _
    $region9: #{rwkv_forward_pallas.3} parent=1 // pred_fallthru
      _
    %v13 = vld [vmem:[%s0] sm:$0x1]
    %v14 = vpack.c.bf16 %v13, %v13
    %v15 = vld [vmem:[%s1] sm:$0xff]
    %v16 = vld [vmem:[%s1 + $0x8] sm:$0xff]
    %v17 = vld [vmem:[%s1 + $0x10] sm:$0xff]
    %v18 = vld [vmem:[%s1 + $0x18] sm:$0xff]
    %v19 = vld [vmem:[%s1 + $0x20] sm:$0xff]
    %v20 = vld [vmem:[%s1 + $0x28] sm:$0xff]
    %v21 = vld [vmem:[%s1 + $0x30] sm:$0xff]
    %v22 = vld [vmem:[%s1 + $0x38] sm:$0xff]
    %v23 = vld [vmem:[%s1 + $0x40] sm:$0xff]
    %v24 = vld [vmem:[%s1 + $0x48] sm:$0xff]
    %v25 = vld [vmem:[%s1 + $0x50] sm:$0xff]
    %v26 = vld [vmem:[%s1 + $0x58] sm:$0xff]
    %v27 = vld [vmem:[%s1 + $0x60] sm:$0xff]
    %v28 = vld [vmem:[%s1 + $0x68] sm:$0xff]
    %v29 = vld [vmem:[%s1 + $0x70] sm:$0xff]
    %v30 = vld [vmem:[%s1 + $0x78] sm:$0xff]
    %v31 = vld [vmem:[%s1 + $0x80] sm:$0xff]
    %v32 = vld [vmem:[%s1 + $0x88] sm:$0xff]
    %v33 = vld [vmem:[%s1 + $0x90] sm:$0xff]
    %v34 = vld [vmem:[%s1 + $0x98] sm:$0xff]
    %v35 = vld [vmem:[%s1 + $0xa0] sm:$0xff]
    %v36 = vld [vmem:[%s1 + $0xa8] sm:$0xff]
    %v37 = vld [vmem:[%s1 + $0xb0] sm:$0xff]
    %v38 = vld [vmem:[%s1 + $0xb8] sm:$0xff]
    %v39 = vld [vmem:[%s1 + $0xc0] sm:$0xff]
    %v40 = vld [vmem:[%s1 + $0xc8] sm:$0xff]
    %v41 = vld [vmem:[%s1 + $0xd0] sm:$0xff]
    %v42 = vld [vmem:[%s1 + $0xd8] sm:$0xff]
    %v43 = vld [vmem:[%s1 + $0xe0] sm:$0xff]
    %v44 = vld [vmem:[%s1 + $0xe8] sm:$0xff]
    %v45 = vld [vmem:[%s1 + $0xf0] sm:$0xff]
    %v46 = vld [vmem:[%s1 + $0xf8] sm:$0xff]
    %v47 = vld [vmem:[%s1 + $0x100] sm:$0xff]
    %v48 = vld [vmem:[%s1 + $0x108] sm:$0xff]
    %v49 = vld [vmem:[%s1 + $0x110] sm:$0xff]
    %v50 = vld [vmem:[%s1 + $0x118] sm:$0xff]
    %v51 = vld [vmem:[%s1 + $0x120] sm:$0xff]
    %v52 = vld [vmem:[%s1 + $0x128] sm:$0xff]
    %v53 = vld [vmem:[%s1 + $0x130] sm:$0xff]
    %v54 = vld [vmem:[%s1 + $0x138] sm:$0xff]
    %v55 = vld [vmem:[%s1 + $0x140] sm:$0xff]
    %v56 = vld [vmem:[%s1 + $0x148] sm:$0xff]
    %v57 = vld [vmem:[%s1 + $0x150] sm:$0xff]
    %v58 = vld [vmem:[%s1 + $0x158] sm:$0xff]
    %v59 = vld [vmem:[%s1 + $0x160] sm:$0xff]
    %v60 = vld [vmem:[%s1 + $0x168] sm:$0xff]
    %v61 = vld [vmem:[%s1 + $0x170] sm:$0xff]
    %v62 = vld [vmem:[%s1 + $0x178] sm:$0xff]
    %v63 = vld [vmem:[%s1 + $0x180] sm:$0xff]
    %v64 = vld [vmem:[%s1 + $0x188] sm:$0xff]
    %v65 = vld [vmem:[%s1 + $0x190] sm:$0xff]
    %v66 = vld [vmem:[%s1 + $0x198] sm:$0xff]
    %v67 = vld [vmem:[%s1 + $0x1a0] sm:$0xff]
    %v68 = vld [vmem:[%s1 + $0x1a8] sm:$0xff]
    %v69 = vld [vmem:[%s1 + $0x1b0] sm:$0xff]
    %v70 = vld [vmem:[%s1 + $0x1b8] sm:$0xff]
    %v71 = vld [vmem:[%s1 + $0x1c0] sm:$0xff]
    %v72 = vld [vmem:[%s1 + $0x1c8] sm:$0xff]
    %v73 = vld [vmem:[%s1 + $0x1d0] sm:$0xff]
    %v74 = vld [vmem:[%s1 + $0x1d8] sm:$0xff]
    %v75 = vld [vmem:[%s1 + $0x1e0] sm:$0xff]
    %v76 = vld [vmem:[%s1 + $0x1e8] sm:$0xff]
    %v77 = vld [vmem:[%s1 + $0x1f0] sm:$0xff]
    %v78 = vld [vmem:[%s1 + $0x1f8] sm:$0xff]
    %v143 = vunpack.c.l.b16 %v15
    %v144 = vunpack.c.h.b16 %v15
    %v145 = vunpack.c.l.b16 %v16
    %v146 = vunpack.c.h.b16 %v16
    %v147 = vunpack.c.l.b16 %v17
    %v148 = vunpack.c.h.b16 %v17
    %v149 = vunpack.c.l.b16 %v18
    %v150 = vunpack.c.h.b16 %v18
    %v151 = vunpack.c.l.b16 %v19
    %v152 = vunpack.c.h.b16 %v19
    %v153 = vunpack.c.l.b16 %v20
    %v154 = vunpack.c.h.b16 %v20
    %v155 = vunpack.c.l.b16 %v21
    %v156 = vunpack.c.h.b16 %v21
    %v157 = vunpack.c.l.b16 %v22
    %v158 = vunpack.c.h.b16 %v22
    %v159 = vunpack.c.l.b16 %v23
    %v160 = vunpack.c.h.b16 %v23
    %v161 = vunpack.c.l.b16 %v24
    %v162 = vunpack.c.h.b16 %v24
    %v163 = vunpack.c.l.b16 %v25
    %v164 = vunpack.c.h.b16 %v25
    %v165 = vunpack.c.l.b16 %v26
    %v166 = vunpack.c.h.b16 %v26
    %v167 = vunpack.c.l.b16 %v27
    %v168 = vunpack.c.h.b16 %v27
    %v169 = vunpack.c.l.b16 %v28
    %v170 = vunpack.c.h.b16 %v28
    %v171 = vunpack.c.l.b16 %v29
    %v172 = vunpack.c.h.b16 %v29
    %v173 = vunpack.c.l.b16 %v30
    %v174 = vunpack.c.h.b16 %v30
    %v175 = vunpack.c.l.b16 %v31
    %v176 = vunpack.c.h.b16 %v31
    %v177 = vunpack.c.l.b16 %v32
    %v178 = vunpack.c.h.b16 %v32
    %v179 = vunpack.c.l.b16 %v33
    %v180 = vunpack.c.h.b16 %v33
    %v181 = vunpack.c.l.b16 %v34
    %v182 = vunpack.c.h.b16 %v34
    %v183 = vunpack.c.l.b16 %v35
    %v184 = vunpack.c.h.b16 %v35
    %v185 = vunpack.c.l.b16 %v36
    %v186 = vunpack.c.h.b16 %v36
    %v187 = vunpack.c.l.b16 %v37
    %v188 = vunpack.c.h.b16 %v37
    %v189 = vunpack.c.l.b16 %v38
    %v190 = vunpack.c.h.b16 %v38
    %v191 = vunpack.c.l.b16 %v39
    %v192 = vunpack.c.h.b16 %v39
    %v193 = vunpack.c.l.b16 %v40
    %v194 = vunpack.c.h.b16 %v40
    %v195 = vunpack.c.l.b16 %v41
    %v196 = vunpack.c.h.b16 %v41
    %v197 = vunpack.c.l.b16 %v42
    %v198 = vunpack.c.h.b16 %v42
    %v199 = vunpack.c.l.b16 %v43
    %v200 = vunpack.c.h.b16 %v43
    %v201 = vunpack.c.l.b16 %v44
    %v202 = vunpack.c.h.b16 %v44
    %v203 = vunpack.c.l.b16 %v45
    %v204 = vunpack.c.h.b16 %v45
    %v205 = vunpack.c.l.b16 %v46
    %v206 = vunpack.c.h.b16 %v46
    %v207 = vunpack.c.l.b16 %v47
    %v208 = vunpack.c.h.b16 %v47
    %v209 = vunpack.c.l.b16 %v48
    %v210 = vunpack.c.h.b16 %v48
    %v211 = vunpack.c.l.b16 %v49
    %v212 = vunpack.c.h.b16 %v49
    %v213 = vunpack.c.l.b16 %v50
    %v214 = vunpack.c.h.b16 %v50
    %v215 = vunpack.c.l.b16 %v51
    %v216 = vunpack.c.h.b16 %v51
    %v217 = vunpack.c.l.b16 %v52
    %v218 = vunpack.c.h.b16 %v52
    %v219 = vunpack.c.l.b16 %v53
    %v220 = vunpack.c.h.b16 %v53
    %v221 = vunpack.c.l.b16 %v54
    %v222 = vunpack.c.h.b16 %v54
    %v223 = vunpack.c.l.b16 %v55
    %v224 = vunpack.c.h.b16 %v55
    %v225 = vunpack.c.l.b16 %v56
    %v226 = vunpack.c.h.b16 %v56
    %v227 = vunpack.c.l.b16 %v57
    %v228 = vunpack.c.h.b16 %v57
    %v229 = vunpack.c.l.b16 %v58
    %v230 = vunpack.c.h.b16 %v58
    %v231 = vunpack.c.l.b16 %v59
    %v232 = vunpack.c.h.b16 %v59
    %v233 = vunpack.c.l.b16 %v60
    %v234 = vunpack.c.h.b16 %v60
    %v235 = vunpack.c.l.b16 %v61
    %v236 = vunpack.c.h.b16 %v61
    %v237 = vunpack.c.l.b16 %v62
    %v238 = vunpack.c.h.b16 %v62
    %v239 = vunpack.c.l.b16 %v63
    %v240 = vunpack.c.h.b16 %v63
    %v241 = vunpack.c.l.b16 %v64
    %v242 = vunpack.c.h.b16 %v64
    %v243 = vunpack.c.l.b16 %v65
    %v244 = vunpack.c.h.b16 %v65
    %v245 = vunpack.c.l.b16 %v66
    %v246 = vunpack.c.h.b16 %v66
    %v247 = vunpack.c.l.b16 %v67
    %v248 = vunpack.c.h.b16 %v67
    %v249 = vunpack.c.l.b16 %v68
    %v250 = vunpack.c.h.b16 %v68
    %v251 = vunpack.c.l.b16 %v69
    %v252 = vunpack.c.h.b16 %v69
    %v253 = vunpack.c.l.b16 %v70
    %v254 = vunpack.c.h.b16 %v70
    %v255 = vunpack.c.l.b16 %v71
    %v256 = vunpack.c.h.b16 %v71
    %v257 = vunpack.c.l.b16 %v72
    %v258 = vunpack.c.h.b16 %v72
    %v259 = vunpack.c.l.b16 %v73
    %v260 = vunpack.c.h.b16 %v73
    %v261 = vunpack.c.l.b16 %v74
    %v262 = vunpack.c.h.b16 %v74
    %v263 = vunpack.c.l.b16 %v75
    %v264 = vunpack.c.h.b16 %v75
    %v265 = vunpack.c.l.b16 %v76
    %v266 = vunpack.c.h.b16 %v76
    %v267 = vunpack.c.l.b16 %v77
    %v268 = vunpack.c.h.b16 %v77
    %v269 = vunpack.c.l.b16 %v78
    %v270 = vunpack.c.h.b16 %v78
    %v271 = vpack.c.b16 %v151, %v143
    %v272 = vpack.c.b16 %v152, %v144
    %v273 = vpack.c.b16 %v153, %v145
    %v274 = vpack.c.b16 %v154, %v146
    %v275 = vpack.c.b16 %v155, %v147
    %v276 = vpack.c.b16 %v156, %v148
    %v277 = vpack.c.b16 %v157, %v149
    %v278 = vpack.c.b16 %v158, %v150
    %v279 = vpack.c.b16 %v167, %v159
    %v280 = vpack.c.b16 %v168, %v160
    %v281 = vpack.c.b16 %v169, %v161
    %v282 = vpack.c.b16 %v170, %v162
    %v283 = vpack.c.b16 %v171, %v163
    %v284 = vpack.c.b16 %v172, %v164
    %v285 = vpack.c.b16 %v173, %v165
    %v286 = vpack.c.b16 %v174, %v166
    %v287 = vpack.c.b16 %v183, %v175
    %v288 = vpack.c.b16 %v184, %v176
    %v289 = vpack.c.b16 %v185, %v177
    %v290 = vpack.c.b16 %v186, %v178
    %v291 = vpack.c.b16 %v187, %v179
    %v292 = vpack.c.b16 %v188, %v180
    %v293 = vpack.c.b16 %v189, %v181
    %v294 = vpack.c.b16 %v190, %v182
    %v295 = vpack.c.b16 %v199, %v191
    %v296 = vpack.c.b16 %v200, %v192
    %v297 = vpack.c.b16 %v201, %v193
    %v298 = vpack.c.b16 %v202, %v194
    %v299 = vpack.c.b16 %v203, %v195
    %v300 = vpack.c.b16 %v204, %v196
    %v301 = vpack.c.b16 %v205, %v197
    %v302 = vpack.c.b16 %v206, %v198
    %v303 = vpack.c.b16 %v215, %v207
    %v304 = vpack.c.b16 %v216, %v208
    %v305 = vpack.c.b16 %v217, %v209
    %v306 = vpack.c.b16 %v218, %v210
    %v307 = vpack.c.b16 %v219, %v211
    %v308 = vpack.c.b16 %v220, %v212
    %v309 = vpack.c.b16 %v221, %v213
    %v310 = vpack.c.b16 %v222, %v214
    %v311 = vpack.c.b16 %v231, %v223
    %v312 = vpack.c.b16 %v232, %v224
    %v313 = vpack.c.b16 %v233, %v225
    %v314 = vpack.c.b16 %v234, %v226
    %v315 = vpack.c.b16 %v235, %v227
    %v316 = vpack.c.b16 %v236, %v228
    %v317 = vpack.c.b16 %v237, %v229
    %v318 = vpack.c.b16 %v238, %v230
    %v319 = vpack.c.b16 %v247, %v239
    %v320 = vpack.c.b16 %v248, %v240
    %v321 = vpack.c.b16 %v249, %v241
    %v322 = vpack.c.b16 %v250, %v242
    %v323 = vpack.c.b16 %v251, %v243
    %v324 = vpack.c.b16 %v252, %v244
    %v325 = vpack.c.b16 %v253, %v245
    %v326 = vpack.c.b16 %v254, %v246
    %v327 = vpack.c.b16 %v263, %v255
    %v328 = vpack.c.b16 %v264, %v256
    %v329 = vpack.c.b16 %v265, %v257
    %v330 = vpack.c.b16 %v266, %v258
    %v331 = vpack.c.b16 %v267, %v259
    %v332 = vpack.c.b16 %v268, %v260
    %v333 = vpack.c.b16 %v269, %v261
    %v334 = vpack.c.b16 %v270, %v262
    %399 = vmatprep.subr.bf16.mxu0 %v272
    %400 = vmatpush1.bf16.msra.mxu0 %v271
    %401 = vmatprep.subr.bf16.mxu0 %v280
    %402 = vmatpush1.bf16.msra.mxu0 %v279
    %403 = vmatprep.subr.bf16.mxu0 %v288
    %404 = vmatpush1.bf16.msra.mxu0 %v287
    %405 = vmatprep.subr.bf16.mxu0 %v296
    %406 = vmatpush1.bf16.msra.mxu0 %v295
    %407 = vmatprep.subr.bf16.mxu0 %v304
    %408 = vmatpush1.bf16.msra.mxu0 %v303
    %409 = vmatprep.subr.bf16.mxu0 %v312
    %410 = vmatpush1.bf16.msra.mxu0 %v311
    %411 = vmatprep.subr.bf16.mxu0 %v320
    %412 = vmatpush1.bf16.msra.mxu0 %v319
    %413 = vmatprep.subr.bf16.mxu0 %v328
    %414 = vmatpush1.bf16.msra.mxu0 %v327
    %415 = vmatprep.subr.bf16.mxu0 0
    %416 = vmatpush1.bf16.msra.mxu0 0
    %417 = vmatprep.subr.bf16.mxu0 0
    %418 = vmatpush1.bf16.msra.mxu0 0
    %419 = vmatprep.subr.bf16.mxu0 0
    %420 = vmatpush1.bf16.msra.mxu0 0
    %421 = vmatprep.subr.bf16.mxu0 0
    %422 = vmatpush1.bf16.msra.mxu0 0
    %423 = vmatprep.subr.bf16.mxu0 0
    %424 = vmatpush1.bf16.msra.mxu0 0
    %425 = vmatprep.subr.bf16.mxu0 0
    %426 = vmatpush1.bf16.msra.mxu0 0
    %427 = vmatprep.subr.bf16.mxu0 0
    %428 = vmatpush1.bf16.msra.mxu0 0
    %429 = vmatprep.subr.bf16.mxu0 0
    %430 = vmatpush1.bf16.msra.mxu0 0
    %431 = vmatprep.mubr.bf16.mxu0 0
    %432 = vmatmul.mubr.bf16.gmra.mrb[0].mxu0 %v14
    %v433 = vpop.f32.mrb[0].mxu0
    %v434 = vadd.f32 0.0, %v433
    %v435 = vpop.f32.mrb[0].mxu0
    %v436 = vadd.f32 0.0, %v435
    %v437 = vpop.f32.mrb[0].mxu0
    %v438 = vpop.f32.mrb[0].mxu0
    %439 = vdwg.mxu0
    %440 = vmatprep.subr.bf16.mxu0 %v274
    %441 = vmatpush1.bf16.msra.mxu0 %v273
    %442 = vmatprep.subr.bf16.mxu0 %v282
    %443 = vmatpush1.bf16.msra.mxu0 %v281
    %444 = vmatprep.subr.bf16.mxu0 %v290
    %445 = vmatpush1.bf16.msra.mxu0 %v289
    %446 = vmatprep.subr.bf16.mxu0 %v298
    %447 = vmatpush1.bf16.msra.mxu0 %v297
    %448 = vmatprep.subr.bf16.mxu0 %v306
    %449 = vmatpush1.bf16.msra.mxu0 %v305
    %450 = vmatprep.subr.bf16.mxu0 %v314
    %451 = vmatpush1.bf16.msra.mxu0 %v313
    %452 = vmatprep.subr.bf16.mxu0 %v322
    %453 = vmatpush1.bf16.msra.mxu0 %v321
    %454 = vmatprep.subr.bf16.mxu0 %v330
    %455 = vmatpush1.bf16.msra.mxu0 %v329
    %456 = vmatprep.subr.bf16.mxu0 0
    %457 = vmatpush1.bf16.msra.mxu0 0
    %458 = vmatprep.subr.bf16.mxu0 0
    %459 = vmatpush1.bf16.msra.mxu0 0
    %460 = vmatprep.subr.bf16.mxu0 0
    %461 = vmatpush1.bf16.msra.mxu0 0
    %462 = vmatprep.subr.bf16.mxu0 0
    %463 = vmatpush1.bf16.msra.mxu0 0
    %464 = vmatprep.subr.bf16.mxu0 0
    %465 = vmatpush1.bf16.msra.mxu0 0
    %466 = vmatprep.subr.bf16.mxu0 0
    %467 = vmatpush1.bf16.msra.mxu0 0
    %468 = vmatprep.subr.bf16.mxu0 0
    %469 = vmatpush1.bf16.msra.mxu0 0
    %470 = vmatprep.subr.bf16.mxu0 0
    %471 = vmatpush1.bf16.msra.mxu0 0
    %472 = vmatprep.mubr.bf16.mxu0 0
    %473 = vmatmul.mubr.bf16.gmra.mrb[0].mxu0 %v14
    %v474 = vpop.f32.mrb[0].mxu0
    %v475 = vadd.f32 0.0, %v474
    %v476 = vpop.f32.mrb[0].mxu0
    %v477 = vadd.f32 0.0, %v476
    %v478 = vpop.f32.mrb[0].mxu0
    %v479 = vpop.f32.mrb[0].mxu0
    %480 = vdwg.mxu0
    %481 = vmatprep.subr.bf16.mxu0 %v276
    %482 = vmatpush1.bf16.msra.mxu0 %v275
    %483 = vmatprep.subr.bf16.mxu0 %v284
    %484 = vmatpush1.bf16.msra.mxu0 %v283
    %485 = vmatprep.subr.bf16.mxu0 %v292
    %486 = vmatpush1.bf16.msra.mxu0 %v291
    %487 = vmatprep.subr.bf16.mxu0 %v300
    %488 = vmatpush1.bf16.msra.mxu0 %v299
    %489 = vmatprep.subr.bf16.mxu0 %v308
    %490 = vmatpush1.bf16.msra.mxu0 %v307
    %491 = vmatprep.subr.bf16.mxu0 %v316
    %492 = vmatpush1.bf16.msra.mxu0 %v315
    %493 = vmatprep.subr.bf16.mxu0 %v324
    %494 = vmatpush1.bf16.msra.mxu0 %v323
    %495 = vmatprep.subr.bf16.mxu0 %v332
    %496 = vmatpush1.bf16.msra.mxu0 %v331
    %497 = vmatprep.subr.bf16.mxu0 0
    %498 = vmatpush1.bf16.msra.mxu0 0
    %499 = vmatprep.subr.bf16.mxu0 0
    %500 = vmatpush1.bf16.msra.mxu0 0
    %501 = vmatprep.subr.bf16.mxu0 0
    %502 = vmatpush1.bf16.msra.mxu0 0
    %503 = vmatprep.subr.bf16.mxu0 0
    %504 = vmatpush1.bf16.msra.mxu0 0
    %505 = vmatprep.subr.bf16.mxu0 0
    %506 = vmatpush1.bf16.msra.mxu0 0
    %507 = vmatprep.subr.bf16.mxu0 0
    %508 = vmatpush1.bf16.msra.mxu0 0
    %509 = vmatprep.subr.bf16.mxu0 0
    %510 = vmatpush1.bf16.msra.mxu0 0
    %511 = vmatprep.subr.bf16.mxu0 0
    %512 = vmatpush1.bf16.msra.mxu0 0
    %513 = vmatprep.mubr.bf16.mxu0 0
    %514 = vmatmul.mubr.bf16.gmra.mrb[0].mxu0 %v14
    %v515 = vpop.f32.mrb[0].mxu0
    %v516 = vadd.f32 0.0, %v515
    %v517 = vpop.f32.mrb[0].mxu0
    %v518 = vadd.f32 0.0, %v517
    %v519 = vpop.f32.mrb[0].mxu0
    %v520 = vpop.f32.mrb[0].mxu0
    %521 = vdwg.mxu0
    %522 = vmatprep.subr.bf16.mxu0 %v278
    %523 = vmatpush1.bf16.msra.mxu0 %v277
    %524 = vmatprep.subr.bf16.mxu0 %v286
    %525 = vmatpush1.bf16.msra.mxu0 %v285
    %526 = vmatprep.subr.bf16.mxu0 %v294
    %527 = vmatpush1.bf16.msra.mxu0 %v293
    %528 = vmatprep.subr.bf16.mxu0 %v302
    %529 = vmatpush1.bf16.msra.mxu0 %v301
    %530 = vmatprep.subr.bf16.mxu0 %v310
    %531 = vmatpush1.bf16.msra.mxu0 %v309
    %532 = vmatprep.subr.bf16.mxu0 %v318
    %533 = vmatpush1.bf16.msra.mxu0 %v317
    %534 = vmatprep.subr.bf16.mxu0 %v326
    %535 = vmatpush1.bf16.msra.mxu0 %v325
    %536 = vmatprep.subr.bf16.mxu0 %v334
    %537 = vmatpush1.bf16.msra.mxu0 %v333
    %538 = vmatprep.subr.bf16.mxu0 0
    %539 = vmatpush1.bf16.msra.mxu0 0
    %540 = vmatprep.subr.bf16.mxu0 0
    %541 = vmatpush1.bf16.msra.mxu0 0
    %542 = vmatprep.subr.bf16.mxu0 0
    %543 = vmatpush1.bf16.msra.mxu0 0
    %544 = vmatprep.subr.bf16.mxu0 0
    %545 = vmatpush1.bf16.msra.mxu0 0
    %546 = vmatprep.subr.bf16.mxu0 0
    %547 = vmatpush1.bf16.msra.mxu0 0
    %548 = vmatprep.subr.bf16.mxu0 0
    %549 = vmatpush1.bf16.msra.mxu0 0
    %550 = vmatprep.subr.bf16.mxu0 0
    %551 = vmatpush1.bf16.msra.mxu0 0
    %552 = vmatprep.subr.bf16.mxu0 0
    %553 = vmatpush1.bf16.msra.mxu0 0
    %554 = vmatprep.mubr.bf16.mxu0 0
    %555 = vmatmul.mubr.bf16.gmra.mrb[0].mxu0 %v14
    %v556 = vpop.f32.mrb[0].mxu0
    %v557 = vadd.f32 0.0, %v556
    %v558 = vpop.f32.mrb[0].mxu0
    %v559 = vadd.f32 0.0, %v558
    %v560 = vpop.f32.mrb[0].mxu0
    %v561 = vpop.f32.mrb[0].mxu0
    %562 = vdwg.mxu0
    %v571 = vcombine.low %v434, %v436
    %v572 = vcombine.low %v475, %v477
    %v573 = vcombine.low %v516, %v518
    %v574 = vcombine.low %v557, %v559
    %v576 = vunpack.c.l.s4 1966171168
    %v577 = vunpack.c.0.s8 %v576
    %v578 = vlaneseq
    %v579 = vshrl.u32 %v578, 7
    %v580 = vsub.s32 %v577, %v579
    %v581 = vrot.slane %v571, %v580
    %v583 = vunpack.c.l.s4 1966171168
    %v584 = vunpack.c.0.s8 %v583
    %v585 = vlaneseq
    %v586 = vshrl.u32 %v585, 7
    %v587 = vsub.s32 %v584, %v586
    %v588 = vrot.slane %v572, %v587
    %v590 = vunpack.c.l.s4 1966171168
    %v591 = vunpack.c.0.s8 %v590
    %v592 = vlaneseq
    %v593 = vshrl.u32 %v592, 7
    %v594 = vsub.s32 %v591, %v593
    %v595 = vrot.slane %v573, %v594
    %v597 = vunpack.c.l.s4 1966171168
    %v598 = vunpack.c.0.s8 %v597
    %v599 = vlaneseq
    %v600 = vshrl.u32 %v599, 7
    %v601 = vsub.s32 %v598, %v600
    %v602 = vrot.slane %v574, %v601
    %v603 = vcombine.low %v581, %v588
    %v604 = vcombine.low %v595, %v602
    %v606 = vunpack.c.l.s4 1966171168
    %v607 = vunpack.c.0.s8 %v606
    %v608 = vlaneseq
    %v609 = vshrl.u32 %v608, 7
    %v610 = vsub.s32 %v607, %v609
    %v611 = vrot.slane %v603, %v610
    %v613 = vunpack.c.l.s4 1966171168
    %v614 = vunpack.c.0.s8 %v613
    %v615 = vlaneseq
    %v616 = vshrl.u32 %v615, 7
    %v617 = vsub.s32 %v614, %v616
    %v618 = vrot.slane %v604, %v617
    %v619 = vcombine.low %v611, %v618
    %621 = vst [vmem:[#allocation2] sm:$0xff] %v619
    // Predicated region
    $region10: #{rwkv_forward_pallas.3} parent=1 // pred_check
      _
    $region11: #{rwkv_forward_pallas.3} parent=1 // pred_check_branch
      %623 = sbr.rel (0) target = $region13
    $region12: #{rwkv_forward_pallas.3} parent=1 // pred_region
      %s625 = ssub.s32 128, 128
      %626 = vsyncadd [#allocation3], %s625
      %s628 = sshll.u32 [#allocation2], 4
      %s629 = int_to_ptr.vmem [resolvable:$true] %s628
      %631 = dma.vmem_to_hbm [thread:$0]  %s629, 128, %s2, [#allocation3]
    $region13: #{rwkv_forward_pallas.3} parent=1 // pred_fallthru
      _
    // Predicated region
    $region14: #{rwkv_forward_pallas.3} parent=1 // pred_check
      _
    $region15: #{rwkv_forward_pallas.3} parent=1 // pred_check_branch
      %633 = sbr.rel (0) target = $region17
    $region16: #{rwkv_forward_pallas.3} parent=1 // pred_region
      %634 = dma.done [#allocation3], 128
    $region17: #{rwkv_forward_pallas.3} parent=1 // pred_fallthru
      _
    %635 = vsyncpa [#allocation3], 1

// kernel: rwkv_forward_pallas.2
$region0: #{rwkv_forward_pallas.2}
  #allocation0 [shape = 'u32[]', space=smem, size = 0x4, offset = 0x4, fixed_abs, tag = 'smem constant byte address 0x4 - core index']
  #allocation1 [shape = 'u32[144,128]{1,0:T(1,128)}', space=vmem, size = 0x12000, scoped, tag = 'internal scratch']
  #allocation2 [shape = 'f32[16,128]{1,0:T(8,128)}', space=vmem, size = 0x2000, scoped, tag = 'scratch operand']
  #allocation3 [shape = 'f32[16,128]{1,0:T(8,128)}', space=vmem, size = 0x2000, scoped, tag = 'scratch operand']
  #allocation4 [shape = 'f32[16,128]{1,0:T(8,128)}', space=vmem, size = 0x2000, scoped, tag = 'scratch operand']
  #allocation5 [shape = 'bf16[2,128,128]{2,1,0:T(16,128)(2,1)}', space=vmem, size = 0x10000, scoped, tag = 'scratch operand']
  #allocation6 [shape = 'bf16[2,128,512]{2,1,0:T(16,128)(2,1)}', space=vmem, size = 0x40000, scoped, tag = 'scratch operand']
  #allocation7 [shape = 'bf16[2,512,128]{2,1,0:T(16,128)(2,1)}', space=vmem, size = 0x40000, scoped, tag = 'scratch operand']
  #allocation8 [shape = 's32[2]{0}', space=sflag, size = 0x8, scoped, tag = 'scratch operand']
  #allocation9 [shape = 's32[2]{0}', space=sflag, size = 0x8, scoped, tag = 'scratch operand']
  #allocation10 [shape = 's32[2]{0}', space=sflag, size = 0x8, scoped, tag = 'scratch operand']
  #allocation11 [shape = 's32[]', space=sflag, size = 0x4, offset = 0, fixed_abs, tag = 'sflag constant byte address 0x0 - dummy sync flag']
  #allocation12 [shape = 's32[]', space=sflag, size = 0x4, offset = 0, fixed_abs, tag = 'sflag constant byte address 0x0 - dummy sync flag']
  #allocation13 [shape = 's32[]', space=sflag, size = 0x4, offset = 0, fixed_abs, tag = 'sflag constant byte address 0x0 - dummy sync flag']
  #allocation14 [shape = 'u32[]', space=smem, size = 0x4, offset = 0x44, fixed_abs, tag = 'smem constant byte address 0x44 - assertion arg 0']
  #allocation15 [shape = 'u32[]', space=smem, size = 0x4, offset = 0x48, fixed_abs, tag = 'smem constant byte address 0x48 - assertion arg 1']
  #allocation16 [shape = 's32[]', space=sflag, size = 0x4, offset = 0, fixed_abs, tag = 'sflag constant byte address 0x0 - dummy sync flag']
  #allocation17 [shape = 's32[]', space=sflag, size = 0x4, offset = 0, fixed_abs, tag = 'sflag constant byte address 0x0 - dummy sync flag']
  #allocation18 [shape = 's32[]', space=sflag, size = 0x4, offset = 0, fixed_abs, tag = 'sflag constant byte address 0x0 - dummy sync flag']
  #allocation20 [shape = 's32[]', space=sflag, size = 0x4, offset = 0, fixed_abs, tag = 'sflag constant byte address 0x0 - dummy sync flag']
  #allocation21 [shape = 's32[]', space=sflag, size = 0x4, offset = 0, fixed_abs, tag = 'sflag constant byte address 0x0 - dummy sync flag']
  #allocation22 [shape = 's32[]', space=sflag, size = 0x4, offset = 0, fixed_abs, tag = 'sflag constant byte address 0x0 - dummy sync flag']
  #allocation23 [shape = 's32[]', space=sflag, size = 0x4, offset = 0, fixed_abs, tag = 'sflag constant byte address 0x0 - dummy sync flag']
  #allocation24 [shape = 's32[]', space=sflag, size = 0x4, offset = 0, fixed_abs, tag = 'sflag constant byte address 0x0 - dummy sync flag']
  #allocation25 [shape = 's32[]', space=sflag, size = 0x4, offset = 0, fixed_abs, tag = 'sflag constant byte address 0x0 - dummy sync flag']
  %s0 = inlined_call_operand.vmem [shape: f32[16,128], index: 0, kind: input, shape index: {}, may-alias: {0,13}]
  %s1 = inlined_call_operand.vmem [shape: f32[2,5,128], index: 1, kind: input, shape index: {}]
  %s2 = inlined_call_operand.vmem [shape: f32[2,4,128], index: 2, kind: input, shape index: {}]
  %s3 = inlined_call_operand.vmem [shape: f32[2,3,128], index: 3, kind: input, shape index: {}]
  %s4 = inlined_call_operand.vmem [shape: f32[2,2,128], index: 4, kind: input, shape index: {}]
  %s5 = inlined_call_operand.vmem [shape: f32[2,2,128], index: 5, kind: input, shape index: {}]
  %s6 = inlined_call_operand.vmem [shape: bf16[2,128,128], index: 6, kind: input, shape index: {}]
  %s7 = inlined_call_operand.hbm [shape: bf16[2,128,128], index: 7, kind: input, shape index: {}]
  %s8 = inlined_call_operand.hbm [shape: bf16[2,128,128], index: 8, kind: input, shape index: {}]
  %s9 = inlined_call_operand.hbm [shape: bf16[2,128,128], index: 9, kind: input, shape index: {}]
  %s10 = inlined_call_operand.hbm [shape: bf16[2,128,512], index: 10, kind: input, shape index: {}]
  %s11 = inlined_call_operand.hbm [shape: bf16[2,512,128], index: 11, kind: input, shape index: {}]
  %s12 = inlined_call_operand.hbm [shape: bf16[2,128,128], index: 12, kind: input, shape index: {}]
  %s13 = inlined_call_operand.vmem [shape: f32[16,128], index: 13, kind: output, shape index: {0}, may-alias: {0,13}]
  %s14 = inlined_call_operand.vmem [shape: f32[2,5,128], index: 14, kind: output, shape index: {1}]
  %15 = xla_tuple %s13, %s14
  %s16 = sld [smem:[#allocation0]]
  $region130: #{rwkv_forward_pallas.2} parent=0
    _
  %s18 = ssub.s32 1, %s16
  %s19 = scalar_select 0, %s18, %s16
  loop: start=0, step=1, limit=4
  $region2: #{rwkv_forward_pallas.2} parent=0 // loop_pre_header
    _
  $region3: #{rwkv_forward_pallas.2} parent=0 // loop_header
    %s21 = sphi 0, %s25
    %p22 = scmp.ge.s32.totalorder %s21, 4
    %s29 = sphi 0, %s29
    %s31 = sphi 0, %s29
    %s32 = sphi 0, %s31
    %s46 = sphi 0, %s32
    %s52 = sphi 0, %s54
    %s55 = sphi 0, %s52
    %s56 = sphi 0, %s55
    %s72 = sphi 0, %s56
    %s78 = sphi 0, %s80
    %s81 = sphi 0, %s78
    %s82 = sphi 0, %s81
    %s98 = sphi 0, %s82
    %s104 = sphi 0, %s106
    %s107 = sphi 0, %s104
    %s108 = sphi 0, %s107
    %s124 = sphi 0, %s108
    %s130 = sphi 0, %s132
    %s133 = sphi 0, %s130
    %s134 = sphi 0, %s133
    %s150 = sphi 0, %s134
    %s156 = sphi 0, %s158
    %s159 = sphi 0, %s156
    %s160 = sphi 0, %s159
    %s176 = sphi 0, %s160
    %s180 = sphi 0, %s180
    %s182 = sphi 0, %s180
    %s183 = sphi 0, %s182
    %s197 = sphi 0, %s183
    %s203 = sphi 0, %s205
    %s206 = sphi 0, %s203
    %s207 = sphi 0, %s206
    %s223 = sphi 0, %s207
  $region4: #{rwkv_forward_pallas.2} parent=0 // loop_header_branch
    %24 = sbr.rel (%p22) target = $region8
  $region5: #{rwkv_forward_pallas.2} parent=0 // loop_body
    %s26 = ssub.s32 %s21, 1
    %s27 = ssub.s32 %s21, 2
    %s28 = sadd.s32 %s21, 1
    %s30 = sadd.s32 %s29, 1
    %p33 = scmp.eq.s32.totalorder %s21, 1
    %p34 = scmp.ne.s32.totalorder %s29, %s31
    %p35 = scmp.eq.s32.totalorder %s21, 0
    %p36 = por %p34, %p35
    %p37 = scmp.ne.s32.totalorder %s29, %s31
    %p38 = scmp.eq.s32.totalorder %s26, 1
    %p39 = por %p37, %p38
    %p40 = scmp.ne.s32.totalorder %s31, %s32
    %p41 = scmp.eq.s32.totalorder %s26, 0
    %p42 = por %p40, %p41
    %p43 = scmp.ne.s32.totalorder %s31, %s32
    %p44 = scmp.eq.s32.totalorder %s27, 1
    %p45 = por %p43, %p44
    %p47 = scmp.ne.s32.totalorder %s32, %s46
    %p48 = scmp.eq.s32.totalorder %s27, 0
    %p49 = por %p47, %p48
    %s50 = ssub.s32 %s21, %s28
    %p51 = scmp.eq.s32.totalorder %s50, 0
    %s53 = sadd.s32 %s52, 1
    %s54 = scalar_select %p51, %s52, %s53
    %p57 = pneg %p51
    %p58 = scmp.eq.s32.totalorder %s21, 1
    %p59 = por %p57, %p58
    %p60 = scmp.ne.s32.totalorder %s52, %s55
    %p61 = scmp.eq.s32.totalorder %s21, 0
    %p62 = por %p60, %p61
    %p63 = scmp.ne.s32.totalorder %s52, %s55
    %p64 = scmp.eq.s32.totalorder %s26, 1
    %p65 = por %p63, %p64
    %p66 = scmp.ne.s32.totalorder %s55, %s56
    %p67 = scmp.eq.s32.totalorder %s26, 0
    %p68 = por %p66, %p67
    %p69 = scmp.ne.s32.totalorder %s55, %s56
    %p70 = scmp.eq.s32.totalorder %s27, 1
    %p71 = por %p69, %p70
    %p73 = scmp.ne.s32.totalorder %s56, %s72
    %p74 = scmp.eq.s32.totalorder %s27, 0
    %p75 = por %p73, %p74
    %s76 = ssub.s32 %s21, %s28
    %p77 = scmp.eq.s32.totalorder %s76, 0
    %s79 = sadd.s32 %s78, 1
    %s80 = scalar_select %p77, %s78, %s79
    %p83 = pneg %p77
    %p84 = scmp.eq.s32.totalorder %s21, 1
    %p85 = por %p83, %p84
    %p86 = scmp.ne.s32.totalorder %s78, %s81
    %p87 = scmp.eq.s32.totalorder %s21, 0
    %p88 = por %p86, %p87
    %p89 = scmp.ne.s32.totalorder %s78, %s81
    %p90 = scmp.eq.s32.totalorder %s26, 1
    %p91 = por %p89, %p90
    %p92 = scmp.ne.s32.totalorder %s81, %s82
    %p93 = scmp.eq.s32.totalorder %s26, 0
    %p94 = por %p92, %p93
    %p95 = scmp.ne.s32.totalorder %s81, %s82
    %p96 = scmp.eq.s32.totalorder %s27, 1
    %p97 = por %p95, %p96
    %p99 = scmp.ne.s32.totalorder %s82, %s98
    %p100 = scmp.eq.s32.totalorder %s27, 0
    %p101 = por %p99, %p100
    %s102 = ssub.s32 %s21, %s28
    %p103 = scmp.eq.s32.totalorder %s102, 0
    %s105 = sadd.s32 %s104, 1
    %s106 = scalar_select %p103, %s104, %s105
    %p109 = pneg %p103
    %p110 = scmp.eq.s32.totalorder %s21, 1
    %p111 = por %p109, %p110
    %p112 = scmp.ne.s32.totalorder %s104, %s107
    %p113 = scmp.eq.s32.totalorder %s21, 0
    %p114 = por %p112, %p113
    %p115 = scmp.ne.s32.totalorder %s104, %s107
    %p116 = scmp.eq.s32.totalorder %s26, 1
    %p117 = por %p115, %p116
    %p118 = scmp.ne.s32.totalorder %s107, %s108
    %p119 = scmp.eq.s32.totalorder %s26, 0
    %p120 = por %p118, %p119
    %p121 = scmp.ne.s32.totalorder %s107, %s108
    %p122 = scmp.eq.s32.totalorder %s27, 1
    %p123 = por %p121, %p122
    %p125 = scmp.ne.s32.totalorder %s108, %s124
    %p126 = scmp.eq.s32.totalorder %s27, 0
    %p127 = por %p125, %p126
    %s128 = ssub.s32 %s21, %s28
    %p129 = scmp.eq.s32.totalorder %s128, 0
    %s131 = sadd.s32 %s130, 1
    %s132 = scalar_select %p129, %s130, %s131
    %p135 = pneg %p129
    %p136 = scmp.eq.s32.totalorder %s21, 1
    %p137 = por %p135, %p136
    %p138 = scmp.ne.s32.totalorder %s130, %s133
    %p139 = scmp.eq.s32.totalorder %s21, 0
    %p140 = por %p138, %p139
    %p141 = scmp.ne.s32.totalorder %s130, %s133
    %p142 = scmp.eq.s32.totalorder %s26, 1
    %p143 = por %p141, %p142
    %p144 = scmp.ne.s32.totalorder %s133, %s134
    %p145 = scmp.eq.s32.totalorder %s26, 0
    %p146 = por %p144, %p145
    %p147 = scmp.ne.s32.totalorder %s133, %s134
    %p148 = scmp.eq.s32.totalorder %s27, 1
    %p149 = por %p147, %p148
    %p151 = scmp.ne.s32.totalorder %s134, %s150
    %p152 = scmp.eq.s32.totalorder %s27, 0
    %p153 = por %p151, %p152
    %s154 = ssub.s32 %s21, %s28
    %p155 = scmp.eq.s32.totalorder %s154, 0
    %s157 = sadd.s32 %s156, 1
    %s158 = scalar_select %p155, %s156, %s157
    %p161 = pneg %p155
    %p162 = scmp.eq.s32.totalorder %s21, 1
    %p163 = por %p161, %p162
    %p164 = scmp.ne.s32.totalorder %s156, %s159
    %p165 = scmp.eq.s32.totalorder %s21, 0
    %p166 = por %p164, %p165
    %p167 = scmp.ne.s32.totalorder %s156, %s159
    %p168 = scmp.eq.s32.totalorder %s26, 1
    %p169 = por %p167, %p168
    %p170 = scmp.ne.s32.totalorder %s159, %s160
    %p171 = scmp.eq.s32.totalorder %s26, 0
    %p172 = por %p170, %p171
    %p173 = scmp.ne.s32.totalorder %s159, %s160
    %p174 = scmp.eq.s32.totalorder %s27, 1
    %p175 = por %p173, %p174
    %p177 = scmp.ne.s32.totalorder %s160, %s176
    %p178 = scmp.eq.s32.totalorder %s27, 0
    %p179 = por %p177, %p178
    %s181 = sadd.s32 %s180, 1
    %p184 = scmp.eq.s32.totalorder %s21, 1
    %p185 = scmp.ne.s32.totalorder %s180, %s182
    %p186 = scmp.eq.s32.totalorder %s21, 0
    %p187 = por %p185, %p186
    %p188 = scmp.ne.s32.totalorder %s180, %s182
    %p189 = scmp.eq.s32.totalorder %s26, 1
    %p190 = por %p188, %p189
    %p191 = scmp.ne.s32.totalorder %s182, %s183
    %p192 = scmp.eq.s32.totalorder %s26, 0
    %p193 = por %p191, %p192
    %p194 = scmp.ne.s32.totalorder %s182, %s183
    %p195 = scmp.eq.s32.totalorder %s27, 1
    %p196 = por %p194, %p195
    %p198 = scmp.ne.s32.totalorder %s183, %s197
    %p199 = scmp.eq.s32.totalorder %s27, 0
    %p200 = por %p198, %p199
    %s201 = ssub.s32 %s21, %s28
    %p202 = scmp.eq.s32.totalorder %s201, 0
    %s204 = sadd.s32 %s203, 1
    %s205 = scalar_select %p202, %s203, %s204
    %p208 = pneg %p202
    %p209 = scmp.eq.s32.totalorder %s21, 1
    %p210 = por %p208, %p209
    %p211 = scmp.ne.s32.totalorder %s203, %s206
    %p212 = scmp.eq.s32.totalorder %s21, 0
    %p213 = por %p211, %p212
    %p214 = scmp.ne.s32.totalorder %s203, %s206
    %p215 = scmp.eq.s32.totalorder %s26, 1
    %p216 = por %p214, %p215
    %p217 = scmp.ne.s32.totalorder %s206, %s207
    %p218 = scmp.eq.s32.totalorder %s26, 0
    %p219 = por %p217, %p218
    %p220 = scmp.ne.s32.totalorder %s206, %s207
    %p221 = scmp.eq.s32.totalorder %s27, 1
    %p222 = por %p220, %p221
    %p224 = scmp.ne.s32.totalorder %s207, %s223
    %p225 = scmp.eq.s32.totalorder %s27, 0
    %p226 = por %p224, %p225
    %p227 = scmp.le.s32.totalorder 1, %s21
    %p228 = scmp.lt.s32.totalorder %s21, 3
    %p229 = pnand %p227, %p228
    %p230 = pneg %p229
    // Predicated region
    $region9: #{rwkv_forward_pallas.2} parent=5 // pred_check
      _
    $region10: #{rwkv_forward_pallas.2} parent=5 // pred_check_branch
      %232 = sbr.rel (%p229) target = $region12
    $region11: #{rwkv_forward_pallas.2} parent=5 // pred_region
      %s233 = ssub.s32 %s21, 1
      // Predicated region
      $region13: #{rwkv_forward_pallas.2} parent=11 // pred_check
        %p234 = pneg %p42
      $region14: #{rwkv_forward_pallas.2} parent=11 // pred_check_branch
        %236 = sbr.rel (%p234) target = $region16
      $region15: #{rwkv_forward_pallas.2} parent=11 // pred_region
        _
      $region16: #{rwkv_forward_pallas.2} parent=11 // pred_fallthru
        _
    $region12: #{rwkv_forward_pallas.2} parent=5 // pred_fallthru
      _
    %p237 = scmp.lt.s32.totalorder %s21, 2
    // Predicated region
    $region17: #{rwkv_forward_pallas.2} parent=5 // pred_check
      %p238 = pneg %p237
    $region18: #{rwkv_forward_pallas.2} parent=5 // pred_check_branch
      %240 = sbr.rel (%p238) target = $region20
    $region19: #{rwkv_forward_pallas.2} parent=5 // pred_region
      // Predicated region
      $region21: #{rwkv_forward_pallas.2} parent=19 // pred_check
        %p241 = pneg %p62
      $region22: #{rwkv_forward_pallas.2} parent=19 // pred_check_branch
        %243 = sbr.rel (%p241) target = $region24
      $region23: #{rwkv_forward_pallas.2} parent=19 // pred_region
        %p244 = scmp.lt.s32.totalorder %s21, 1
        %s245 = scalar_select %p244, %s21, 1
        %s246 = smul.addr %s245, 8
        %s247 = scalar_lea.vmem %s1, %s246
      $region24: #{rwkv_forward_pallas.2} parent=19 // pred_fallthru
        _
      // Predicated region
      $region25: #{rwkv_forward_pallas.2} parent=19 // pred_check
        %p248 = pneg %p88
      $region26: #{rwkv_forward_pallas.2} parent=19 // pred_check_branch
        %250 = sbr.rel (%p248) target = $region28
      $region27: #{rwkv_forward_pallas.2} parent=19 // pred_region
        %p251 = scmp.lt.s32.totalorder %s21, 1
        %s252 = scalar_select %p251, %s21, 1
        %s253 = smul.addr %s252, 4
        %s254 = scalar_lea.vmem %s2, %s253
      $region28: #{rwkv_forward_pallas.2} parent=19 // pred_fallthru
        _
      // Predicated region
      $region29: #{rwkv_forward_pallas.2} parent=19 // pred_check
        %p255 = pneg %p114
      $region30: #{rwkv_forward_pallas.2} parent=19 // pred_check_branch
        %257 = sbr.rel (%p255) target = $region32
      $region31: #{rwkv_forward_pallas.2} parent=19 // pred_region
        %p258 = scmp.lt.s32.totalorder %s21, 1
        %s259 = scalar_select %p258, %s21, 1
        %s260 = smul.addr %s259, 4
        %s261 = scalar_lea.vmem %s3, %s260
      $region32: #{rwkv_forward_pallas.2} parent=19 // pred_fallthru
        _
      // Predicated region
      $region33: #{rwkv_forward_pallas.2} parent=19 // pred_check
        %p262 = pneg %p140
      $region34: #{rwkv_forward_pallas.2} parent=19 // pred_check_branch
        %264 = sbr.rel (%p262) target = $region36
      $region35: #{rwkv_forward_pallas.2} parent=19 // pred_region
        %p265 = scmp.lt.s32.totalorder %s21, 1
        %s266 = scalar_select %p265, %s21, 1
        %s267 = smul.addr %s266, 2
        %s268 = scalar_lea.vmem %s4, %s267
      $region36: #{rwkv_forward_pallas.2} parent=19 // pred_fallthru
        _
      // Predicated region
      $region37: #{rwkv_forward_pallas.2} parent=19 // pred_check
        %p269 = pneg %p166
      $region38: #{rwkv_forward_pallas.2} parent=19 // pred_check_branch
        %271 = sbr.rel (%p269) target = $region40
      $region39: #{rwkv_forward_pallas.2} parent=19 // pred_region
        %p272 = scmp.lt.s32.totalorder %s21, 1
        %s273 = scalar_select %p272, %s21, 1
        %s274 = smul.addr %s273, 2
        %s275 = scalar_lea.vmem %s5, %s274
      $region40: #{rwkv_forward_pallas.2} parent=19 // pred_fallthru
        _
    $region20: #{rwkv_forward_pallas.2} parent=5 // pred_fallthru
      _
    %p276 = scmp.le.s32.totalorder 1, %s21
    %p277 = scmp.lt.s32.totalorder %s21, 3
    %p278 = pnand %p276, %p277
    %p279 = pneg %p278
    // Predicated region
    $region41: #{rwkv_forward_pallas.2} parent=5 // pred_check
      _
    $region42: #{rwkv_forward_pallas.2} parent=5 // pred_check_branch
      %281 = sbr.rel (%p278) target = $region44
    $region43: #{rwkv_forward_pallas.2} parent=5 // pred_region
      #allocation19 [shape = 'u32[9]{0}', space=smem, size = 0x24, scoped, tag = 'DMA stride descriptor']
      %s282 = ssub.s32 %s21, 1
      %p283 = pneg %p42
      %p284 = pneg %p39
      %p285 = scmp.lt.s32.totalorder %s26, 1
      %s286 = scalar_select %p285, %s26, 1
      %s287 = smul.addr %s286, 8
      %s288 = scalar_lea.vmem %s1, %s287
      %p289 = pneg %p68
      %p290 = pneg %p65
      %p291 = scmp.lt.s32.totalorder %s26, 1
      %s292 = scalar_select %p291, %s26, 1
      %s293 = smul.addr %s292, 4
      %s294 = scalar_lea.vmem %s2, %s293
      %p295 = pneg %p94
      %p296 = pneg %p91
      %p297 = scmp.lt.s32.totalorder %s26, 1
      %s298 = scalar_select %p297, %s26, 1
      %s299 = smul.addr %s298, 4
      %s300 = scalar_lea.vmem %s3, %s299
      %p301 = pneg %p120
      %p302 = pneg %p117
      %p303 = scmp.lt.s32.totalorder %s26, 1
      %s304 = scalar_select %p303, %s26, 1
      %s305 = smul.addr %s304, 2
      %s306 = scalar_lea.vmem %s4, %s305
      %p307 = pneg %p146
      %p308 = pneg %p143
      %p309 = scmp.lt.s32.totalorder %s26, 1
      %s310 = scalar_select %p309, %s26, 1
      %s311 = smul.addr %s310, 2
      %s312 = scalar_lea.vmem %s5, %s311
      %p313 = pneg %p172
      %p314 = pneg %p169
      %p315 = pneg %p193
      %p316 = pneg %p190
      %p317 = pneg %p219
      %p318 = pneg %p216
      %p319 = scmp.lt.s32.totalorder %s26, 1
      %s320 = scalar_select %p319, %s26, 1
      %s321 = smul.addr %s320, 8
      %s322 = scalar_lea.vmem %s14, %s321
      %p323 = scmp.lt.s32.totalorder %s26, 1
      %s324 = scalar_select %p323, %s26, 1
      %s325 = smul.addr %s324, 8
      %s326 = scalar_lea.vmem %s1, %s325
      %p327 = scmp.lt.s32.totalorder %s26, 1
      %s328 = scalar_select %p327, %s26, 1
      %s329 = smul.addr %s328, 4
      %s330 = scalar_lea.vmem %s2, %s329
      %p331 = scmp.lt.s32.totalorder %s26, 1
      %s332 = scalar_select %p331, %s26, 1
      %s333 = smul.addr %s332, 4
      %s334 = scalar_lea.vmem %s3, %s333
      %p335 = scmp.lt.s32.totalorder %s26, 1
      %s336 = scalar_select %p335, %s26, 1
      %s337 = smul.addr %s336, 2
      %s338 = scalar_lea.vmem %s4, %s337
      %p339 = scmp.lt.s32.totalorder %s26, 1
      %s340 = scalar_select %p339, %s26, 1
      %s341 = smul.addr %s340, 2
      %s342 = scalar_lea.vmem %s5, %s341
      %p343 = scmp.lt.s32.totalorder %s26, 1
      %s344 = scalar_select %p343, %s26, 1
      %s345 = smul.addr %s344, 8
      %s346 = scalar_lea.vmem %s14, %s345
      %p348 = scmp.eq.s32.totalorder %s26, 0
      // Predicated region
      $region45: #{rwkv_forward_pallas.2} parent=43 // pred_check
        %p349 = pneg %p348
      $region46: #{rwkv_forward_pallas.2} parent=43 // pred_check_branch
        %351 = sbr.rel (%p349) target = $region48
      $region47: #{rwkv_forward_pallas.2} parent=43 // pred_region
        %v352 = vld [vmem:[%s0] sm:$0xff]
        %v353 = vld [vmem:[%s0 + $0x8] sm:$0xff]
        %354 = vst [vmem:[%s13] sm:$0xff] %v352
        %355 = vst [vmem:[%s13 + $0x8] sm:$0xff] %v353
      $region48: #{rwkv_forward_pallas.2} parent=43 // pred_fallthru
        _
      %v356 = vld [vmem:[%s13] sm:$0xff]
      %v357 = vld [vmem:[%s13 + $0x8] sm:$0xff]
      %v358 = vlaneseq
      %v359 = vshrl.u32 %v358, 7
      %v360 = vadd.s32 %v359, 8
      %vm361 = vcmp.eq.s32.totalorder %v359, 0
      %vm362 = vcmp.eq.s32.totalorder %v360, 0
      %v363 = vld [vmem:[%s330] sm:$0x1]
      %v364 = vld [vmem:[%s330 + $0x1] sm:$0x1]
      %365 = vadd.xlane.f32.xlu0 %v356
      %v366 = vpop.xlane.xlu0 %365
      %367 = vadd.xlane.f32.xlu0 %v357
      %v368 = vpop.xlane.xlu0 %367
      %v369 = vrcp.pop 128.0
      %v370 = vmul.f32 %v366, %v369
      %v371 = vmul.f32 %v368, %v369
      %v372 = vsub.f32 %v356, %v370
      %v373 = vsub.f32 %v357, %v371
      %v374 = vmul.f32 %v372, %v372
      %v375 = vmul.f32 %v373, %v373
      %376 = vadd.xlane.f32.xlu0 %v374
      %v377 = vpop.xlane.xlu0 %376
      %378 = vadd.xlane.f32.xlu0 %v375
      %v379 = vpop.xlane.xlu0 %378
      %v380 = vmul.f32 %v377, %v369
      %v381 = vmul.f32 %v379, %v369
      %v382 = vadd.f32 %v380, 1e-05
      %v383 = vadd.f32 %v381, 1e-05
      %v384 = vrsqrt.pop %v382
      %v385 = vrsqrt.pop %v383
      %v386 = vmul.f32 %v372, %v384
      %v387 = vmul.f32 %v373, %v385
      %v388 = vlaneseq
      %v389 = vshrl.u32 %v388, 7
      %v390 = vsub.s32 0, %v389
      %v391 = vrot.slane %v363, %v390
      %v392 = vmul.f32 %v386, %v391
      %v393 = vmul.f32 %v387, %v391
      %v394 = vlaneseq
      %v395 = vshrl.u32 %v394, 7
      %v396 = vsub.s32 0, %v395
      %v397 = vrot.slane %v364, %v396
      %v398 = vadd.f32 %v392, %v397
      %v399 = vadd.f32 %v393, %v397
      %v400 = vld [vmem:[%s326 + $0x1] sm:$0x1]
      %v401 = vrot.slane %v398, 7
      %v402 = vrot.slane %v399, 7
      %vm403 = vcmp.lt.s32.totalorder %v359, 1
      %v404 = vsel %vm403, %v401, %v402
      %v405 = vsel %vm403, %v402, %v401
      %v406 = vlaneseq
      %v407 = vshrl.u32 %v406, 7
      %v408 = vsub.s32 0, %v407
      %v409 = vrot.slane %v400, %v408
      %v410 = vsel %vm361, %v409, %v405
      %v411 = vsel %vm362, %v409, %v404
      %v412 = vsub.f32 %v398, %v410
      %v413 = vsub.f32 %v399, %v411
      %v414 = vld [vmem:[%s334] sm:$0x1]
      %v415 = vlaneseq
      %v416 = vshrl.u32 %v415, 7
      %v417 = vsub.s32 0, %v416
      %v418 = vrot.slane %v414, %v417
      %v419 = vmul.f32 %v412, %v418
      %v420 = vmul.f32 %v413, %v418
      %v421 = vadd.f32 %v410, %v419
      %v422 = vadd.f32 %v411, %v420
      %v423 = vpack.c.bf16 %v422, %v421
      %v424 = vld [vmem:[%s334 + $0x1] sm:$0x1]
      %v425 = vlaneseq
      %v426 = vshrl.u32 %v425, 7
      %v427 = vsub.s32 0, %v426
      %v428 = vrot.slane %v424, %v427
      %v429 = vmul.f32 %v412, %v428
      %v430 = vmul.f32 %v413, %v428
      %v431 = vadd.f32 %v410, %v429
      %v432 = vadd.f32 %v411, %v430
      %v433 = vpack.c.bf16 %v432, %v431
      %v434 = vld [vmem:[%s334 + $0x2] sm:$0x1]
      %v435 = vlaneseq
      %v436 = vshrl.u32 %v435, 7
      %v437 = vsub.s32 0, %v436
      %v438 = vrot.slane %v434, %v437
      %v439 = vmul.f32 %v412, %v438
      %v440 = vmul.f32 %v413, %v438
      %v441 = vadd.f32 %v410, %v439
      %v442 = vadd.f32 %v411, %v440
      %v443 = vpack.c.bf16 %v442, %v441
      %444 = vst [vmem:[%s346 - $0x6] sm:$0x80] %v399
      %s445 = smul.u32 %s26, 16
      %s446 = smul.addr %s445, 4
      %s447 = scalar_lea.vmem %s6, %s446
      %p449 = scmp.lt.u32.totalorder 64, 8
      %p450 = pneg %p449
      // Predicated region
      $region49: #{rwkv_forward_pallas.2} parent=43 // pred_check
        _
      $region50: #{rwkv_forward_pallas.2} parent=43 // pred_check_branch
        %452 = sbr.rel (%p449) target = $region52
      $region51: #{rwkv_forward_pallas.2} parent=43 // pred_region
        %s467 = sand.u32 64, 7
        %p468 = scmp.eq.s32.totalorder %s467, 0
        // Predicated region
        $region64: #{rwkv_forward_pallas.2} parent=51 // pred_check
          %p469 = pneg %p468
        $region65: #{rwkv_forward_pallas.2} parent=51 // pred_check_branch
          %471 = sbr.rel (%p469) target = $region67
        $region66: #{rwkv_forward_pallas.2} parent=51 // pred_region
          loop: start=0, step=1, limit=1
          $region68: #{rwkv_forward_pallas.2} parent=66 // loop_pre_header
            _
          $region69: #{rwkv_forward_pallas.2} parent=66 // loop_header
            %s473 = sphi 0, %s477
            %p474 = scmp.ge.s32.totalorder %s473, 1
            %s478 = sphi %s447, %s447
            %s479 = sphi [#allocation5], [#allocation5]
          $region70: #{rwkv_forward_pallas.2} parent=66 // loop_header_branch
            %476 = sbr.rel (%p474) target = $region74
          $region71: #{rwkv_forward_pallas.2} parent=66 // loop_body
            %v480 = vld [vmem:[%s478] sm:$0xff]
            %481 = vst [vmem:[%s479] sm:$0xff] %v480
            %v482 = vld [vmem:[%s478 + $0x8] sm:$0xff]
            %483 = vst [vmem:[%s479 + $0x8] sm:$0xff] %v482
            %v484 = vld [vmem:[%s478 + $0x10] sm:$0xff]
            %485 = vst [vmem:[%s479 + $0x10] sm:$0xff] %v484
            %v486 = vld [vmem:[%s478 + $0x18] sm:$0xff]
            %487 = vst [vmem:[%s479 + $0x18] sm:$0xff] %v486
            %v488 = vld [vmem:[%s478 + $0x20] sm:$0xff]
            %489 = vst [vmem:[%s479 + $0x20] sm:$0xff] %v488
            %v490 = vld [vmem:[%s478 + $0x28] sm:$0xff]
            %491 = vst [vmem:[%s479 + $0x28] sm:$0xff] %v490
            %v492 = vld [vmem:[%s478 + $0x30] sm:$0xff]
            %493 = vst [vmem:[%s479 + $0x30] sm:$0xff] %v492
            %v494 = vld [vmem:[%s478 + $0x38] sm:$0xff]
            %495 = vst [vmem:[%s479 + $0x38] sm:$0xff] %v494
          $region72: #{rwkv_forward_pallas.2} parent=66 // loop_footer
            %s477 = sadd.s32 1, %s473
          $region73: #{rwkv_forward_pallas.2} parent=66 // loop_footer_branch
            %472 = sbr.rel target = $region69
          $region74: #{rwkv_forward_pallas.2} parent=66 // loop_exit
            _
        $region67: #{rwkv_forward_pallas.2} parent=51 // pred_fallthru
          _
        %p496 = pneg %p468
        // Predicated region
        $region75: #{rwkv_forward_pallas.2} parent=51 // pred_check
          _
        $region76: #{rwkv_forward_pallas.2} parent=51 // pred_check_branch
          %498 = sbr.rel (%p468) target = $region78
        $region77: #{rwkv_forward_pallas.2} parent=51 // pred_region
          %s499 = sand.u32 64, 7
        $region78: #{rwkv_forward_pallas.2} parent=51 // pred_fallthru
          _
      $region52: #{rwkv_forward_pallas.2} parent=43 // pred_fallthru
        _
      // Predicated region
      $region53: #{rwkv_forward_pallas.2} parent=43 // pred_check
        %p453 = pneg %p449
      $region54: #{rwkv_forward_pallas.2} parent=43 // pred_check_branch
        %455 = sbr.rel (%p453) target = $region56
      $region55: #{rwkv_forward_pallas.2} parent=43 // pred_region
        %s456 = sshllo.u32 0, 64
        loop: start=0, step=1, limit=1
        $region57: #{rwkv_forward_pallas.2} parent=55 // loop_pre_header
          _
        $region58: #{rwkv_forward_pallas.2} parent=55 // loop_header
          %s458 = sphi 0, %s462
          %p459 = scmp.ge.s32.totalorder %s458, 1
          %s463 = sphi %s447, %s447
          %s464 = sphi [#allocation5], [#allocation5]
        $region59: #{rwkv_forward_pallas.2} parent=55 // loop_header_branch
          %461 = sbr.rel (%p459) target = $region63
        $region60: #{rwkv_forward_pallas.2} parent=55 // loop_body
          %v465 = vld [vmem:[%s463] sm:%s456]
          %466 = vst [vmem:[%s464] sm:%s456] %v465
        $region61: #{rwkv_forward_pallas.2} parent=55 // loop_footer
          %s462 = sadd.s32 1, %s458
        $region62: #{rwkv_forward_pallas.2} parent=55 // loop_footer_branch
          %457 = sbr.rel target = $region58
        $region63: #{rwkv_forward_pallas.2} parent=55 // loop_exit
          _
      $region56: #{rwkv_forward_pallas.2} parent=43 // pred_fallthru
        _
      // Predicated region
      $region79: #{rwkv_forward_pallas.2} parent=43 // pred_check
        _
      $region80: #{rwkv_forward_pallas.2} parent=43 // pred_check_branch
        %502 = sbr.rel (0) target = $region82
      $region81: #{rwkv_forward_pallas.2} parent=43 // pred_region
        %503 = vsyncadd [#allocation8], 1024
      $region82: #{rwkv_forward_pallas.2} parent=43 // pred_fallthru
        _
      %s504 = smul.u32 4, 16
      %s505 = smul.u32 %s504, 1
      %s506 = sshll.u32 %s505, 4
      %507 = dma.done [#allocation8], %s506
      %v508 = vld [vmem:[#allocation5] sm:$0xff]
      %v509 = vld [vmem:[#allocation5 + $0x8] sm:$0xff]
      %v510 = vld [vmem:[#allocation5 + $0x10] sm:$0xff]
      %v511 = vld [vmem:[#allocation5 + $0x18] sm:$0xff]
      %v512 = vld [vmem:[#allocation5 + $0x20] sm:$0xff]
      %v513 = vld [vmem:[#allocation5 + $0x28] sm:$0xff]
      %v514 = vld [vmem:[#allocation5 + $0x30] sm:$0xff]
      %v515 = vld [vmem:[#allocation5 + $0x38] sm:$0xff]
      %516 = vmatprep.subr.bf16.mxu0 0
      %517 = vmatpush1.bf16.msra.mxu0 %v508
      %518 = vmatprep.subr.bf16.mxu0 0
      %519 = vmatpush1.bf16.msra.mxu0 %v509
      %520 = vmatprep.subr.bf16.mxu0 0
      %521 = vmatpush1.bf16.msra.mxu0 %v510
      %522 = vmatprep.subr.bf16.mxu0 0
      %523 = vmatpush1.bf16.msra.mxu0 %v511
      %524 = vmatprep.subr.bf16.mxu0 0
      %525 = vmatpush1.bf16.msra.mxu0 %v512
      %526 = vmatprep.subr.bf16.mxu0 0
      %527 = vmatpush1.bf16.msra.mxu0 %v513
      %528 = vmatprep.subr.bf16.mxu0 0
      %529 = vmatpush1.bf16.msra.mxu0 %v514
      %530 = vmatprep.subr.bf16.mxu0 0
      %531 = vmatpush1.bf16.msra.mxu0 %v515
      %532 = vmatprep.subr.bf16.mxu0 0
      %533 = vmatpush1.bf16.msra.mxu0 0
      %534 = vmatprep.subr.bf16.mxu0 0
      %535 = vmatpush1.bf16.msra.mxu0 0
      %536 = vmatprep.subr.bf16.mxu0 0
      %537 = vmatpush1.bf16.msra.mxu0 0
      %538 = vmatprep.subr.bf16.mxu0 0
      %539 = vmatpush1.bf16.msra.mxu0 0
      %540 = vmatprep.subr.bf16.mxu0 0
      %541 = vmatpush1.bf16.msra.mxu0 0
      %542 = vmatprep.subr.bf16.mxu0 0
      %543 = vmatpush1.bf16.msra.mxu0 0
      %544 = vmatprep.subr.bf16.mxu0 0
      %545 = vmatpush1.bf16.msra.mxu0 0
      %546 = vmatprep.subr.bf16.mxu0 0
      %547 = vmatpush1.bf16.msra.mxu0 0
      %548 = vmatprep.mubr.bf16.mxu0 0
      %549 = vmatmul.mubr.bf16.gmra.mrb[0].mxu0 %v423
      %v550 = vpop.f32.mrb[0].mxu0
      %v551 = vadd.f32 0.0, %v550
      %v552 = vpop.f32.mrb[0].mxu0
      %v553 = vpop.f32.mrb[0].mxu0
      %v554 = vadd.f32 0.0, %v553
      %v555 = vpop.f32.mrb[0].mxu0
      %556 = vdwg.mxu0
      %557 = vst [vmem:[#allocation2] sm:$0xff] %v551
      %558 = vst [vmem:[#allocation2 + $0x8] sm:$0xff] %v554
      %s559 = smul.addr %s445, 64
      %s560 = scalar_lea.hbm %s7, %s559
      // Predicated region
      $region83: #{rwkv_forward_pallas.2} parent=43 // pred_check
        _
      $region84: #{rwkv_forward_pallas.2} parent=43 // pred_check_branch
        %562 = sbr.rel target = $region86
      $region85: #{rwkv_forward_pallas.2} parent=43 // pred_region
        %563 = sst [smem:[#allocation14]] [#allocation13]
        %564 = sst [smem:[#allocation15]] [#allocation12]
      $region86: #{rwkv_forward_pallas.2} parent=43 // pred_fallthru
        _
      %566 = shalt.err (0)
      %s568 = sshll.u32 [#allocation5], 4
      %s569 = int_to_ptr.vmem [resolvable:$true] %s568
      %571 = dma.hbm_to_vmem [thread:$0]  %s560, 1024, %s569, [#allocation8]
      %s572 = sshll.u32 %s505, 4
      %573 = dma.done [#allocation8], %s572
      %v574 = vld [vmem:[#allocation5] sm:$0xff]
      %v575 = vld [vmem:[#allocation5 + $0x8] sm:$0xff]
      %v576 = vld [vmem:[#allocation5 + $0x10] sm:$0xff]
      %v577 = vld [vmem:[#allocation5 + $0x18] sm:$0xff]
      %v578 = vld [vmem:[#allocation5 + $0x20] sm:$0xff]
      %v579 = vld [vmem:[#allocation5 + $0x28] sm:$0xff]
      %v580 = vld [vmem:[#allocation5 + $0x30] sm:$0xff]
      %v581 = vld [vmem:[#allocation5 + $0x38] sm:$0xff]
      %582 = vmatprep.subr.bf16.mxu0 0
      %583 = vmatpush1.bf16.msra.mxu0 %v574
      %584 = vmatprep.subr.bf16.mxu0 0
      %585 = vmatpush1.bf16.msra.mxu0 %v575
      %586 = vmatprep.subr.bf16.mxu0 0
      %587 = vmatpush1.bf16.msra.mxu0 %v576
      %588 = vmatprep.subr.bf16.mxu0 0
      %589 = vmatpush1.bf16.msra.mxu0 %v577
      %590 = vmatprep.subr.bf16.mxu0 0
      %591 = vmatpush1.bf16.msra.mxu0 %v578
      %592 = vmatprep.subr.bf16.mxu0 0
      %593 = vmatpush1.bf16.msra.mxu0 %v579
      %594 = vmatprep.subr.bf16.mxu0 0
      %595 = vmatpush1.bf16.msra.mxu0 %v580
      %596 = vmatprep.subr.bf16.mxu0 0
      %597 = vmatpush1.bf16.msra.mxu0 %v581
      %598 = vmatprep.subr.bf16.mxu0 0
      %599 = vmatpush1.bf16.msra.mxu0 0
      %600 = vmatprep.subr.bf16.mxu0 0
      %601 = vmatpush1.bf16.msra.mxu0 0
      %602 = vmatprep.subr.bf16.mxu0 0
      %603 = vmatpush1.bf16.msra.mxu0 0
      %604 = vmatprep.subr.bf16.mxu0 0
      %605 = vmatpush1.bf16.msra.mxu0 0
      %606 = vmatprep.subr.bf16.mxu0 0
      %607 = vmatpush1.bf16.msra.mxu0 0
      %608 = vmatprep.subr.bf16.mxu0 0
      %609 = vmatpush1.bf16.msra.mxu0 0
      %610 = vmatprep.subr.bf16.mxu0 0
      %611 = vmatpush1.bf16.msra.mxu0 0
      %612 = vmatprep.subr.bf16.mxu0 0
      %613 = vmatpush1.bf16.msra.mxu0 0
      %614 = vmatprep.mubr.bf16.mxu0 0
      %615 = vmatmul.mubr.bf16.gmra.mrb[0].mxu0 %v433
      %v616 = vpop.f32.mrb[0].mxu0
      %v617 = vadd.f32 0.0, %v616
      %v618 = vpop.f32.mrb[0].mxu0
      %v619 = vpop.f32.mrb[0].mxu0
      %v620 = vadd.f32 0.0, %v619
      %v621 = vpop.f32.mrb[0].mxu0
      %622 = vdwg.mxu0
      %623 = vst [vmem:[#allocation3] sm:$0xff] %v617
      %624 = vst [vmem:[#allocation3 + $0x8] sm:$0xff] %v620
      %s625 = smul.addr %s445, 64
      %s626 = scalar_lea.hbm %s8, %s625
      // Predicated region
      $region87: #{rwkv_forward_pallas.2} parent=43 // pred_check
        _
      $region88: #{rwkv_forward_pallas.2} parent=43 // pred_check_branch
        %628 = sbr.rel target = $region90
      $region89: #{rwkv_forward_pallas.2} parent=43 // pred_region
        %629 = sst [smem:[#allocation14]] [#allocation17]
        %630 = sst [smem:[#allocation15]] [#allocation16]
      $region90: #{rwkv_forward_pallas.2} parent=43 // pred_fallthru
        _
      %632 = shalt.err (0)
      %s634 = sshll.u32 [#allocation5], 4
      %s635 = int_to_ptr.vmem [resolvable:$true] %s634
      %637 = dma.hbm_to_vmem [thread:$0]  %s626, 1024, %s635, [#allocation8]
      %s638 = smul.u32 %s26, 64
      %s639 = smul.addr %s638, 64
      %s640 = scalar_lea.hbm %s10, %s639
      %s642 = sshll.u32 1, 14
      %s643 = sxor.u32 4294967295, %s642
      %s645 = sld [smem:[#allocation0]]
      %s646 = sadd.s32 2, %s645
      %s648 = sshll.u32 7, 26
      %s649 = sxor.u32 4294967295, %s648
      %s650 = sand.u32 0, %s649
      %s651 = sshll.u32 %s646, 26
      %s652 = sor.u32 %s650, %s651
      %s653 = sshll.u32 [#allocation6], 4
      %s654 = int_to_ptr.vmem [resolvable:$true] %s653
      %657 = sst [smem:[#allocation19]] 512
      %s658 = scalar_lea.smem [#allocation19], 1
      %659 = sst [smem:[%s658]] 512
      %s660 = scalar_lea.smem [#allocation19], 2
      %661 = sst [smem:[%s660]] 4
      %s662 = scalar_lea.smem [#allocation19], 3
      %663 = sst [smem:[%s662]] 64
      %s664 = scalar_lea.smem [#allocation19], 4
      %665 = sst [smem:[%s664]] 128
      %s666 = scalar_lea.smem [#allocation19], 5
      %667 = sst [smem:[%s666]] 2
      %s668 = scalar_lea.smem [#allocation19], 6
      %669 = sst [smem:[%s668]] 256
      %s670 = scalar_lea.smem [#allocation19], 7
      %671 = sst [smem:[%s670]] 64
      %s672 = scalar_lea.smem [#allocation19], 8
      %673 = sst [smem:[%s672]] 4
      %675 = dma.general %s640, 4096, %s654, [#allocation9], [#allocation18], [#allocation19], %s652, 0
      %s676 = smul.addr %s638, 64
      %s677 = scalar_lea.hbm %s11, %s676
      // Predicated region
      $region91: #{rwkv_forward_pallas.2} parent=43 // pred_check
        _
      $region92: #{rwkv_forward_pallas.2} parent=43 // pred_check_branch
        %679 = sbr.rel target = $region94
      $region93: #{rwkv_forward_pallas.2} parent=43 // pred_region
        %680 = sst [smem:[#allocation14]] [#allocation21]
        %681 = sst [smem:[#allocation15]] [#allocation20]
      $region94: #{rwkv_forward_pallas.2} parent=43 // pred_fallthru
        _
      %683 = shalt.err (0)
      %s685 = sshll.u32 [#allocation7], 4
      %s686 = int_to_ptr.vmem [resolvable:$true] %s685
      %688 = dma.hbm_to_vmem [thread:$0]  %s677, 4096, %s686, [#allocation10]
      %v689 = vld [vmem:[%s338] sm:$0x1]
      %v690 = vld [vmem:[%s338 + $0x1] sm:$0x1]
      %v691 = vld [vmem:[%s326 + $0x2] sm:$0x1]
      %v692 = vld [vmem:[%s326 + $0x3] sm:$0x1]
      %v693 = vld [vmem:[%s326 + $0x4] sm:$0x1]
      loop: start=0, step=1, limit=2
      $region95: #{rwkv_forward_pallas.2} parent=43 // loop_pre_header
        _
      $region96: #{rwkv_forward_pallas.2} parent=43 // loop_header
        %s695 = sphi 0, %s699
        %p696 = scmp.ge.s32.totalorder %s695, 2
        %v700 = vphi %v691, %v1103
        %v701 = vphi %v692, %v1108
        %v702 = vphi %v693, %v1088
      $region97: #{rwkv_forward_pallas.2} parent=43 // loop_header_branch
        %698 = sbr.rel (%p696) target = $region101
      $region98: #{rwkv_forward_pallas.2} parent=43 // loop_body
        %s703 = smul.u32 %s695, 8
        %s704 = scalar_lea.vmem [#allocation2], %s703
        %v705 = vld [vmem:[%s704] sm:$0xff]
        %s706 = scalar_lea.vmem [#allocation3], %s703
        %v707 = vld [vmem:[%s706] sm:$0xff]
        %v708 = vadd.f32 %v705, %v689
        %v709 = vmax.f32 %v702, %v708
        %v710 = vsub.f32 %v702, %v709
        %v711 = vmul.f32 %v710, 1.442695
        %v712 = vpow.pop %v711
        %v713 = vsub.f32 %v708, %v709
        %v714 = vmul.f32 %v713, 1.442695
        %v715 = vpow.pop %v714
        %v716 = vmul.f32 %v712, %v700
        %v717 = vmul.f32 %v715, %v707
        %v718 = vadd.f32 %v716, %v717
        %v719 = vmul.f32 %v712, %v701
        %v720 = vadd.f32 %v719, %v715
        %v721 = vrcp.pop %v720
        %v722 = vmul.f32 %v718, %v721
        %v723 = vadd.f32 %v702, %v690
        %v724 = vmax.f32 %v723, %v705
        %v725 = vsub.f32 %v723, %v724
        %v726 = vmul.f32 %v725, 1.442695
        %v727 = vpow.pop %v726
        %v728 = vsub.f32 %v705, %v724
        %v729 = vmul.f32 %v728, 1.442695
        %v730 = vpow.pop %v729
        %v731 = vmul.f32 %v727, %v700
        %v732 = vmul.f32 %v730, %v707
        %v733 = vadd.f32 %v731, %v732
        %v734 = vmul.f32 %v727, %v701
        %v735 = vadd.f32 %v734, %v730
        %v737 = vrot.slane %v689, 7
        %v739 = vadd.f32 %v705, %v737
        %v741 = vrot.slane %v739, 1
        %v743 = vmax.f32 %v724, %v741
        %v744 = vsub.f32 %v724, %v743
        %v745 = vmul.f32 %v744, 1.442695
        %v746 = vpow.pop %v745
        %v748 = vrot.slane %v743, 7
        %v750 = vsub.f32 %v739, %v748
        %v751 = vmul.f32 %v750, 1.442695
        %v752 = vpow.pop %v751
        %v753 = vmul.f32 %v746, %v733
        %v754 = vmul.f32 %v752, %v707
        %v756 = vrot.slane %v754, 1
        %v758 = vadd.f32 %v753, %v756
        %v759 = vmul.f32 %v746, %v735
        %v761 = vrot.slane %v752, 1
        %v763 = vadd.f32 %v759, %v761
        %v764 = vrcp.pop %v763
        %v765 = vmul.f32 %v758, %v764
        %v766 = vadd.f32 %v724, %v690
        %v768 = vrot.slane %v705, 1
        %v770 = vmax.f32 %v766, %v768
        %v771 = vsub.f32 %v766, %v770
        %v772 = vmul.f32 %v771, 1.442695
        %v773 = vpow.pop %v772
        %v775 = vrot.slane %v770, 7
        %v777 = vsub.f32 %v705, %v775
        %v778 = vmul.f32 %v777, 1.442695
        %v779 = vpow.pop %v778
        %v780 = vmul.f32 %v773, %v733
        %v781 = vmul.f32 %v779, %v707
        %v783 = vrot.slane %v781, 1
        %v785 = vadd.f32 %v780, %v783
        %v786 = vmul.f32 %v773, %v735
        %v788 = vrot.slane %v779, 1
        %v790 = vadd.f32 %v786, %v788
        %v791 = vrot.slane %v689, 6
        %v793 = vadd.f32 %v705, %v791
        %v795 = vrot.slane %v793, 2
        %v797 = vmax.f32 %v770, %v795
        %v798 = vsub.f32 %v770, %v797
        %v799 = vmul.f32 %v798, 1.442695
        %v800 = vpow.pop %v799
        %v802 = vrot.slane %v797, 6
        %v804 = vsub.f32 %v793, %v802
        %v805 = vmul.f32 %v804, 1.442695
        %v806 = vpow.pop %v805
        %v807 = vmul.f32 %v800, %v785
        %v808 = vmul.f32 %v806, %v707
        %v810 = vrot.slane %v808, 2
        %v812 = vadd.f32 %v807, %v810
        %v813 = vmul.f32 %v800, %v790
        %v815 = vrot.slane %v806, 2
        %v817 = vadd.f32 %v813, %v815
        %v818 = vrcp.pop %v817
        %v819 = vmul.f32 %v812, %v818
        %v820 = vadd.f32 %v770, %v690
        %v821 = vrot.slane %v705, 2
        %v823 = vmax.f32 %v820, %v821
        %v824 = vsub.f32 %v820, %v823
        %v825 = vmul.f32 %v824, 1.442695
        %v826 = vpow.pop %v825
        %v828 = vrot.slane %v823, 6
        %v830 = vsub.f32 %v705, %v828
        %v831 = vmul.f32 %v830, 1.442695
        %v832 = vpow.pop %v831
        %v833 = vmul.f32 %v826, %v785
        %v834 = vmul.f32 %v832, %v707
        %v836 = vrot.slane %v834, 2
        %v838 = vadd.f32 %v833, %v836
        %v839 = vmul.f32 %v826, %v790
        %v841 = vrot.slane %v832, 2
        %v843 = vadd.f32 %v839, %v841
        %v844 = vrot.slane %v689, 5
        %v846 = vadd.f32 %v705, %v844
        %v848 = vrot.slane %v846, 3
        %v850 = vmax.f32 %v823, %v848
        %v851 = vsub.f32 %v823, %v850
        %v852 = vmul.f32 %v851, 1.442695
        %v853 = vpow.pop %v852
        %v855 = vrot.slane %v850, 5
        %v857 = vsub.f32 %v846, %v855
        %v858 = vmul.f32 %v857, 1.442695
        %v859 = vpow.pop %v858
        %v860 = vmul.f32 %v853, %v838
        %v861 = vmul.f32 %v859, %v707
        %v863 = vrot.slane %v861, 3
        %v865 = vadd.f32 %v860, %v863
        %v866 = vmul.f32 %v853, %v843
        %v868 = vrot.slane %v859, 3
        %v870 = vadd.f32 %v866, %v868
        %v871 = vrcp.pop %v870
        %v872 = vmul.f32 %v865, %v871
        %v873 = vadd.f32 %v823, %v690
        %v874 = vrot.slane %v705, 3
        %v876 = vmax.f32 %v873, %v874
        %v877 = vsub.f32 %v873, %v876
        %v878 = vmul.f32 %v877, 1.442695
        %v879 = vpow.pop %v878
        %v881 = vrot.slane %v876, 5
        %v883 = vsub.f32 %v705, %v881
        %v884 = vmul.f32 %v883, 1.442695
        %v885 = vpow.pop %v884
        %v886 = vmul.f32 %v879, %v838
        %v887 = vmul.f32 %v885, %v707
        %v889 = vrot.slane %v887, 3
        %v891 = vadd.f32 %v886, %v889
        %v892 = vmul.f32 %v879, %v843
        %v894 = vrot.slane %v885, 3
        %v896 = vadd.f32 %v892, %v894
        %v897 = vrot.slane %v689, 4
        %v899 = vadd.f32 %v705, %v897
        %v901 = vrot.slane %v899, 4
        %v903 = vmax.f32 %v876, %v901
        %v904 = vsub.f32 %v876, %v903
        %v905 = vmul.f32 %v904, 1.442695
        %v906 = vpow.pop %v905
        %v908 = vrot.slane %v903, 4
        %v910 = vsub.f32 %v899, %v908
        %v911 = vmul.f32 %v910, 1.442695
        %v912 = vpow.pop %v911
        %v913 = vmul.f32 %v906, %v891
        %v914 = vmul.f32 %v912, %v707
        %v916 = vrot.slane %v914, 4
        %v918 = vadd.f32 %v913, %v916
        %v919 = vmul.f32 %v906, %v896
        %v921 = vrot.slane %v912, 4
        %v923 = vadd.f32 %v919, %v921
        %v924 = vrcp.pop %v923
        %v925 = vmul.f32 %v918, %v924
        %v926 = vadd.f32 %v876, %v690
        %v927 = vrot.slane %v705, 4
        %v929 = vmax.f32 %v926, %v927
        %v930 = vsub.f32 %v926, %v929
        %v931 = vmul.f32 %v930, 1.442695
        %v932 = vpow.pop %v931
        %v934 = vrot.slane %v929, 4
        %v936 = vsub.f32 %v705, %v934
        %v937 = vmul.f32 %v936, 1.442695
        %v938 = vpow.pop %v937
        %v939 = vmul.f32 %v932, %v891
        %v940 = vmul.f32 %v938, %v707
        %v942 = vrot.slane %v940, 4
        %v944 = vadd.f32 %v939, %v942
        %v945 = vmul.f32 %v932, %v896
        %v947 = vrot.slane %v938, 4
        %v949 = vadd.f32 %v945, %v947
        %v950 = vrot.slane %v689, 3
        %v952 = vadd.f32 %v705, %v950
        %v954 = vrot.slane %v952, 5
        %v956 = vmax.f32 %v929, %v954
        %v957 = vsub.f32 %v929, %v956
        %v958 = vmul.f32 %v957, 1.442695
        %v959 = vpow.pop %v958
        %v961 = vrot.slane %v956, 3
        %v963 = vsub.f32 %v952, %v961
        %v964 = vmul.f32 %v963, 1.442695
        %v965 = vpow.pop %v964
        %v966 = vmul.f32 %v959, %v944
        %v967 = vmul.f32 %v965, %v707
        %v969 = vrot.slane %v967, 5
        %v971 = vadd.f32 %v966, %v969
        %v972 = vmul.f32 %v959, %v949
        %v974 = vrot.slane %v965, 5
        %v976 = vadd.f32 %v972, %v974
        %v977 = vrcp.pop %v976
        %v978 = vmul.f32 %v971, %v977
        %v979 = vadd.f32 %v929, %v690
        %v980 = vrot.slane %v705, 5
        %v982 = vmax.f32 %v979, %v980
        %v983 = vsub.f32 %v979, %v982
        %v984 = vmul.f32 %v983, 1.442695
        %v985 = vpow.pop %v984
        %v987 = vrot.slane %v982, 3
        %v989 = vsub.f32 %v705, %v987
        %v990 = vmul.f32 %v989, 1.442695
        %v991 = vpow.pop %v990
        %v992 = vmul.f32 %v985, %v944
        %v993 = vmul.f32 %v991, %v707
        %v995 = vrot.slane %v993, 5
        %v997 = vadd.f32 %v992, %v995
        %v998 = vmul.f32 %v985, %v949
        %v1000 = vrot.slane %v991, 5
        %v1002 = vadd.f32 %v998, %v1000
        %v1003 = vrot.slane %v689, 2
        %v1005 = vadd.f32 %v705, %v1003
        %v1007 = vrot.slane %v1005, 6
        %v1009 = vmax.f32 %v982, %v1007
        %v1010 = vsub.f32 %v982, %v1009
        %v1011 = vmul.f32 %v1010, 1.442695
        %v1012 = vpow.pop %v1011
        %v1014 = vrot.slane %v1009, 2
        %v1016 = vsub.f32 %v1005, %v1014
        %v1017 = vmul.f32 %v1016, 1.442695
        %v1018 = vpow.pop %v1017
        %v1019 = vmul.f32 %v1012, %v997
        %v1020 = vmul.f32 %v1018, %v707
        %v1022 = vrot.slane %v1020, 6
        %v1024 = vadd.f32 %v1019, %v1022
        %v1025 = vmul.f32 %v1012, %v1002
        %v1027 = vrot.slane %v1018, 6
        %v1029 = vadd.f32 %v1025, %v1027
        %v1030 = vrcp.pop %v1029
        %v1031 = vmul.f32 %v1024, %v1030
        %v1032 = vadd.f32 %v982, %v690
        %v1033 = vrot.slane %v705, 6
        %v1035 = vmax.f32 %v1032, %v1033
        %v1036 = vsub.f32 %v1032, %v1035
        %v1037 = vmul.f32 %v1036, 1.442695
        %v1038 = vpow.pop %v1037
        %v1040 = vrot.slane %v1035, 2
        %v1042 = vsub.f32 %v705, %v1040
        %v1043 = vmul.f32 %v1042, 1.442695
        %v1044 = vpow.pop %v1043
        %v1045 = vmul.f32 %v1038, %v997
        %v1046 = vmul.f32 %v1044, %v707
        %v1048 = vrot.slane %v1046, 6
        %v1050 = vadd.f32 %v1045, %v1048
        %v1051 = vmul.f32 %v1038, %v1002
        %v1053 = vrot.slane %v1044, 6
        %v1055 = vadd.f32 %v1051, %v1053
        %v1056 = vrot.slane %v689, 1
        %v1058 = vadd.f32 %v705, %v1056
        %v1060 = vrot.slane %v1058, 7
        %v1062 = vmax.f32 %v1035, %v1060
        %v1063 = vsub.f32 %v1035, %v1062
        %v1064 = vmul.f32 %v1063, 1.442695
        %v1065 = vpow.pop %v1064
        %v1067 = vrot.slane %v1062, 1
        %v1069 = vsub.f32 %v1058, %v1067
        %v1070 = vmul.f32 %v1069, 1.442695
        %v1071 = vpow.pop %v1070
        %v1072 = vmul.f32 %v1065, %v1050
        %v1073 = vmul.f32 %v1071, %v707
        %v1075 = vrot.slane %v1073, 7
        %v1077 = vadd.f32 %v1072, %v1075
        %v1078 = vmul.f32 %v1065, %v1055
        %v1080 = vrot.slane %v1071, 7
        %v1082 = vadd.f32 %v1078, %v1080
        %v1083 = vrcp.pop %v1082
        %v1084 = vmul.f32 %v1077, %v1083
        %v1085 = vadd.f32 %v1035, %v690
        %v1086 = vrot.slane %v705, 7
        %v1088 = vmax.f32 %v1085, %v1086
        %v1089 = vsub.f32 %v1085, %v1088
        %v1090 = vmul.f32 %v1089, 1.442695
        %v1091 = vpow.pop %v1090
        %v1093 = vrot.slane %v1088, 1
        %v1095 = vsub.f32 %v705, %v1093
        %v1096 = vmul.f32 %v1095, 1.442695
        %v1097 = vpow.pop %v1096
        %v1098 = vmul.f32 %v1091, %v1050
        %v1099 = vmul.f32 %v1097, %v707
        %v1101 = vrot.slane %v1099, 7
        %v1103 = vadd.f32 %v1098, %v1101
        %v1104 = vmul.f32 %v1091, %v1055
        %v1106 = vrot.slane %v1097, 7
        %v1108 = vadd.f32 %v1104, %v1106
        %v1110 = vrot.slane %v765, 7
        %v1113 = vrot.slane %v819, 6
        %v1116 = vrot.slane %v872, 5
        %v1119 = vrot.slane %v925, 4
        %v1122 = vrot.slane %v978, 3
        %v1125 = vrot.slane %v1031, 2
        %v1128 = vrot.slane %v1084, 1
        %vm1130 = vcmask 1040384
        %v1131 = vsel %vm1130, %v722, %v1110
        %vm1132 = vcmask 1041408
        %v1133 = vsel %vm1132, %v1131, %v1113
        %vm1134 = vcmask 1042432
        %v1135 = vsel %vm1134, %v1133, %v1116
        %vm1136 = vcmask 1043456
        %v1137 = vsel %vm1136, %v1135, %v1119
        %vm1138 = vcmask 1044480
        %v1139 = vsel %vm1138, %v1137, %v1122
        %vm1140 = vcmask 1045504
        %v1141 = vsel %vm1140, %v1139, %v1125
        %vm1142 = vcmask 1046528
        %v1143 = vsel %vm1142, %v1141, %v1128
        %s1144 = scalar_lea.vmem [#allocation4], %s703
        %1145 = vst [vmem:[%s1144] sm:$0xff] %v1143
      $region99: #{rwkv_forward_pallas.2} parent=43 // loop_footer
        %s699 = sadd.s32 1, %s695
      $region100: #{rwkv_forward_pallas.2} parent=43 // loop_footer_branch
        %694 = sbr.rel target = $region96
      $region101: #{rwkv_forward_pallas.2} parent=43 // loop_exit
        _
      %1146 = vst [vmem:[%s346 + $0x2] sm:$0x1] %v700
      %1147 = vst [vmem:[%s346 + $0x3] sm:$0x1] %v701
      %1148 = vst [vmem:[%s346 + $0x4] sm:$0x1] %v702
      %s1149 = sshll.u32 %s505, 4
      %1150 = dma.done [#allocation8], %s1149
      %v1151 = vld [vmem:[#allocation5] sm:$0xff]
      %v1152 = vld [vmem:[#allocation5 + $0x8] sm:$0xff]
      %v1153 = vld [vmem:[#allocation5 + $0x10] sm:$0xff]
      %v1154 = vld [vmem:[#allocation5 + $0x18] sm:$0xff]
      %v1155 = vld [vmem:[#allocation5 + $0x20] sm:$0xff]
      %v1156 = vld [vmem:[#allocation5 + $0x28] sm:$0xff]
      %v1157 = vld [vmem:[#allocation5 + $0x30] sm:$0xff]
      %v1158 = vld [vmem:[#allocation5 + $0x38] sm:$0xff]
      %1159 = vmatprep.subr.bf16.mxu0 0
      %1160 = vmatpush1.bf16.msra.mxu0 %v1151
      %1161 = vmatprep.subr.bf16.mxu0 0
      %1162 = vmatpush1.bf16.msra.mxu0 %v1152
      %1163 = vmatprep.subr.bf16.mxu0 0
      %1164 = vmatpush1.bf16.msra.mxu0 %v1153
      %1165 = vmatprep.subr.bf16.mxu0 0
      %1166 = vmatpush1.bf16.msra.mxu0 %v1154
      %1167 = vmatprep.subr.bf16.mxu0 0
      %1168 = vmatpush1.bf16.msra.mxu0 %v1155
      %1169 = vmatprep.subr.bf16.mxu0 0
      %1170 = vmatpush1.bf16.msra.mxu0 %v1156
      %1171 = vmatprep.subr.bf16.mxu0 0
      %1172 = vmatpush1.bf16.msra.mxu0 %v1157
      %1173 = vmatprep.subr.bf16.mxu0 0
      %1174 = vmatpush1.bf16.msra.mxu0 %v1158
      %1175 = vmatprep.subr.bf16.mxu0 0
      %1176 = vmatpush1.bf16.msra.mxu0 0
      %1177 = vmatprep.subr.bf16.mxu0 0
      %1178 = vmatpush1.bf16.msra.mxu0 0
      %1179 = vmatprep.subr.bf16.mxu0 0
      %1180 = vmatpush1.bf16.msra.mxu0 0
      %1181 = vmatprep.subr.bf16.mxu0 0
      %1182 = vmatpush1.bf16.msra.mxu0 0
      %1183 = vmatprep.subr.bf16.mxu0 0
      %1184 = vmatpush1.bf16.msra.mxu0 0
      %1185 = vmatprep.subr.bf16.mxu0 0
      %1186 = vmatpush1.bf16.msra.mxu0 0
      %1187 = vmatprep.subr.bf16.mxu0 0
      %1188 = vmatpush1.bf16.msra.mxu0 0
      %1189 = vmatprep.subr.bf16.mxu0 0
      %1190 = vmatpush1.bf16.msra.mxu0 0
      %1191 = vmatprep.mubr.bf16.mxu0 0
      %1192 = vmatmul.mubr.bf16.gmra.mrb[0].mxu0 %v443
      %v1193 = vpop.f32.mrb[0].mxu0
      %v1194 = vadd.f32 0.0, %v1193
      %v1195 = vpop.f32.mrb[0].mxu0
      %v1196 = vpop.f32.mrb[0].mxu0
      %v1197 = vadd.f32 0.0, %v1196
      %v1198 = vpop.f32.mrb[0].mxu0
      %1199 = vdwg.mxu0
      %v1200 = vld [vmem:[#allocation4] sm:$0xff]
      %v1201 = vld [vmem:[#allocation4 + $0x8] sm:$0xff]
      %v1202 = vxor.u32 %v1194, 2147483648
      %v1203 = vxor.u32 %v1197, 2147483648
      %v1204 = vmul.f32 %v1202, 1.442695
      %v1205 = vpow.pop %v1204
      %v1206 = vmul.f32 %v1203, 1.442695
      %v1207 = vpow.pop %v1206
      %v1208 = vadd.f32 %v1205, 1.0
      %v1209 = vadd.f32 %v1207, 1.0
      %v1210 = vrcp.pop %v1208
      %v1211 = vmul.f32 1.0, %v1210
      %v1212 = vrcp.pop %v1209
      %v1213 = vmul.f32 1.0, %v1212
      %v1214 = vmul.f32 %v1200, %v1211
      %v1215 = vmul.f32 %v1201, %v1213
      %1216 = vst [vmem:[#allocation4] sm:$0xff] %v1214
      %1217 = vst [vmem:[#allocation4 + $0x8] sm:$0xff] %v1215
      %v1218 = vld [vmem:[#allocation4] sm:$0xff]
      %v1219 = vld [vmem:[#allocation4 + $0x8] sm:$0xff]
      %v1220 = vpack.c.bf16 %v1219, %v1218
      %s1221 = smul.addr %s445, 64
      %s1222 = scalar_lea.hbm %s9, %s1221
      // Predicated region
      $region102: #{rwkv_forward_pallas.2} parent=43 // pred_check
        _
      $region103: #{rwkv_forward_pallas.2} parent=43 // pred_check_branch
        %1224 = sbr.rel target = $region105
      $region104: #{rwkv_forward_pallas.2} parent=43 // pred_region
        %1225 = sst [smem:[#allocation14]] [#allocation23]
        %1226 = sst [smem:[#allocation15]] [#allocation22]
      $region105: #{rwkv_forward_pallas.2} parent=43 // pred_fallthru
        _
      %1228 = shalt.err (0)
      %s1230 = sshll.u32 [#allocation5], 4
      %s1231 = int_to_ptr.vmem [resolvable:$true] %s1230
      %1233 = dma.hbm_to_vmem [thread:$0]  %s1222, 1024, %s1231, [#allocation8]
      %s1234 = sshll.u32 %s505, 4
      %1235 = dma.done [#allocation8], %s1234
      %v1236 = vld [vmem:[#allocation5] sm:$0xff]
      %v1237 = vld [vmem:[#allocation5 + $0x8] sm:$0xff]
      %v1238 = vld [vmem:[#allocation5 + $0x10] sm:$0xff]
      %v1239 = vld [vmem:[#allocation5 + $0x18] sm:$0xff]
      %v1240 = vld [vmem:[#allocation5 + $0x20] sm:$0xff]
      %v1241 = vld [vmem:[#allocation5 + $0x28] sm:$0xff]
      %v1242 = vld [vmem:[#allocation5 + $0x30] sm:$0xff]
      %v1243 = vld [vmem:[#allocation5 + $0x38] sm:$0xff]
      %1244 = vmatprep.subr.bf16.mxu0 0
      %1245 = vmatpush1.bf16.msra.mxu0 %v1236
      %1246 = vmatprep.subr.bf16.mxu0 0
      %1247 = vmatpush1.bf16.msra.mxu0 %v1237
      %1248 = vmatprep.subr.bf16.mxu0 0
      %1249 = vmatpush1.bf16.msra.mxu0 %v1238
      %1250 = vmatprep.subr.bf16.mxu0 0
      %1251 = vmatpush1.bf16.msra.mxu0 %v1239
      %1252 = vmatprep.subr.bf16.mxu0 0
      %1253 = vmatpush1.bf16.msra.mxu0 %v1240
      %1254 = vmatprep.subr.bf16.mxu0 0
      %1255 = vmatpush1.bf16.msra.mxu0 %v1241
      %1256 = vmatprep.subr.bf16.mxu0 0
      %1257 = vmatpush1.bf16.msra.mxu0 %v1242
      %1258 = vmatprep.subr.bf16.mxu0 0
      %1259 = vmatpush1.bf16.msra.mxu0 %v1243
      %1260 = vmatprep.subr.bf16.mxu0 0
      %1261 = vmatpush1.bf16.msra.mxu0 0
      %1262 = vmatprep.subr.bf16.mxu0 0
      %1263 = vmatpush1.bf16.msra.mxu0 0
      %1264 = vmatprep.subr.bf16.mxu0 0
      %1265 = vmatpush1.bf16.msra.mxu0 0
      %1266 = vmatprep.subr.bf16.mxu0 0
      %1267 = vmatpush1.bf16.msra.mxu0 0
      %1268 = vmatprep.subr.bf16.mxu0 0
      %1269 = vmatpush1.bf16.msra.mxu0 0
      %1270 = vmatprep.subr.bf16.mxu0 0
      %1271 = vmatpush1.bf16.msra.mxu0 0
      %1272 = vmatprep.subr.bf16.mxu0 0
      %1273 = vmatpush1.bf16.msra.mxu0 0
      %1274 = vmatprep.subr.bf16.mxu0 0
      %1275 = vmatpush1.bf16.msra.mxu0 0
      %1276 = vmatprep.mubr.bf16.mxu0 0
      %1277 = vmatmul.mubr.bf16.gmra.mrb[0].mxu0 %v1220
      %v1278 = vpop.f32.mrb[0].mxu0
      %v1279 = vadd.f32 0.0, %v1278
      %v1280 = vpop.f32.mrb[0].mxu0
      %v1281 = vpop.f32.mrb[0].mxu0
      %v1282 = vadd.f32 0.0, %v1281
      %v1283 = vpop.f32.mrb[0].mxu0
      %1284 = vdwg.mxu0
      %v1285 = vld [vmem:[%s13] sm:$0xff]
      %v1286 = vld [vmem:[%s13 + $0x8] sm:$0xff]
      %v1287 = vadd.f32 %v1285, %v1279
      %v1288 = vadd.f32 %v1286, %v1282
      %1289 = vst [vmem:[%s13] sm:$0xff] %v1287
      %1290 = vst [vmem:[%s13 + $0x8] sm:$0xff] %v1288
      %v1291 = vld [vmem:[%s13] sm:$0xff]
      %v1292 = vld [vmem:[%s13 + $0x8] sm:$0xff]
      %v1293 = vld [vmem:[%s330 + $0x2] sm:$0x1]
      %v1294 = vld [vmem:[%s330 + $0x3] sm:$0x1]
      %1295 = vadd.xlane.f32.xlu0 %v1291
      %v1296 = vpop.xlane.xlu0 %1295
      %1297 = vadd.xlane.f32.xlu0 %v1292
      %v1298 = vpop.xlane.xlu0 %1297
      %v1299 = vmul.f32 %v1296, %v369
      %v1300 = vmul.f32 %v1298, %v369
      %v1301 = vsub.f32 %v1291, %v1299
      %v1302 = vsub.f32 %v1292, %v1300
      %v1303 = vmul.f32 %v1301, %v1301
      %v1304 = vmul.f32 %v1302, %v1302
      %1305 = vadd.xlane.f32.xlu0 %v1303
      %v1306 = vpop.xlane.xlu0 %1305
      %1307 = vadd.xlane.f32.xlu0 %v1304
      %v1308 = vpop.xlane.xlu0 %1307
      %v1309 = vmul.f32 %v1306, %v369
      %v1310 = vmul.f32 %v1308, %v369
      %v1311 = vadd.f32 %v1309, 1e-05
      %v1312 = vadd.f32 %v1310, 1e-05
      %v1313 = vrsqrt.pop %v1311
      %v1314 = vrsqrt.pop %v1312
      %v1315 = vmul.f32 %v1301, %v1313
      %v1316 = vmul.f32 %v1302, %v1314
      %v1317 = vlaneseq
      %v1318 = vshrl.u32 %v1317, 7
      %v1319 = vsub.s32 0, %v1318
      %v1320 = vrot.slane %v1293, %v1319
      %v1321 = vmul.f32 %v1315, %v1320
      %v1322 = vmul.f32 %v1316, %v1320
      %v1323 = vlaneseq
      %v1324 = vshrl.u32 %v1323, 7
      %v1325 = vsub.s32 0, %v1324
      %v1326 = vrot.slane %v1294, %v1325
      %v1327 = vadd.f32 %v1321, %v1326
      %v1328 = vadd.f32 %v1322, %v1326
      %v1329 = vld [vmem:[%s326] sm:$0x1]
      %v1330 = vrot.slane %v1327, 7
      %v1331 = vrot.slane %v1328, 7
      %v1332 = vsel %vm403, %v1330, %v1331
      %v1333 = vsel %vm403, %v1331, %v1330
      %v1334 = vlaneseq
      %v1335 = vshrl.u32 %v1334, 7
      %v1336 = vsub.s32 0, %v1335
      %v1337 = vrot.slane %v1329, %v1336
      %v1338 = vsel %vm361, %v1337, %v1333
      %v1339 = vsel %vm362, %v1337, %v1332
      %v1340 = vsub.f32 %v1327, %v1338
      %v1341 = vsub.f32 %v1328, %v1339
      %v1342 = vld [vmem:[%s342] sm:$0x1]
      %v1343 = vlaneseq
      %v1344 = vshrl.u32 %v1343, 7
      %v1345 = vsub.s32 0, %v1344
      %v1346 = vrot.slane %v1342, %v1345
      %v1347 = vmul.f32 %v1340, %v1346
      %v1348 = vmul.f32 %v1341, %v1346
      %v1349 = vadd.f32 %v1338, %v1347
      %v1350 = vadd.f32 %v1339, %v1348
      %v1351 = vpack.c.bf16 %v1350, %v1349
      %v1352 = vld [vmem:[%s342 + $0x1] sm:$0x1]
      %v1353 = vlaneseq
      %v1354 = vshrl.u32 %v1353, 7
      %v1355 = vsub.s32 0, %v1354
      %v1356 = vrot.slane %v1352, %v1355
      %v1357 = vmul.f32 %v1340, %v1356
      %v1358 = vmul.f32 %v1341, %v1356
      %v1359 = vadd.f32 %v1338, %v1357
      %v1360 = vadd.f32 %v1339, %v1358
      %v1361 = vpack.c.bf16 %v1360, %v1359
      %1362 = vst [vmem:[%s346 - $0x7] sm:$0x80] %v1328
      %s1363 = smul.u32 %s504, 4
      %s1364 = sshll.u32 %s1363, 4
      %1365 = dma.done [#allocation9], %s1364
      %v1366 = vld [vmem:[#allocation6] sm:$0xff]
      %v1367 = vld [vmem:[#allocation6 + $0x8] sm:$0xff]
      %v1368 = vld [vmem:[#allocation6 + $0x10] sm:$0xff]
      %v1369 = vld [vmem:[#allocation6 + $0x18] sm:$0xff]
      %v1370 = vld [vmem:[#allocation6 + $0x20] sm:$0xff]
      %v1371 = vld [vmem:[#allocation6 + $0x28] sm:$0xff]
      %v1372 = vld [vmem:[#allocation6 + $0x30] sm:$0xff]
      %v1373 = vld [vmem:[#allocation6 + $0x38] sm:$0xff]
      %v1374 = vld [vmem:[#allocation6 + $0x40] sm:$0xff]
      %v1375 = vld [vmem:[#allocation6 + $0x48] sm:$0xff]
      %v1376 = vld [vmem:[#allocation6 + $0x50] sm:$0xff]
      %v1377 = vld [vmem:[#allocation6 + $0x58] sm:$0xff]
      %v1378 = vld [vmem:[#allocation6 + $0x60] sm:$0xff]
      %v1379 = vld [vmem:[#allocation6 + $0x68] sm:$0xff]
      %v1380 = vld [vmem:[#allocation6 + $0x70] sm:$0xff]
      %v1381 = vld [vmem:[#allocation6 + $0x78] sm:$0xff]
      %v1382 = vld [vmem:[#allocation6 + $0x80] sm:$0xff]
      %v1383 = vld [vmem:[#allocation6 + $0x88] sm:$0xff]
      %v1384 = vld [vmem:[#allocation6 + $0x90] sm:$0xff]
      %v1385 = vld [vmem:[#allocation6 + $0x98] sm:$0xff]
      %v1386 = vld [vmem:[#allocation6 + $0xa0] sm:$0xff]
      %v1387 = vld [vmem:[#allocation6 + $0xa8] sm:$0xff]
      %v1388 = vld [vmem:[#allocation6 + $0xb0] sm:$0xff]
      %v1389 = vld [vmem:[#allocation6 + $0xb8] sm:$0xff]
      %v1390 = vld [vmem:[#allocation6 + $0xc0] sm:$0xff]
      %v1391 = vld [vmem:[#allocation6 + $0xc8] sm:$0xff]
      %v1392 = vld [vmem:[#allocation6 + $0xd0] sm:$0xff]
      %v1393 = vld [vmem:[#allocation6 + $0xd8] sm:$0xff]
      %v1394 = vld [vmem:[#allocation6 + $0xe0] sm:$0xff]
      %v1395 = vld [vmem:[#allocation6 + $0xe8] sm:$0xff]
      %v1396 = vld [vmem:[#allocation6 + $0xf0] sm:$0xff]
      %v1397 = vld [vmem:[#allocation6 + $0xf8] sm:$0xff]
      %1398 = vmatprep.subr.bf16.mxu0 %v1367
      %1399 = vmatpush1.bf16.msra.mxu0 %v1366
      %1400 = vmatprep.subr.bf16.mxu0 %v1371
      %1401 = vmatpush1.bf16.msra.mxu0 %v1370
      %1402 = vmatprep.subr.bf16.mxu0 %v1375
      %1403 = vmatpush1.bf16.msra.mxu0 %v1374
      %1404 = vmatprep.subr.bf16.mxu0 %v1379
      %1405 = vmatpush1.bf16.msra.mxu0 %v1378
      %1406 = vmatprep.subr.bf16.mxu0 %v1383
      %1407 = vmatpush1.bf16.msra.mxu0 %v1382
      %1408 = vmatprep.subr.bf16.mxu0 %v1387
      %1409 = vmatpush1.bf16.msra.mxu0 %v1386
      %1410 = vmatprep.subr.bf16.mxu0 %v1391
      %1411 = vmatpush1.bf16.msra.mxu0 %v1390
      %1412 = vmatprep.subr.bf16.mxu0 %v1395
      %1413 = vmatpush1.bf16.msra.mxu0 %v1394
      %1414 = vmatprep.subr.bf16.mxu0 0
      %1415 = vmatpush1.bf16.msra.mxu0 0
      %1416 = vmatprep.subr.bf16.mxu0 0
      %1417 = vmatpush1.bf16.msra.mxu0 0
      %1418 = vmatprep.subr.bf16.mxu0 0
      %1419 = vmatpush1.bf16.msra.mxu0 0
      %1420 = vmatprep.subr.bf16.mxu0 0
      %1421 = vmatpush1.bf16.msra.mxu0 0
      %1422 = vmatprep.subr.bf16.mxu0 0
      %1423 = vmatpush1.bf16.msra.mxu0 0
      %1424 = vmatprep.subr.bf16.mxu0 0
      %1425 = vmatpush1.bf16.msra.mxu0 0
      %1426 = vmatprep.subr.bf16.mxu0 0
      %1427 = vmatpush1.bf16.msra.mxu0 0
      %1428 = vmatprep.subr.bf16.mxu0 0
      %1429 = vmatpush1.bf16.msra.mxu0 0
      %1430 = vmatprep.mubr.bf16.mxu0 0
      %1431 = vmatmul.mubr.bf16.gmra.mrb[0].mxu0 %v1351
      %v1432 = vpop.f32.mrb[0].mxu0
      %v1433 = vadd.f32 0.0, %v1432
      %v1434 = vpop.f32.mrb[0].mxu0
      %v1435 = vadd.f32 0.0, %v1434
      %v1436 = vpop.f32.mrb[0].mxu0
      %v1437 = vadd.f32 0.0, %v1436
      %v1438 = vpop.f32.mrb[0].mxu0
      %v1439 = vadd.f32 0.0, %v1438
      %1440 = vdwg.mxu0
      %1441 = vmatprep.subr.bf16.mxu0 %v1369
      %1442 = vmatpush1.bf16.msra.mxu0 %v1368
      %1443 = vmatprep.subr.bf16.mxu0 %v1373
      %1444 = vmatpush1.bf16.msra.mxu0 %v1372
      %1445 = vmatprep.subr.bf16.mxu0 %v1377
      %1446 = vmatpush1.bf16.msra.mxu0 %v1376
      %1447 = vmatprep.subr.bf16.mxu0 %v1381
      %1448 = vmatpush1.bf16.msra.mxu0 %v1380
      %1449 = vmatprep.subr.bf16.mxu0 %v1385
      %1450 = vmatpush1.bf16.msra.mxu0 %v1384
      %1451 = vmatprep.subr.bf16.mxu0 %v1389
      %1452 = vmatpush1.bf16.msra.mxu0 %v1388
      %1453 = vmatprep.subr.bf16.mxu0 %v1393
      %1454 = vmatpush1.bf16.msra.mxu0 %v1392
      %1455 = vmatprep.subr.bf16.mxu0 %v1397
      %1456 = vmatpush1.bf16.msra.mxu0 %v1396
      %1457 = vmatprep.subr.bf16.mxu0 0
      %1458 = vmatpush1.bf16.msra.mxu0 0
      %1459 = vmatprep.subr.bf16.mxu0 0
      %1460 = vmatpush1.bf16.msra.mxu0 0
      %1461 = vmatprep.subr.bf16.mxu0 0
      %1462 = vmatpush1.bf16.msra.mxu0 0
      %1463 = vmatprep.subr.bf16.mxu0 0
      %1464 = vmatpush1.bf16.msra.mxu0 0
      %1465 = vmatprep.subr.bf16.mxu0 0
      %1466 = vmatpush1.bf16.msra.mxu0 0
      %1467 = vmatprep.subr.bf16.mxu0 0
      %1468 = vmatpush1.bf16.msra.mxu0 0
      %1469 = vmatprep.subr.bf16.mxu0 0
      %1470 = vmatpush1.bf16.msra.mxu0 0
      %1471 = vmatprep.subr.bf16.mxu0 0
      %1472 = vmatpush1.bf16.msra.mxu0 0
      %1473 = vmatprep.mubr.bf16.mxu0 0
      %1474 = vmatmul.mubr.bf16.gmra.mrb[0].mxu0 %v1351
      %v1475 = vpop.f32.mrb[0].mxu0
      %v1476 = vadd.f32 0.0, %v1475
      %v1477 = vpop.f32.mrb[0].mxu0
      %v1478 = vadd.f32 0.0, %v1477
      %v1479 = vpop.f32.mrb[0].mxu0
      %v1480 = vadd.f32 0.0, %v1479
      %v1481 = vpop.f32.mrb[0].mxu0
      %v1482 = vadd.f32 0.0, %v1481
      %1483 = vdwg.mxu0
      %v1484 = vmax.f32 %v1433, 0.0
      %v1485 = vmax.f32 %v1435, 0.0
      %v1486 = vmax.f32 %v1476, 0.0
      %v1487 = vmax.f32 %v1478, 0.0
      %v1488 = vmax.f32 %v1437, 0.0
      %v1489 = vmax.f32 %v1439, 0.0
      %v1490 = vmax.f32 %v1480, 0.0
      %v1491 = vmax.f32 %v1482, 0.0
      %v1492 = vmul.f32 %v1484, %v1484
      %v1493 = vmul.f32 %v1485, %v1485
      %v1494 = vmul.f32 %v1486, %v1486
      %v1495 = vmul.f32 %v1487, %v1487
      %v1496 = vmul.f32 %v1488, %v1488
      %v1497 = vmul.f32 %v1489, %v1489
      %v1498 = vmul.f32 %v1490, %v1490
      %v1499 = vmul.f32 %v1491, %v1491
      %s1500 = smul.u32 4, 64
      %s1501 = smul.u32 %s1500, 1
      %s1502 = sshll.u32 %s1501, 4
      %1503 = dma.done [#allocation10], %s1502
      %v1504 = vpack.c.bf16 %v1496, %v1492
      %v1505 = vpack.c.bf16 %v1497, %v1493
      %v1506 = vpack.c.bf16 %v1498, %v1494
      %v1507 = vpack.c.bf16 %v1499, %v1495
      %v1508 = vld [vmem:[#allocation7] sm:$0xff]
      %v1509 = vld [vmem:[#allocation7 + $0x8] sm:$0xff]
      %v1510 = vld [vmem:[#allocation7 + $0x10] sm:$0xff]
      %v1511 = vld [vmem:[#allocation7 + $0x18] sm:$0xff]
      %v1512 = vld [vmem:[#allocation7 + $0x20] sm:$0xff]
      %v1513 = vld [vmem:[#allocation7 + $0x28] sm:$0xff]
      %v1514 = vld [vmem:[#allocation7 + $0x30] sm:$0xff]
      %v1515 = vld [vmem:[#allocation7 + $0x38] sm:$0xff]
      %v1516 = vld [vmem:[#allocation7 + $0x40] sm:$0xff]
      %v1517 = vld [vmem:[#allocation7 + $0x48] sm:$0xff]
      %v1518 = vld [vmem:[#allocation7 + $0x50] sm:$0xff]
      %v1519 = vld [vmem:[#allocation7 + $0x58] sm:$0xff]
      %v1520 = vld [vmem:[#allocation7 + $0x60] sm:$0xff]
      %v1521 = vld [vmem:[#allocation7 + $0x68] sm:$0xff]
      %v1522 = vld [vmem:[#allocation7 + $0x70] sm:$0xff]
      %v1523 = vld [vmem:[#allocation7 + $0x78] sm:$0xff]
      %v1524 = vld [vmem:[#allocation7 + $0x80] sm:$0xff]
      %v1525 = vld [vmem:[#allocation7 + $0x88] sm:$0xff]
      %v1526 = vld [vmem:[#allocation7 + $0x90] sm:$0xff]
      %v1527 = vld [vmem:[#allocation7 + $0x98] sm:$0xff]
      %v1528 = vld [vmem:[#allocation7 + $0xa0] sm:$0xff]
      %v1529 = vld [vmem:[#allocation7 + $0xa8] sm:$0xff]
      %v1530 = vld [vmem:[#allocation7 + $0xb0] sm:$0xff]
      %v1531 = vld [vmem:[#allocation7 + $0xb8] sm:$0xff]
      %v1532 = vld [vmem:[#allocation7 + $0xc0] sm:$0xff]
      %v1533 = vld [vmem:[#allocation7 + $0xc8] sm:$0xff]
      %v1534 = vld [vmem:[#allocation7 + $0xd0] sm:$0xff]
      %v1535 = vld [vmem:[#allocation7 + $0xd8] sm:$0xff]
      %v1536 = vld [vmem:[#allocation7 + $0xe0] sm:$0xff]
      %v1537 = vld [vmem:[#allocation7 + $0xe8] sm:$0xff]
      %v1538 = vld [vmem:[#allocation7 + $0xf0] sm:$0xff]
      %v1539 = vld [vmem:[#allocation7 + $0xf8] sm:$0xff]
      %1540 = vmatprep.subr.bf16.mxu0 0
      %1541 = vmatpush1.bf16.msra.mxu0 %v1508
      %1542 = vmatprep.subr.bf16.mxu0 0
      %1543 = vmatpush1.bf16.msra.mxu0 %v1509
      %1544 = vmatprep.subr.bf16.mxu0 0
      %1545 = vmatpush1.bf16.msra.mxu0 %v1510
      %1546 = vmatprep.subr.bf16.mxu0 0
      %1547 = vmatpush1.bf16.msra.mxu0 %v1511
      %1548 = vmatprep.subr.bf16.mxu0 0
      %1549 = vmatpush1.bf16.msra.mxu0 %v1512
      %1550 = vmatprep.subr.bf16.mxu0 0
      %1551 = vmatpush1.bf16.msra.mxu0 %v1513
      %1552 = vmatprep.subr.bf16.mxu0 0
      %1553 = vmatpush1.bf16.msra.mxu0 %v1514
      %1554 = vmatprep.subr.bf16.mxu0 0
      %1555 = vmatpush1.bf16.msra.mxu0 %v1515
      %1556 = vmatprep.subr.bf16.mxu0 0
      %1557 = vmatpush1.bf16.msra.mxu0 %v1516
      %1558 = vmatprep.subr.bf16.mxu0 0
      %1559 = vmatpush1.bf16.msra.mxu0 %v1517
      %1560 = vmatprep.subr.bf16.mxu0 0
      %1561 = vmatpush1.bf16.msra.mxu0 %v1518
      %1562 = vmatprep.subr.bf16.mxu0 0
      %1563 = vmatpush1.bf16.msra.mxu0 %v1519
      %1564 = vmatprep.subr.bf16.mxu0 0
      %1565 = vmatpush1.bf16.msra.mxu0 %v1520
      %1566 = vmatprep.subr.bf16.mxu0 0
      %1567 = vmatpush1.bf16.msra.mxu0 %v1521
      %1568 = vmatprep.subr.bf16.mxu0 0
      %1569 = vmatpush1.bf16.msra.mxu0 %v1522
      %1570 = vmatprep.subr.bf16.mxu0 0
      %1571 = vmatpush1.bf16.msra.mxu0 %v1523
      %1572 = vmatprep.mubr.bf16.mxu0 %v1505
      %1573 = vmatmul.mubr.bf16.gmra.mrb[0].mxu0 %v1504
      %v1574 = vpop.f32.mrb[0].mxu0
      %v1575 = vadd.f32 0.0, %v1574
      %v1576 = vpop.f32.mrb[0].mxu0
      %v1577 = vpop.f32.mrb[0].mxu0
      %v1578 = vadd.f32 0.0, %v1577
      %v1579 = vpop.f32.mrb[0].mxu0
      %1580 = vdwg.mxu0
      %1581 = vmatprep.subr.bf16.mxu0 0
      %1582 = vmatpush1.bf16.msra.mxu0 %v1524
      %1583 = vmatprep.subr.bf16.mxu0 0
      %1584 = vmatpush1.bf16.msra.mxu0 %v1525
      %1585 = vmatprep.subr.bf16.mxu0 0
      %1586 = vmatpush1.bf16.msra.mxu0 %v1526
      %1587 = vmatprep.subr.bf16.mxu0 0
      %1588 = vmatpush1.bf16.msra.mxu0 %v1527
      %1589 = vmatprep.subr.bf16.mxu0 0
      %1590 = vmatpush1.bf16.msra.mxu0 %v1528
      %1591 = vmatprep.subr.bf16.mxu0 0
      %1592 = vmatpush1.bf16.msra.mxu0 %v1529
      %1593 = vmatprep.subr.bf16.mxu0 0
      %1594 = vmatpush1.bf16.msra.mxu0 %v1530
      %1595 = vmatprep.subr.bf16.mxu0 0
      %1596 = vmatpush1.bf16.msra.mxu0 %v1531
      %1597 = vmatprep.subr.bf16.mxu0 0
      %1598 = vmatpush1.bf16.msra.mxu0 %v1532
      %1599 = vmatprep.subr.bf16.mxu0 0
      %1600 = vmatpush1.bf16.msra.mxu0 %v1533
      %1601 = vmatprep.subr.bf16.mxu0 0
      %1602 = vmatpush1.bf16.msra.mxu0 %v1534
      %1603 = vmatprep.subr.bf16.mxu0 0
      %1604 = vmatpush1.bf16.msra.mxu0 %v1535
      %1605 = vmatprep.subr.bf16.mxu0 0
      %1606 = vmatpush1.bf16.msra.mxu0 %v1536
      %1607 = vmatprep.subr.bf16.mxu0 0
      %1608 = vmatpush1.bf16.msra.mxu0 %v1537
      %1609 = vmatprep.subr.bf16.mxu0 0
      %1610 = vmatpush1.bf16.msra.mxu0 %v1538
      %1611 = vmatprep.subr.bf16.mxu0 0
      %1612 = vmatpush1.bf16.msra.mxu0 %v1539
      %1613 = vmatprep.mubr.bf16.mxu0 %v1507
      %1614 = vmatmul.mubr.bf16.gmra.mrb[0].mxu0 %v1506
      %v1615 = vpop.f32.mrb[0].mxu0
      %v1616 = vadd.f32 %v1575, %v1615
      %v1617 = vpop.f32.mrb[0].mxu0
      %v1618 = vpop.f32.mrb[0].mxu0
      %v1619 = vadd.f32 %v1578, %v1618
      %v1620 = vpop.f32.mrb[0].mxu0
      %1621 = vdwg.mxu0
      %s1622 = smul.addr %s445, 64
      %s1623 = scalar_lea.hbm %s12, %s1622
      // Predicated region
      $region106: #{rwkv_forward_pallas.2} parent=43 // pred_check
        _
      $region107: #{rwkv_forward_pallas.2} parent=43 // pred_check_branch
        %1625 = sbr.rel target = $region109
      $region108: #{rwkv_forward_pallas.2} parent=43 // pred_region
        %1626 = sst [smem:[#allocation14]] [#allocation25]
        %1627 = sst [smem:[#allocation15]] [#allocation24]
      $region109: #{rwkv_forward_pallas.2} parent=43 // pred_fallthru
        _
      %1629 = shalt.err (0)
      %s1631 = sshll.u32 [#allocation5], 4
      %s1632 = int_to_ptr.vmem [resolvable:$true] %s1631
      %1634 = dma.hbm_to_vmem [thread:$0]  %s1623, 1024, %s1632, [#allocation8]
      %s1635 = sshll.u32 %s505, 4
      %1636 = dma.done [#allocation8], %s1635
      %v1637 = vld [vmem:[#allocation5] sm:$0xff]
      %v1638 = vld [vmem:[#allocation5 + $0x8] sm:$0xff]
      %v1639 = vld [vmem:[#allocation5 + $0x10] sm:$0xff]
      %v1640 = vld [vmem:[#allocation5 + $0x18] sm:$0xff]
      %v1641 = vld [vmem:[#allocation5 + $0x20] sm:$0xff]
      %v1642 = vld [vmem:[#allocation5 + $0x28] sm:$0xff]
      %v1643 = vld [vmem:[#allocation5 + $0x30] sm:$0xff]
      %v1644 = vld [vmem:[#allocation5 + $0x38] sm:$0xff]
      %1645 = vmatprep.subr.bf16.mxu0 0
      %1646 = vmatpush1.bf16.msra.mxu0 %v1637
      %1647 = vmatprep.subr.bf16.mxu0 0
      %1648 = vmatpush1.bf16.msra.mxu0 %v1638
      %1649 = vmatprep.subr.bf16.mxu0 0
      %1650 = vmatpush1.bf16.msra.mxu0 %v1639
      %1651 = vmatprep.subr.bf16.mxu0 0
      %1652 = vmatpush1.bf16.msra.mxu0 %v1640
      %1653 = vmatprep.subr.bf16.mxu0 0
      %1654 = vmatpush1.bf16.msra.mxu0 %v1641
      %1655 = vmatprep.subr.bf16.mxu0 0
      %1656 = vmatpush1.bf16.msra.mxu0 %v1642
      %1657 = vmatprep.subr.bf16.mxu0 0
      %1658 = vmatpush1.bf16.msra.mxu0 %v1643
      %1659 = vmatprep.subr.bf16.mxu0 0
      %1660 = vmatpush1.bf16.msra.mxu0 %v1644
      %1661 = vmatprep.subr.bf16.mxu0 0
      %1662 = vmatpush1.bf16.msra.mxu0 0
      %1663 = vmatprep.subr.bf16.mxu0 0
      %1664 = vmatpush1.bf16.msra.mxu0 0
      %1665 = vmatprep.subr.bf16.mxu0 0
      %1666 = vmatpush1.bf16.msra.mxu0 0
      %1667 = vmatprep.subr.bf16.mxu0 0
      %1668 = vmatpush1.bf16.msra.mxu0 0
      %1669 = vmatprep.subr.bf16.mxu0 0
      %1670 = vmatpush1.bf16.msra.mxu0 0
      %1671 = vmatprep.subr.bf16.mxu0 0
      %1672 = vmatpush1.bf16.msra.mxu0 0
      %1673 = vmatprep.subr.bf16.mxu0 0
      %1674 = vmatpush1.bf16.msra.mxu0 0
      %1675 = vmatprep.subr.bf16.mxu0 0
      %1676 = vmatpush1.bf16.msra.mxu0 0
      %1677 = vmatprep.mubr.bf16.mxu0 0
      %1678 = vmatmul.mubr.bf16.gmra.mrb[0].mxu0 %v1361
      %v1679 = vpop.f32.mrb[0].mxu0
      %v1680 = vadd.f32 0.0, %v1679
      %v1681 = vpop.f32.mrb[0].mxu0
      %v1682 = vpop.f32.mrb[0].mxu0
      %v1683 = vadd.f32 0.0, %v1682
      %v1684 = vpop.f32.mrb[0].mxu0
      %1685 = vdwg.mxu0
      %v1686 = vld [vmem:[%s13] sm:$0xff]
      %v1687 = vld [vmem:[%s13 + $0x8] sm:$0xff]
      %v1688 = vxor.u32 %v1680, 2147483648
      %v1689 = vxor.u32 %v1683, 2147483648
      %v1690 = vmul.f32 %v1688, 1.442695
      %v1691 = vpow.pop %v1690
      %v1692 = vmul.f32 %v1689, 1.442695
      %v1693 = vpow.pop %v1692
      %v1694 = vadd.f32 %v1691, 1.0
      %v1695 = vadd.f32 %v1693, 1.0
      %v1696 = vrcp.pop %v1694
      %v1697 = vmul.f32 1.0, %v1696
      %v1698 = vrcp.pop %v1695
      %v1699 = vmul.f32 1.0, %v1698
      %v1700 = vmul.f32 %v1697, %v1616
      %v1701 = vmul.f32 %v1699, %v1619
      %v1702 = vadd.f32 %v1686, %v1700
      %v1703 = vadd.f32 %v1687, %v1701
      %1704 = vst [vmem:[%s13] sm:$0xff] %v1702
      %1705 = vst [vmem:[%s13 + $0x8] sm:$0xff] %v1703
      %p1706 = scmp.lt.s32.totalorder %s26, 1
      %s1707 = scalar_select %p1706, %s26, 1
      %s1708 = smul.addr %s1707, 8
      %s1709 = scalar_lea.vmem %s14, %s1708
      // Predicated region
      $region110: #{rwkv_forward_pallas.2} parent=43 // pred_check
        %p1710 = pneg %p190
      $region111: #{rwkv_forward_pallas.2} parent=43 // pred_check_branch
        %1712 = sbr.rel (%p1710) target = $region113
      $region112: #{rwkv_forward_pallas.2} parent=43 // pred_region
        _
      $region113: #{rwkv_forward_pallas.2} parent=43 // pred_fallthru
        _
      // Predicated region
      $region114: #{rwkv_forward_pallas.2} parent=43 // pred_check
        %p1713 = pneg %p216
      $region115: #{rwkv_forward_pallas.2} parent=43 // pred_check_branch
        %1715 = sbr.rel (%p1713) target = $region117
      $region116: #{rwkv_forward_pallas.2} parent=43 // pred_region
        _
      $region117: #{rwkv_forward_pallas.2} parent=43 // pred_fallthru
        _
      // Predicated region
      $region118: #{rwkv_forward_pallas.2} parent=43 // pred_check
        %p1716 = pneg %p190
      $region119: #{rwkv_forward_pallas.2} parent=43 // pred_check_branch
        %1718 = sbr.rel (%p1716) target = $region121
      $region120: #{rwkv_forward_pallas.2} parent=43 // pred_region
        _
      $region121: #{rwkv_forward_pallas.2} parent=43 // pred_fallthru
        _
    $region44: #{rwkv_forward_pallas.2} parent=5 // pred_fallthru
      _
    %p1719 = scmp.le.s32.totalorder 2, %s21
    // Predicated region
    $region122: #{rwkv_forward_pallas.2} parent=5 // pred_check
      %p1720 = pneg %p1719
    $region123: #{rwkv_forward_pallas.2} parent=5 // pred_check_branch
      %1722 = sbr.rel (%p1720) target = $region125
    $region124: #{rwkv_forward_pallas.2} parent=5 // pred_region
      %s1723 = ssub.s32 %s21, 2
      // Predicated region
      $region126: #{rwkv_forward_pallas.2} parent=124 // pred_check
        %p1724 = pneg %p222
      $region127: #{rwkv_forward_pallas.2} parent=124 // pred_check_branch
        %1726 = sbr.rel (%p1724) target = $region129
      $region128: #{rwkv_forward_pallas.2} parent=124 // pred_region
        %p1727 = scmp.lt.s32.totalorder %s27, 1
        %s1728 = scalar_select %p1727, %s27, 1
        %s1729 = smul.addr %s1728, 8
        %s1730 = scalar_lea.vmem %s14, %s1729
      $region129: #{rwkv_forward_pallas.2} parent=124 // pred_fallthru
        _
    $region125: #{rwkv_forward_pallas.2} parent=5 // pred_fallthru
      _
  $region6: #{rwkv_forward_pallas.2} parent=0 // loop_footer
    %s25 = sadd.s32 1, %s21
  $region7: #{rwkv_forward_pallas.2} parent=0 // loop_footer_branch
    %20 = sbr.rel target = $region3
  $region8: #{rwkv_forward_pallas.2} parent=0 // loop_exit
    _
  %1731 = vsyncmov [#allocation8]
  %s1732 = vpop.sfrf %1731
  %p1733 = scmp.eq.s32.totalorder %s1732, 0
  %p1734 = pneg %p1733
  %1736 = shalt.err (%p1734)
  %s1737 = scalar_lea.sflag [#allocation8], 1
  %1738 = vsyncmov %s1737
  %s1739 = vpop.sfrf %1738
  %p1740 = scmp.eq.s32.totalorder %s1739, 0
  %p1741 = pneg %p1740
  %1743 = shalt.err (%p1741)
  %1744 = vsyncmov [#allocation9]
  %s1745 = vpop.sfrf %1744
  %p1746 = scmp.eq.s32.totalorder %s1745, 0
  %p1747 = pneg %p1746
  %1749 = shalt.err (%p1747)
  %s1750 = scalar_lea.sflag [#allocation9], 1
  %1751 = vsyncmov %s1750
  %s1752 = vpop.sfrf %1751
  %p1753 = scmp.eq.s32.totalorder %s1752, 0
  %p1754 = pneg %p1753
  %1756 = shalt.err (%p1754)
  %1757 = vsyncmov [#allocation10]
  %s1758 = vpop.sfrf %1757
  %p1759 = scmp.eq.s32.totalorder %s1758, 0
  %p1760 = pneg %p1759
  %1762 = shalt.err (%p1760)
  %s1763 = scalar_lea.sflag [#allocation10], 1
  %1764 = vsyncmov %s1763
  %s1765 = vpop.sfrf %1764
  %p1766 = scmp.eq.s32.totalorder %s1765, 0
  %p1767 = pneg %p1766
  %1769 = shalt.err (%p1767)

</llo_original>
